<compile_context>
chip_gen: v5e
topology: v5e:2x2
jax: 0.10.0
libtpu: 0.0.40
codegen_flags: <defaults>
</compile_context>

<pallas_src>
import functools

import jax
import jax.numpy as jnp
from jax.experimental import pallas as pl
from jax.experimental.pallas import tpu as pltpu


def _round_up(x, m):
    return (x + m - 1) // m * m


# -----------------------------------------------------------------------------
# Pallas kernel: one fused tile   o = maybe_relu(x @ w + bias)
#   x, w: bf16 (MXU native); accumulation f32; BN scale folded into w columns.
#   Whole K fits a single VMEM tile -> no K grid axis, no accumulator scratch.
# -----------------------------------------------------------------------------
def _fused_mm_kernel(x_ref, w_ref, b_ref, o_ref, *, relu):
    acc = jnp.dot(x_ref[...], w_ref[...], preferred_element_type=jnp.float32)
    y = acc + b_ref[...]
    if relu:
        y = jnp.maximum(y, 0.0)
    o_ref[...] = y.astype(o_ref.dtype)


def fused_matmul(x, layer, *, n_true, relu=True, out_dtype=jnp.bfloat16):
    """Batched fused matmul: x (B, M, K) -> (B, M, Np).

    layer["w"]: (Bw, Kp, Np) bf16 (Bw in {1, B}; BN scale folded, pre-padded/cast)
    layer["b"]: (Bw, 1,  Np) f32  (BN shift)
    Output keeps the padded N (extra columns are exactly zero); callers drop them
    inside the next im2col's channel slice instead of a post-call copy.
    `n_true` (static int) is only used for a truthful CostEstimate.
    """
    B, M, K = x.shape
    wp, bp = layer["w"], layer["b"]
    Bw, Kp, Np = wp.shape
    assert Bw in (1, B) and K <= Kp, (x.shape, wp.shape)

    # Sublane dim only needs multiple-of-16 (bf16); cap tiles at 512 rows.
    Mp16 = _round_up(M, 16)
    TM = Mp16 if Mp16 <= 512 else 512
    Mp = _round_up(M, TM)
    TN = min(Np, 256)                      # single N step for every layer here

    xp = x.astype(jnp.bfloat16)
    if (Mp, Kp) != (M, K):
        xp = jnp.pad(xp, ((0, 0), (0, Mp - M), (0, Kp - K)))

    i_steps, j_steps = Mp // TM, Np // TN
    grid = (B, i_steps, j_steps)

    if Bw == 1:                            # shared weights across the branch axis
        w_map = lambda b, i, j: (0, 0, j)
        b_map = lambda b, i, j: (0, 0, j)
    else:
        w_map = lambda b, i, j: (b, 0, j)
        b_map = lambda b, i, j: (b, 0, j)

    # Weights are re-fetched per i only if the j index toggles between i steps.
    w_bytes = wp.size * 2 * (i_steps if j_steps > 1 else 1)
    cost = pl.CostEstimate(
        flops=2 * B * M * K * n_true,
        transcendentals=0,
        bytes_accessed=int(xp.size * 2 + w_bytes + bp.size * 4
                           + B * Mp * Np * jnp.dtype(out_dtype).itemsize))

    out = pl.pallas_call(
        functools.partial(_fused_mm_kernel, relu=relu),
        out_shape=jax.ShapeDtypeStruct((B, Mp, Np), out_dtype),
        grid_spec=pltpu.PrefetchScalarGridSpec(
            num_scalar_prefetch=0,
            grid=grid,
            in_specs=[
                pl.BlockSpec((None, TM, Kp), lambda b, i, j: (b, i, 0)),
                pl.BlockSpec((None, Kp, TN), w_map),
                pl.BlockSpec((None, 1, TN), b_map),
            ],
            out_specs=pl.BlockSpec((None, TM, TN), lambda b, i, j: (b, i, j)),
        ),
        compiler_params=pltpu.CompilerParams(
            dimension_semantics=("parallel", "parallel", "parallel")),
        cost_estimate=cost,
    )(xp, wp, bp)
    # Row pad (if any) removed; at the shipped sizes Mp == M so this is a no-op.
    return out[:, :M, :]


# -----------------------------------------------------------------------------
# Pallas kernel: fusion head  relu(x @ w + b)  + fused global average pool.
# One grid step per image; the (HW, 128) feature map never leaves VMEM.
# -----------------------------------------------------------------------------
def _fusion_gap_kernel(x_ref, w_ref, b_ref, o_ref, *, inv_hw):
    acc = jnp.dot(x_ref[...], w_ref[...], preferred_element_type=jnp.float32)
    y = jnp.maximum(acc + b_ref[...], 0.0)                 # (HW, 128) f32
    o_ref[...] = jnp.sum(y, axis=0, keepdims=True) * inv_hw  # (1, 128) mean


def fusion_head_gap(x, layer, hw):
    """x: (nj, HW, K) -> per-image GAP features (nj, 128) f32."""
    nj, HW, K = x.shape
    wp, bp = layer["w"], layer["b"]
    Kp, Np = wp.shape
    assert K <= Kp and HW == hw

    xp = x.astype(jnp.bfloat16)
    if Kp != K:
        xp = jnp.pad(xp, ((0, 0), (0, 0), (0, Kp - K)))

    cost = pl.CostEstimate(
        flops=2 * nj * HW * K * Np + nj * HW * Np,
        transcendentals=0,
        bytes_accessed=int(xp.size * 2 + wp.size * 2 + bp.size * 4 + nj * Np * 4))

    out = pl.pallas_call(
        functools.partial(_fusion_gap_kernel, inv_hw=1.0 / hw),
        out_shape=jax.ShapeDtypeStruct((nj, 1, Np), jnp.float32),
        grid_spec=pltpu.PrefetchScalarGridSpec(
            num_scalar_prefetch=0,
            grid=(nj,),
            in_specs=[
                pl.BlockSpec((None, HW, Kp), lambda b: (b, 0, 0)),
                pl.BlockSpec((Kp, Np), lambda b: (0, 0)),
                pl.BlockSpec((1, Np), lambda b: (0, 0)),
            ],
            out_specs=pl.BlockSpec((None, 1, Np), lambda b: (b, 0, 0)),
        ),
        compiler_params=pltpu.CompilerParams(dimension_semantics=("parallel",)),
        cost_estimate=cost,
    )(xp, wp, bp)
    return out[:, 0, :]                                    # (nj, 128) f32


# -----------------------------------------------------------------------------
# im2col (3x3, padding=1, stride 1 or 2), NHWC.  `c_true` drops padded output
# channels of the previous layer inside the gather (fuses with the concat).
# TODO(synk): still XLA-materialized; a manual halo-DMA kernel would remove it.
# -----------------------------------------------------------------------------
def im2col_3x3(x, stride=1, c_true=None):
    if c_true is not None:
        x = x[..., :c_true]
    n, h, w, c = x.shape
    ho = (h + 2 - 3) // stride + 1
    wo = (w + 2 - 3) // stride + 1
    xp = jnp.pad(x, ((0, 0), (1, 1), (1, 1), (0, 0)))
    cols = []
    for di in range(3):
        for dj in range(3):
            cols.append(xp[:, di:di + stride * (ho - 1) + 1:stride,
                           dj:dj + stride * (wo - 1) + 1:stride, :])
    cols = jnp.concatenate(cols, axis=-1)                  # (N, Ho, Wo, 9*C)
    return cols.reshape(n * ho * wo, 9 * c), (n, ho, wo)


# -----------------------------------------------------------------------------
# Parameters: fold BN (eval mode) into bias-free convs, pad + cast once (static).
# -----------------------------------------------------------------------------
def _fold_bn(w, gamma, beta, mean, var, eps=1e-5):
    """w: (3,3,Cin,Cout) f32, bias=False conv. Returns folded (9*Cin,Cout), shift."""
    s = gamma / jnp.sqrt(var + eps)
    wf = (w * s).reshape(-1, w.shape[-1])
    return wf, beta - mean * s


def _init_conv_bn(key, cin, cout):
    k1, k2 = jax.random.split(key)
    w = jax.random.normal(k1, (3, 3, cin, cout), jnp.float32) / jnp.sqrt(9.0 * cin)
    gamma = 1.0 + 0.1 * jax.random.normal(k2, (cout,), jnp.float32)
    beta = jnp.zeros((cout,), jnp.float32)
    mean = jnp.zeros((cout,), jnp.float32)
    var = jnp.ones((cout,), jnp.float32)
    return _fold_bn(w, gamma, beta, mean, var)


def _prep_layer(w_list, b_list):
    """Stack branch weights; pad K (per-branch Ks may differ) to a common
    multiple-of-16 and N to multiple-of-128 (zeros), cast bf16.  Arrays only —
    no Python scalars in the jitted pytree."""
    N = w_list[0].shape[1]
    Kp = _round_up(max(max(w.shape[0] for w in w_list), 16), 16)
    Np = _round_up(N, 128)
    w = jnp.stack([jnp.pad(wi, ((0, Kp - wi.shape[0]), (0, Np - N)))
                   for wi in w_list])
    b = jnp.stack([jnp.pad(bi, (0, Np - N)).reshape(1, Np) for bi in b_list])
    return {"w": w.astype(jnp.bfloat16), "b": b.astype(jnp.float32)}


def init_params(key, hsi_ch=144, lidar_ch=1, num_classes=15):
    ks = jax.random.split(key, 8)
    wh1, bh1 = _init_conv_bn(ks[0], hsi_ch, 32)       # hsi_block_1 conv1
    wl1, bl1 = _init_conv_bn(ks[1], lidar_ch, 32)     # lidar_block_1 conv1
    wh2, bh2 = _init_conv_bn(ks[2], 32, 64)           # hsi_block_1 conv2
    wl2, bl2 = _init_conv_bn(ks[3], 32, 64)           # lidar_block_1 conv2
    whb, bhb = _init_conv_bn(ks[4], 64, 128)          # hsi_block_2 (stride 2)
    wlb, blb = _init_conv_bn(ks[5], 64, 128)          # lidar_block_2 (stride 2)
    wfc, bfc = _init_conv_bn(ks[6], 256, 128)         # MDMB_fusion conv (inferred)
    kfc1, kfc2 = jax.random.split(ks[7])
    fus = _prep_layer([wfc], [bfc])
    return {
        # conv1 of both modalities in one batched call (lidar K zero-padded to hsi's)
        "c1": _prep_layer([wh1, wl1], [bh1, bl1]),
        # both branches' conv2 share shapes -> batched B=2 (parallel grid axis)
        "c2": _prep_layer([wh2, wl2], [bh2, bl2]),
        # block_2 weight sets concatenated along N: cols 0:128 -> hsi_block_2,
        # cols 128:256 -> lidar_block_2; shared (Bw=1) across both feature maps.
        "blk2": _prep_layer([jnp.concatenate([whb, wlb], axis=1)],
                            [jnp.concatenate([bhb, blb], axis=0)]),
        "fus_c1": {"w": fus["w"][0], "b": fus["b"][0]},
        "fc": {"w": jax.random.normal(kfc1, (128, num_classes), jnp.float32)
                    / jnp.sqrt(128.0),
               "b": 0.01 * jax.random.normal(kfc2, (num_classes,), jnp.float32)},
    }


# -----------------------------------------------------------------------------
# Forward (mirrors HSI_Lidar_Couple_Cross.forward, eval-mode BN)
# -----------------------------------------------------------------------------
def hsi_lidar_couple_cross(hsi_nchw, lidar_nchw, params):
    # NCHW (PyTorch) -> NHWC, bf16 activations through the conv trunk.
    hsi = jnp.transpose(hsi_nchw, (0, 2, 3, 1)).astype(jnp.bfloat16)
    lidar = jnp.transpose(lidar_nchw, (0, 2, 3, 1)).astype(jnp.bfloat16)
    n, h, w, _ = hsi.shape

    # ---- block_1 conv1: one batched call over both modalities ----
    ch1, _ = im2col_3x3(hsi, 1)
    cl1, _ = im2col_3x3(lidar, 1)
    cl1 = jnp.pad(cl1, ((0, 0), (0, ch1.shape[1] - cl1.shape[1])))
    o1 = fused_matmul(jnp.stack([ch1, cl1]), params["c1"], n_true=32)
    h1 = o1[0].reshape(n, h, w, -1)        # padded 128 ch, true 32 (pad cols == 0)
    l1 = o1[1].reshape(n, h, w, -1)

    # ---- block_1 conv2: batched over the two branches ----
    c2h, _ = im2col_3x3(h1, 1, c_true=32)
    c2l, _ = im2col_3x3(l1, 1, c_true=32)
    o2 = fused_matmul(jnp.stack([c2h, c2l]), params["c2"], n_true=64)
    h2 = o2[0].reshape(n, h, w, -1)        # padded 128 ch, true 64
    l2 = o2[1].reshape(n, h, w, -1)

    # ---- block_2 (3x3, stride 2): all four cross-coupled combinations
    #      {hsi_block_2, lidar_block_2} x {h2, l2} from ONE call: branch axis of 2
    #      (shards across v7x's two TCs), shared weight block along N. ----
    cbh, (n2, h2s, w2s) = im2col_3x3(h2, 2, c_true=64)
    cbl, _ = im2col_3x3(l2, 2, c_true=64)
    ob = fused_matmul(jnp.stack([cbh, cbl]), params["blk2"], n_true=256)
    hsi_rows = ob[0].reshape(n2, h2s, w2s, 256)
    lid_rows = ob[1].reshape(n2, h2s, w2s, 256)
    x_hsi = hsi_rows[..., :128]            # hsi_block_2(hsi feat)
    x_hsi_lidar = hsi_rows[..., 128:]      # lidar_block_2(hsi feat)
    x_lidar_hsi = lid_rows[..., :128]      # hsi_block_2(lidar feat)
    x_lidar = lid_rows[..., 128:]          # lidar_block_2(lidar feat)

    # ---- joints (torch.cat dim=1 in NCHW == last-axis concat in NHWC) ----
    joint_1 = jnp.concatenate([(x_hsi + x_lidar_hsi) * 0.5,
                               (x_lidar + x_hsi_lidar) * 0.5], axis=-1)
    joint_2 = jnp.concatenate([x_hsi, x_hsi_lidar], axis=-1)
    joint_3 = jnp.concatenate([x_lidar_hsi, x_lidar], axis=-1)

    # ---- shared MDMB_fusion head over the 3 joints: one call, one grid step per
    #      image, global average pool fused into the kernel epilogue. ----
    joints = jnp.concatenate([joint_1, joint_2, joint_3], axis=0)  # (3*n2,.,.,256)
    cj, (nj, hj, wj) = im2col_3x3(joints, 1, c_true=256)
    cj = cj.reshape(nj, hj * wj, -1)
    feat = fusion_head_gap(cj, params["fus_c1"], hj * wj)          # (nj, 128) f32

    # FC head is ~4 kFLOPs: plain XLA dot (pallas_call fixed overhead dominates).
    logits = feat @ params["fc"]["w"] + params["fc"]["b"]          # (3*n2, C)
    x1, x2, x3 = jnp.split(logits, 3, axis=0)
    return x1, x2, x3


if __name__ == "__main__":
    key = jax.random.PRNGKey(0)
    kp, kh, kl = jax.random.split(key, 3)

    batch, hsi_ch, lidar_ch, spatial, num_classes = 2, 144, 1, 8, 15
    params = init_params(kp, hsi_ch, lidar_ch, num_classes)

    hsi = jax.random.normal(kh, (batch, hsi_ch, spatial, spatial), jnp.float32)
    lidar = jax.random.normal(kl, (batch, lidar_ch, spatial, spatial), jnp.float32)

    fwd = jax.jit(hsi_lidar_couple_cross)
    x1, x2, x3 = jax.block_until_ready(fwd(hsi, lidar, params))

    for out in (x1, x2, x3):
        assert out.shape == (batch, num_classes), out.shape
        assert bool(jnp.all(jnp.isfinite(out)))
    print("KERNEL_OK")
</pallas_src>

<mosaic_0001>
module attributes {stable_mosaic.version = 11 : i64} {
  func.func @_fused_mm_kernel(%arg0: i32, %arg1: i32, %arg2: i32, %arg3: memref<1x128x1296xbf16, #tpu.memory_space<vmem>>, %arg4: memref<1x1296x128xbf16, #tpu.memory_space<vmem>>, %arg5: memref<1x1x128xf32, #tpu.memory_space<vmem>>, %arg6: memref<1x128x128xbf16, #tpu.memory_space<vmem>>) attributes {dimension_semantics = [#tpu.dimension_semantics<parallel>, #tpu.dimension_semantics<parallel>, #tpu.dimension_semantics<parallel>], iteration_bounds = array<i64: 2, 1, 1>, scalar_prefetch = 0 : i64, scratch_operands = 0 : i64, tpu.core_type = #tpu.core_type<tc>, window_params = [{transform_indices = @transform_0, window_bounds = array<i64: 1, 128, 1296>}, {transform_indices = @transform_1, window_bounds = array<i64: 1, 1296, 128>}, {transform_indices = @transform_2, window_bounds = array<i64: 1, 1, 128>}, {transform_indices = @transform_3, window_bounds = array<i64: 1, 128, 128>}]} {
    %c0 = arith.constant 0 : index
    %c0_0 = arith.constant 0 : index
    %c0_1 = arith.constant 0 : index
    %0 = vector.load %arg3[%c0, %c0_0, %c0_1] : memref<1x128x1296xbf16, #tpu.memory_space<vmem>>, vector<1x128x1296xbf16>
    %1 = vector.shape_cast %0 : vector<1x128x1296xbf16> to vector<128x1296xbf16>
    %c0_2 = arith.constant 0 : index
    %c0_3 = arith.constant 0 : index
    %c0_4 = arith.constant 0 : index
    %2 = vector.load %arg4[%c0_2, %c0_3, %c0_4] : memref<1x1296x128xbf16, #tpu.memory_space<vmem>>, vector<1x1296x128xbf16>
    %3 = vector.shape_cast %2 : vector<1x1296x128xbf16> to vector<1296x128xbf16>
    %cst = arith.constant dense<0.000000e+00> : vector<128x128xf32>
    %4 = tpu.matmul %1, %3, %cst {dimension_numbers = #tpu.dot_dimension_numbers<[1], [0], [0], [1], [0, 0, 1, 1], [], []>} : vector<128x1296xbf16>, vector<1296x128xbf16>, vector<128x128xf32> -> vector<128x128xf32>
    %c0_5 = arith.constant 0 : index
    %c0_6 = arith.constant 0 : index
    %c0_7 = arith.constant 0 : index
    %5 = vector.load %arg5[%c0_5, %c0_6, %c0_7] : memref<1x1x128xf32, #tpu.memory_space<vmem>>, vector<1x1x128xf32>
    %6 = vector.shape_cast %5 : vector<1x1x128xf32> to vector<1x128xf32>
    %7 = vector.broadcast %6 : vector<1x128xf32> to vector<128x128xf32>
    %8 = arith.addf %4, %7 : vector<128x128xf32>
    %cst_8 = arith.constant 0.000000e+00 : f32
    %9 = vector.broadcast %cst_8 : f32 to vector<128x128xf32>
    %10 = arith.maximumf %8, %9 : vector<128x128xf32>
    %11 = arith.truncf %10 : vector<128x128xf32> to vector<128x128xbf16>
    %c0_9 = arith.constant 0 : index
    %c0_10 = arith.constant 0 : index
    %c0_11 = arith.constant 0 : index
    %12 = vector.load %arg6[%c0_9, %c0_10, %c0_11] : memref<1x128x128xbf16, #tpu.memory_space<vmem>>, vector<1x128x128xbf16>
    %13 = vector.shape_cast %12 : vector<1x128x128xbf16> to vector<128x128xbf16>
    %14 = vector.shape_cast %11 : vector<128x128xbf16> to vector<1x128x128xbf16>
    tpu.vector_store %arg6[%c0_9, %c0_10, %c0_11], %14 {strides = array<i32>} : memref<1x128x128xbf16, #tpu.memory_space<vmem>>, vector<1x128x128xbf16>,
    return
  }
  func.func @transform_0(%arg0: i32, %arg1: i32, %arg2: i32) -> (i32, i32, i32) {
    %c0_i32 = arith.constant 0 : i32
    %c0_i32_0 = arith.constant 0 : i32
    return %arg0, %arg1, %c0_i32 : i32, i32, i32
  }
  func.func @transform_1(%arg0: i32, %arg1: i32, %arg2: i32) -> (i32, i32, i32) {
    %c0_i32 = arith.constant 0 : i32
    %c0_i32_0 = arith.constant 0 : i32
    return %arg0, %c0_i32, %arg2 : i32, i32, i32
  }
  func.func @transform_2(%arg0: i32, %arg1: i32, %arg2: i32) -> (i32, i32, i32) {
    %c0_i32 = arith.constant 0 : i32
    %c0_i32_0 = arith.constant 0 : i32
    return %arg0, %c0_i32, %arg2 : i32, i32, i32
  }
  func.func @transform_3(%arg0: i32, %arg1: i32, %arg2: i32) -> (i32, i32, i32) {
    %c0_i32 = arith.constant 0 : i32
    return %arg0, %arg1, %arg2 : i32, i32, i32
  }
}

module attributes {stable_mosaic.version = 11 : i64} {
  func.func @_fused_mm_kernel(%arg0: i32, %arg1: i32, %arg2: i32, %arg3: memref<1x128x288xbf16, #tpu.memory_space<vmem>>, %arg4: memref<1x288x128xbf16, #tpu.memory_space<vmem>>, %arg5: memref<1x1x128xf32, #tpu.memory_space<vmem>>, %arg6: memref<1x128x128xbf16, #tpu.memory_space<vmem>>) attributes {dimension_semantics = [#tpu.dimension_semantics<parallel>, #tpu.dimension_semantics<parallel>, #tpu.dimension_semantics<parallel>], iteration_bounds = array<i64: 2, 1, 1>, scalar_prefetch = 0 : i64, scratch_operands = 0 : i64, tpu.core_type = #tpu.core_type<tc>, window_params = [{transform_indices = @transform_0, window_bounds = array<i64: 1, 128, 288>}, {transform_indices = @transform_1, window_bounds = array<i64: 1, 288, 128>}, {transform_indices = @transform_2, window_bounds = array<i64: 1, 1, 128>}, {transform_indices = @transform_3, window_bounds = array<i64: 1, 128, 128>}]} {
    %c0 = arith.constant 0 : index
    %c0_0 = arith.constant 0 : index
    %c0_1 = arith.constant 0 : index
    %0 = vector.load %arg3[%c0, %c0_0, %c0_1] : memref<1x128x288xbf16, #tpu.memory_space<vmem>>, vector<1x128x288xbf16>
    %1 = vector.shape_cast %0 : vector<1x128x288xbf16> to vector<128x288xbf16>
    %c0_2 = arith.constant 0 : index
    %c0_3 = arith.constant 0 : index
    %c0_4 = arith.constant 0 : index
    %2 = vector.load %arg4[%c0_2, %c0_3, %c0_4] : memref<1x288x128xbf16, #tpu.memory_space<vmem>>, vector<1x288x128xbf16>
    %3 = vector.shape_cast %2 : vector<1x288x128xbf16> to vector<288x128xbf16>
    %cst = arith.constant dense<0.000000e+00> : vector<128x128xf32>
    %4 = tpu.matmul %1, %3, %cst {dimension_numbers = #tpu.dot_dimension_numbers<[1], [0], [0], [1], [0, 0, 1, 1], [], []>} : vector<128x288xbf16>, vector<288x128xbf16>, vector<128x128xf32> -> vector<128x128xf32>
    %c0_5 = arith.constant 0 : index
    %c0_6 = arith.constant 0 : index
    %c0_7 = arith.constant 0 : index
    %5 = vector.load %arg5[%c0_5, %c0_6, %c0_7] : memref<1x1x128xf32, #tpu.memory_space<vmem>>, vector<1x1x128xf32>
    %6 = vector.shape_cast %5 : vector<1x1x128xf32> to vector<1x128xf32>
    %7 = vector.broadcast %6 : vector<1x128xf32> to vector<128x128xf32>
    %8 = arith.addf %4, %7 : vector<128x128xf32>
    %cst_8 = arith.constant 0.000000e+00 : f32
    %9 = vector.broadcast %cst_8 : f32 to vector<128x128xf32>
    %10 = arith.maximumf %8, %9 : vector<128x128xf32>
    %11 = arith.truncf %10 : vector<128x128xf32> to vector<128x128xbf16>
    %c0_9 = arith.constant 0 : index
    %c0_10 = arith.constant 0 : index
    %c0_11 = arith.constant 0 : index
    %12 = vector.load %arg6[%c0_9, %c0_10, %c0_11] : memref<1x128x128xbf16, #tpu.memory_space<vmem>>, vector<1x128x128xbf16>
    %13 = vector.shape_cast %12 : vector<1x128x128xbf16> to vector<128x128xbf16>
    %14 = vector.shape_cast %11 : vector<128x128xbf16> to vector<1x128x128xbf16>
    tpu.vector_store %arg6[%c0_9, %c0_10, %c0_11], %14 {strides = array<i32>} : memref<1x128x128xbf16, #tpu.memory_space<vmem>>, vector<1x128x128xbf16>,
    return
  }
  func.func @transform_0(%arg0: i32, %arg1: i32, %arg2: i32) -> (i32, i32, i32) {
    %c0_i32 = arith.constant 0 : i32
    %c0_i32_0 = arith.constant 0 : i32
    return %arg0, %arg1, %c0_i32 : i32, i32, i32
  }
  func.func @transform_1(%arg0: i32, %arg1: i32, %arg2: i32) -> (i32, i32, i32) {
    %c0_i32 = arith.constant 0 : i32
    %c0_i32_0 = arith.constant 0 : i32
    return %arg0, %c0_i32, %arg2 : i32, i32, i32
  }
  func.func @transform_2(%arg0: i32, %arg1: i32, %arg2: i32) -> (i32, i32, i32) {
    %c0_i32 = arith.constant 0 : i32
    %c0_i32_0 = arith.constant 0 : i32
    return %arg0, %c0_i32, %arg2 : i32, i32, i32
  }
  func.func @transform_3(%arg0: i32, %arg1: i32, %arg2: i32) -> (i32, i32, i32) {
    %c0_i32 = arith.constant 0 : i32
    return %arg0, %arg1, %arg2 : i32, i32, i32
  }
}

module attributes {stable_mosaic.version = 11 : i64} {
  func.func @_fused_mm_kernel(%arg0: i32, %arg1: i32, %arg2: i32, %arg3: memref<1x32x576xbf16, #tpu.memory_space<vmem>>, %arg4: memref<1x576x256xbf16, #tpu.memory_space<vmem>>, %arg5: memref<1x1x256xf32, #tpu.memory_space<vmem>>, %arg6: memref<1x32x256xbf16, #tpu.memory_space<vmem>>) attributes {dimension_semantics = [#tpu.dimension_semantics<parallel>, #tpu.dimension_semantics<parallel>, #tpu.dimension_semantics<parallel>], iteration_bounds = array<i64: 2, 1, 1>, scalar_prefetch = 0 : i64, scratch_operands = 0 : i64, tpu.core_type = #tpu.core_type<tc>, window_params = [{transform_indices = @transform_0, window_bounds = array<i64: 1, 32, 576>}, {transform_indices = @transform_1, window_bounds = array<i64: 1, 576, 256>}, {transform_indices = @transform_2, window_bounds = array<i64: 1, 1, 256>}, {transform_indices = @transform_3, window_bounds = array<i64: 1, 32, 256>}]} {
    %c0 = arith.constant 0 : index
    %c0_0 = arith.constant 0 : index
    %c0_1 = arith.constant 0 : index
    %0 = vector.load %arg3[%c0, %c0_0, %c0_1] : memref<1x32x576xbf16, #tpu.memory_space<vmem>>, vector<1x32x576xbf16>
    %1 = vector.shape_cast %0 : vector<1x32x576xbf16> to vector<32x576xbf16>
    %c0_2 = arith.constant 0 : index
    %c0_3 = arith.constant 0 : index
    %c0_4 = arith.constant 0 : index
    %2 = vector.load %arg4[%c0_2, %c0_3, %c0_4] : memref<1x576x256xbf16, #tpu.memory_space<vmem>>, vector<1x576x256xbf16>
    %3 = vector.shape_cast %2 : vector<1x576x256xbf16> to vector<576x256xbf16>
    %cst = arith.constant dense<0.000000e+00> : vector<32x256xf32>
    %4 = tpu.matmul %1, %3, %cst {dimension_numbers = #tpu.dot_dimension_numbers<[1], [0], [0], [1], [0, 0, 1, 1], [], []>} : vector<32x576xbf16>, vector<576x256xbf16>, vector<32x256xf32> -> vector<32x256xf32>
    %c0_5 = arith.constant 0 : index
    %c0_6 = arith.constant 0 : index
    %c0_7 = arith.constant 0 : index
    %5 = vector.load %arg5[%c0_5, %c0_6, %c0_7] : memref<1x1x256xf32, #tpu.memory_space<vmem>>, vector<1x1x256xf32>
    %6 = vector.shape_cast %5 : vector<1x1x256xf32> to vector<1x256xf32>
    %7 = vector.broadcast %6 : vector<1x256xf32> to vector<32x256xf32>
    %8 = arith.addf %4, %7 : vector<32x256xf32>
    %cst_8 = arith.constant 0.000000e+00 : f32
    %9 = vector.broadcast %cst_8 : f32 to vector<32x256xf32>
    %10 = arith.maximumf %8, %9 : vector<32x256xf32>
    %11 = arith.truncf %10 : vector<32x256xf32> to vector<32x256xbf16>
    %c0_9 = arith.constant 0 : index
    %c0_10 = arith.constant 0 : index
    %c0_11 = arith.constant 0 : index
    %12 = vector.load %arg6[%c0_9, %c0_10, %c0_11] : memref<1x32x256xbf16, #tpu.memory_space<vmem>>, vector<1x32x256xbf16>
    %13 = vector.shape_cast %12 : vector<1x32x256xbf16> to vector<32x256xbf16>
    %14 = vector.shape_cast %11 : vector<32x256xbf16> to vector<1x32x256xbf16>
    tpu.vector_store %arg6[%c0_9, %c0_10, %c0_11], %14 {strides = array<i32>} : memref<1x32x256xbf16, #tpu.memory_space<vmem>>, vector<1x32x256xbf16>,
    return
  }
  func.func @transform_0(%arg0: i32, %arg1: i32, %arg2: i32) -> (i32, i32, i32) {
    %c0_i32 = arith.constant 0 : i32
    %c0_i32_0 = arith.constant 0 : i32
    return %arg0, %arg1, %c0_i32 : i32, i32, i32
  }
  func.func @transform_1(%arg0: i32, %arg1: i32, %arg2: i32) -> (i32, i32, i32) {
    %c0_i32 = arith.constant 0 : i32
    %c0_i32_0 = arith.constant 0 : i32
    %c0_i32_1 = arith.constant 0 : i32
    return %c0_i32, %c0_i32_0, %arg2 : i32, i32, i32
  }
  func.func @transform_2(%arg0: i32, %arg1: i32, %arg2: i32) -> (i32, i32, i32) {
    %c0_i32 = arith.constant 0 : i32
    %c0_i32_0 = arith.constant 0 : i32
    %c0_i32_1 = arith.constant 0 : i32
    return %c0_i32, %c0_i32_0, %arg2 : i32, i32, i32
  }
  func.func @transform_3(%arg0: i32, %arg1: i32, %arg2: i32) -> (i32, i32, i32) {
    %c0_i32 = arith.constant 0 : i32
    return %arg0, %arg1, %arg2 : i32, i32, i32
  }
}

module attributes {stable_mosaic.version = 11 : i64} {
  func.func @_fusion_gap_kernel(%arg0: i32, %arg1: memref<1x16x2304xbf16, #tpu.memory_space<vmem>>, %arg2: memref<2304x128xbf16, #tpu.memory_space<vmem>>, %arg3: memref<1x128xf32, #tpu.memory_space<vmem>>, %arg4: memref<1x1x128xf32, #tpu.memory_space<vmem>>) attributes {dimension_semantics = [#tpu.dimension_semantics<parallel>], iteration_bounds = array<i64: 6>, scalar_prefetch = 0 : i64, scratch_operands = 0 : i64, tpu.core_type = #tpu.core_type<tc>, window_params = [{transform_indices = @transform_0, window_bounds = array<i64: 1, 16, 2304>}, {pipeline_mode = #tpu.pipeline_mode<synchronous>, transform_indices = @transform_1, window_bounds = array<i64: 2304, 128>}, {pipeline_mode = #tpu.pipeline_mode<synchronous>, transform_indices = @transform_2, window_bounds = array<i64: 1, 128>}, {transform_indices = @transform_3, window_bounds = array<i64: 1, 1, 128>}]} {
    %c0 = arith.constant 0 : index
    %c0_0 = arith.constant 0 : index
    %c0_1 = arith.constant 0 : index
    %0 = vector.load %arg1[%c0, %c0_0, %c0_1] : memref<1x16x2304xbf16, #tpu.memory_space<vmem>>, vector<1x16x2304xbf16>
    %1 = vector.shape_cast %0 : vector<1x16x2304xbf16> to vector<16x2304xbf16>
    %c0_2 = arith.constant 0 : index
    %c0_3 = arith.constant 0 : index
    %2 = vector.load %arg2[%c0_2, %c0_3] : memref<2304x128xbf16, #tpu.memory_space<vmem>>, vector<2304x128xbf16>
    %cst = arith.constant dense<0.000000e+00> : vector<16x128xf32>
    %3 = tpu.matmul %1, %2, %cst {dimension_numbers = #tpu.dot_dimension_numbers<[1], [0], [0], [1], [0, 0, 1, 1], [], []>} : vector<16x2304xbf16>, vector<2304x128xbf16>, vector<16x128xf32> -> vector<16x128xf32>
    %c0_4 = arith.constant 0 : index
    %c0_5 = arith.constant 0 : index
    %4 = vector.load %arg3[%c0_4, %c0_5] : memref<1x128xf32, #tpu.memory_space<vmem>>, vector<1x128xf32>
    %5 = vector.broadcast %4 : vector<1x128xf32> to vector<16x128xf32>
    %6 = arith.addf %3, %5 : vector<16x128xf32>
    %cst_6 = arith.constant 0.000000e+00 : f32
    %7 = vector.broadcast %cst_6 : f32 to vector<16x128xf32>
    %8 = arith.maximumf %6, %7 : vector<16x128xf32>
    %cst_7 = arith.constant dense<0.000000e+00> : vector<128xf32>
    %9 = vector.multi_reduction <add>, %8, %cst_7 [0] : vector<16x128xf32> to vector<128xf32>
    %10 = vector.shape_cast %9 : vector<128xf32> to vector<1x128xf32>
    %cst_8 = arith.constant 6.250000e-02 : f32
    %11 = vector.broadcast %cst_8 : f32 to vector<1x128xf32>
    %12 = arith.mulf %10, %11 : vector<1x128xf32>
    %c0_9 = arith.constant 0 : index
    %c0_10 = arith.constant 0 : index
    %c0_11 = arith.constant 0 : index
    %13 = vector.load %arg4[%c0_9, %c0_10, %c0_11] : memref<1x1x128xf32, #tpu.memory_space<vmem>>, vector<1x1x128xf32>
    %14 = vector.shape_cast %13 : vector<1x1x128xf32> to vector<1x128xf32>
    %15 = vector.shape_cast %12 : vector<1x128xf32> to vector<1x1x128xf32>
    tpu.vector_store %arg4[%c0_9, %c0_10, %c0_11], %15 {strides = array<i32>} : memref<1x1x128xf32, #tpu.memory_space<vmem>>, vector<1x1x128xf32>,
    return
  }
  func.func @transform_0(%arg0: i32) -> (i32, i32, i32) {
    %c0_i32 = arith.constant 0 : i32
    %c0_i32_0 = arith.constant 0 : i32
    %c0_i32_1 = arith.constant 0 : i32
    return %arg0, %c0_i32, %c0_i32_0 : i32, i32, i32
  }
  func.func @transform_1(%arg0: i32) -> (i32, i32) {
    %c0_i32 = arith.constant 0 : i32
    %c0_i32_0 = arith.constant 0 : i32
    %c0_i32_1 = arith.constant 0 : i32
    return %c0_i32, %c0_i32_0 : i32, i32
  }
  func.func @transform_2(%arg0: i32) -> (i32, i32) {
    %c0_i32 = arith.constant 0 : i32
    %c0_i32_0 = arith.constant 0 : i32
    %c0_i32_1 = arith.constant 0 : i32
    return %c0_i32, %c0_i32_0 : i32, i32
  }
  func.func @transform_3(%arg0: i32) -> (i32, i32, i32) {
    %c0_i32 = arith.constant 0 : i32
    %c0_i32_0 = arith.constant 0 : i32
    %c0_i32_1 = arith.constant 0 : i32
    return %arg0, %c0_i32, %c0_i32_0 : i32, i32, i32
  }
}

</mosaic_0001>

<llo_original>
// kernel: hsi_lidar_couple_cross.4
$region0: #{hsi_lidar_couple_cross.4}
  #allocation0 [shape = 'u32[]', space=smem, size = 0x4, offset = 0x4, fixed_abs, tag = 'smem constant byte address 0x4 - core index']
  #allocation1 [shape = 'u32[72,128]{1,0:T(1,128)}', space=vmem, size = 0x9000, scoped, tag = 'internal scratch']
  %s0 = inlined_call_operand.vmem [shape: bf16[2,128,1296], index: 0, kind: input, shape index: {}]
  %s1 = inlined_call_operand.vmem [shape: bf16[2,1296,128], index: 1, kind: input, shape index: {}]
  %s2 = inlined_call_operand.vmem [shape: f32[2,1,128], index: 2, kind: input, shape index: {}]
  %s3 = inlined_call_operand.vmem [shape: bf16[2,128,128], index: 3, kind: output, shape index: {}]
  %s4 = sld [smem:[#allocation0]]
  $region45: #{hsi_lidar_couple_cross.4} parent=0
    _
  %s6 = ssub.s32 1, %s4
  %s7 = scalar_select 0, %s6, %s4
  loop: start=0, step=1, limit=4
  $region2: #{hsi_lidar_couple_cross.4} parent=0 // loop_pre_header
    _
  $region3: #{hsi_lidar_couple_cross.4} parent=0 // loop_header
    %s9 = sphi 0, %s13
    %p10 = scmp.ge.s32.totalorder %s9, 4
    %s16 = sphi 0, %s35
    %s17 = sphi 0, %s31
    %s18 = sphi 0, %s27
    %s19 = sphi 0, %s16
    %s20 = sphi 0, %s17
    %s21 = sphi 0, %s18
    %s22 = sphi 0, %s19
    %s23 = sphi 0, %s20
    %s24 = sphi 0, %s21
    %s40 = sphi 0, %s42
    %s43 = sphi 0, %s40
    %s44 = sphi 0, %s43
    %s60 = sphi 0, %s44
    %s68 = sphi 0, %s70
    %s71 = sphi 0, %s68
    %s72 = sphi 0, %s71
    %s88 = sphi 0, %s72
    %s96 = sphi 0, %s98
    %s99 = sphi 0, %s96
    %s100 = sphi 0, %s99
    %s116 = sphi 0, %s100
    %s126 = sphi 0, %s128
    %s129 = sphi 0, %s126
    %s130 = sphi 0, %s129
    %s146 = sphi 0, %s130
  $region4: #{hsi_lidar_couple_cross.4} parent=0 // loop_header_branch
    %12 = sbr.rel (%p10) target = $region8
  $region5: #{hsi_lidar_couple_cross.4} parent=0 // loop_body
    %s14 = ssub.s32 %s9, 1
    %s15 = ssub.s32 %s9, 2
    %s25 = sadd.s32 1, %s18
    %p26 = scmp.ge.s32.totalorder %s25, 1
    %s27 = scalar_select %p26, 0, %s25
    %s28 = sadd.s32 1, %s17
    %s29 = scalar_select %p26, %s28, %s17
    %p30 = scmp.ge.s32.totalorder %s29, 1
    %s31 = scalar_select %p30, 0, %s29
    %s32 = sadd.s32 1, %s16
    %s33 = scalar_select %p30, %s32, %s16
    %p34 = scmp.ge.s32.totalorder %s33, 2
    %s35 = scalar_select %p34, 0, %s33
    %s36 = ssub.s32 %s16, %s35
    %s37 = ssub.s32 %s17, %s31
    %s38 = sor.u32 %s36, %s37
    %p39 = scmp.eq.s32.totalorder %s38, 0
    %s41 = sadd.s32 %s40, 1
    %s42 = scalar_select %p39, %s40, %s41
    %p45 = pneg %p39
    %p46 = scmp.eq.s32.totalorder %s9, 1
    %p47 = por %p45, %p46
    %p48 = scmp.ne.s32.totalorder %s40, %s43
    %p49 = scmp.eq.s32.totalorder %s9, 0
    %p50 = por %p48, %p49
    %p51 = scmp.ne.s32.totalorder %s40, %s43
    %p52 = scmp.eq.s32.totalorder %s14, 1
    %p53 = por %p51, %p52
    %p54 = scmp.ne.s32.totalorder %s43, %s44
    %p55 = scmp.eq.s32.totalorder %s14, 0
    %p56 = por %p54, %p55
    %p57 = scmp.ne.s32.totalorder %s43, %s44
    %p58 = scmp.eq.s32.totalorder %s15, 1
    %p59 = por %p57, %p58
    %p61 = scmp.ne.s32.totalorder %s44, %s60
    %p62 = scmp.eq.s32.totalorder %s15, 0
    %p63 = por %p61, %p62
    %s64 = ssub.s32 %s16, %s35
    %s65 = ssub.s32 %s18, %s27
    %s66 = sor.u32 %s64, %s65
    %p67 = scmp.eq.s32.totalorder %s66, 0
    %s69 = sadd.s32 %s68, 1
    %s70 = scalar_select %p67, %s68, %s69
    %p73 = pneg %p67
    %p74 = scmp.eq.s32.totalorder %s9, 1
    %p75 = por %p73, %p74
    %p76 = scmp.ne.s32.totalorder %s68, %s71
    %p77 = scmp.eq.s32.totalorder %s9, 0
    %p78 = por %p76, %p77
    %p79 = scmp.ne.s32.totalorder %s68, %s71
    %p80 = scmp.eq.s32.totalorder %s14, 1
    %p81 = por %p79, %p80
    %p82 = scmp.ne.s32.totalorder %s71, %s72
    %p83 = scmp.eq.s32.totalorder %s14, 0
    %p84 = por %p82, %p83
    %p85 = scmp.ne.s32.totalorder %s71, %s72
    %p86 = scmp.eq.s32.totalorder %s15, 1
    %p87 = por %p85, %p86
    %p89 = scmp.ne.s32.totalorder %s72, %s88
    %p90 = scmp.eq.s32.totalorder %s15, 0
    %p91 = por %p89, %p90
    %s92 = ssub.s32 %s16, %s35
    %s93 = ssub.s32 %s18, %s27
    %s94 = sor.u32 %s92, %s93
    %p95 = scmp.eq.s32.totalorder %s94, 0
    %s97 = sadd.s32 %s96, 1
    %s98 = scalar_select %p95, %s96, %s97
    %p101 = pneg %p95
    %p102 = scmp.eq.s32.totalorder %s9, 1
    %p103 = por %p101, %p102
    %p104 = scmp.ne.s32.totalorder %s96, %s99
    %p105 = scmp.eq.s32.totalorder %s9, 0
    %p106 = por %p104, %p105
    %p107 = scmp.ne.s32.totalorder %s96, %s99
    %p108 = scmp.eq.s32.totalorder %s14, 1
    %p109 = por %p107, %p108
    %p110 = scmp.ne.s32.totalorder %s99, %s100
    %p111 = scmp.eq.s32.totalorder %s14, 0
    %p112 = por %p110, %p111
    %p113 = scmp.ne.s32.totalorder %s99, %s100
    %p114 = scmp.eq.s32.totalorder %s15, 1
    %p115 = por %p113, %p114
    %p117 = scmp.ne.s32.totalorder %s100, %s116
    %p118 = scmp.eq.s32.totalorder %s15, 0
    %p119 = por %p117, %p118
    %s120 = ssub.s32 %s16, %s35
    %s121 = ssub.s32 %s17, %s31
    %s122 = sor.u32 %s120, %s121
    %s123 = ssub.s32 %s18, %s27
    %s124 = sor.u32 %s122, %s123
    %p125 = scmp.eq.s32.totalorder %s124, 0
    %s127 = sadd.s32 %s126, 1
    %s128 = scalar_select %p125, %s126, %s127
    %p131 = pneg %p125
    %p132 = scmp.eq.s32.totalorder %s9, 1
    %p133 = por %p131, %p132
    %p134 = scmp.ne.s32.totalorder %s126, %s129
    %p135 = scmp.eq.s32.totalorder %s9, 0
    %p136 = por %p134, %p135
    %p137 = scmp.ne.s32.totalorder %s126, %s129
    %p138 = scmp.eq.s32.totalorder %s14, 1
    %p139 = por %p137, %p138
    %p140 = scmp.ne.s32.totalorder %s129, %s130
    %p141 = scmp.eq.s32.totalorder %s14, 0
    %p142 = por %p140, %p141
    %p143 = scmp.ne.s32.totalorder %s129, %s130
    %p144 = scmp.eq.s32.totalorder %s15, 1
    %p145 = por %p143, %p144
    %p147 = scmp.ne.s32.totalorder %s130, %s146
    %p148 = scmp.eq.s32.totalorder %s15, 0
    %p149 = por %p147, %p148
    %p150 = scmp.le.s32.totalorder 1, %s9
    %p151 = scmp.lt.s32.totalorder %s9, 3
    %p152 = pnand %p150, %p151
    %p153 = pneg %p152
    // Predicated region
    $region9: #{hsi_lidar_couple_cross.4} parent=5 // pred_check
      _
    $region10: #{hsi_lidar_couple_cross.4} parent=5 // pred_check_branch
      %155 = sbr.rel (%p152) target = $region12
    $region11: #{hsi_lidar_couple_cross.4} parent=5 // pred_region
      %s156 = ssub.s32 %s9, 1
    $region12: #{hsi_lidar_couple_cross.4} parent=5 // pred_fallthru
      _
    %p157 = scmp.lt.s32.totalorder %s9, 2
    // Predicated region
    $region13: #{hsi_lidar_couple_cross.4} parent=5 // pred_check
      %p158 = pneg %p157
    $region14: #{hsi_lidar_couple_cross.4} parent=5 // pred_check_branch
      %160 = sbr.rel (%p158) target = $region16
    $region15: #{hsi_lidar_couple_cross.4} parent=5 // pred_region
      // Predicated region
      $region17: #{hsi_lidar_couple_cross.4} parent=15 // pred_check
        %p161 = pneg %p50
      $region18: #{hsi_lidar_couple_cross.4} parent=15 // pred_check_branch
        %163 = sbr.rel (%p161) target = $region20
      $region19: #{hsi_lidar_couple_cross.4} parent=15 // pred_region
        %s164 = smul.u32 16, %s17
        %p165 = scmp.lt.s32.totalorder %s16, 1
        %s166 = scalar_select %p165, %s16, 1
        %p167 = scmp.lt.s32.totalorder %s164, 15
        %s168 = scalar_select %p167, %s164, 15
        %s169 = smul.addr %s168, 11
        %s170 = smul.addr %s166, 176
        %s171 = sadd.s32 %s169, %s170
        %s172 = smul.addr %s171, 4
        %s173 = scalar_lea.vmem %s0, %s172
        %s174 = smul.u32 16, %s17
      $region20: #{hsi_lidar_couple_cross.4} parent=15 // pred_fallthru
        _
      // Predicated region
      $region21: #{hsi_lidar_couple_cross.4} parent=15 // pred_check
        %p175 = pneg %p78
      $region22: #{hsi_lidar_couple_cross.4} parent=15 // pred_check_branch
        %177 = sbr.rel (%p175) target = $region24
      $region23: #{hsi_lidar_couple_cross.4} parent=15 // pred_region
        %p178 = scmp.lt.s32.totalorder %s16, 1
        %s179 = scalar_select %p178, %s16, 1
        %p180 = scmp.lt.s32.totalorder %s18, 0
        %s181 = scalar_select %p180, %s18, 0
        %s182 = smul.addr %s179, 162
        %s183 = sadd.s32 %s181, %s182
        %s184 = smul.addr %s183, 4
        %s185 = scalar_lea.vmem %s1, %s184
      $region24: #{hsi_lidar_couple_cross.4} parent=15 // pred_fallthru
        _
      // Predicated region
      $region25: #{hsi_lidar_couple_cross.4} parent=15 // pred_check
        %p186 = pneg %p106
      $region26: #{hsi_lidar_couple_cross.4} parent=15 // pred_check_branch
        %188 = sbr.rel (%p186) target = $region28
      $region27: #{hsi_lidar_couple_cross.4} parent=15 // pred_region
        %p189 = scmp.lt.s32.totalorder %s16, 1
        %s190 = scalar_select %p189, %s16, 1
        %p191 = scmp.lt.s32.totalorder %s18, 0
        %s192 = scalar_select %p191, %s18, 0
        %s193 = sadd.s32 %s192, %s190
        %s194 = scalar_lea.vmem %s2, %s193
      $region28: #{hsi_lidar_couple_cross.4} parent=15 // pred_fallthru
        _
    $region16: #{hsi_lidar_couple_cross.4} parent=5 // pred_fallthru
      _
    %p195 = scmp.le.s32.totalorder 1, %s9
    %p196 = scmp.lt.s32.totalorder %s9, 3
    %p197 = pnand %p195, %p196
    %p198 = pneg %p197
    // Predicated region
    $region29: #{hsi_lidar_couple_cross.4} parent=5 // pred_check
      _
    $region30: #{hsi_lidar_couple_cross.4} parent=5 // pred_check_branch
      %200 = sbr.rel (%p197) target = $region32
    $region31: #{hsi_lidar_couple_cross.4} parent=5 // pred_region
      %s201 = ssub.s32 %s9, 1
      %s202 = smul.u32 16, %s20
      %p203 = scmp.lt.s32.totalorder %s19, 1
      %s204 = scalar_select %p203, %s19, 1
      %p205 = scmp.lt.s32.totalorder %s202, 15
      %s206 = scalar_select %p205, %s202, 15
      %s207 = smul.addr %s206, 11
      %s208 = smul.addr %s204, 176
      %s209 = sadd.s32 %s207, %s208
      %s210 = smul.addr %s209, 4
      %s211 = scalar_lea.vmem %s0, %s210
      %p212 = pneg %p56
      %p213 = pneg %p53
      %p214 = scmp.lt.s32.totalorder %s19, 1
      %s215 = scalar_select %p214, %s19, 1
      %p216 = scmp.lt.s32.totalorder %s21, 0
      %s217 = scalar_select %p216, %s21, 0
      %s218 = smul.addr %s215, 162
      %s219 = sadd.s32 %s217, %s218
      %s220 = smul.addr %s219, 4
      %s221 = scalar_lea.vmem %s1, %s220
      %p222 = pneg %p84
      %p223 = pneg %p81
      %p224 = scmp.lt.s32.totalorder %s19, 1
      %s225 = scalar_select %p224, %s19, 1
      %p226 = scmp.lt.s32.totalorder %s21, 0
      %s227 = scalar_select %p226, %s21, 0
      %s228 = sadd.s32 %s227, %s225
      %s229 = scalar_lea.vmem %s2, %s228
      %p230 = pneg %p112
      %p231 = pneg %p109
      %p232 = pneg %p142
      %p233 = pneg %p139
      %s234 = smul.u32 16, %s20
      %p235 = scmp.lt.s32.totalorder %s19, 1
      %s236 = scalar_select %p235, %s19, 1
      %p237 = scmp.lt.s32.totalorder %s234, 15
      %s238 = scalar_select %p237, %s234, 15
      %p239 = scmp.lt.s32.totalorder %s21, 0
      %s240 = scalar_select %p239, %s21, 0
      %s241 = sadd.s32 %s240, %s238
      %s242 = smul.addr %s236, 16
      %s243 = sadd.s32 %s241, %s242
      %s244 = smul.addr %s243, 4
      %s245 = scalar_lea.vmem %s3, %s244
      %s246 = smul.u32 16, %s20
      %p247 = scmp.lt.s32.totalorder %s19, 1
      %s248 = scalar_select %p247, %s19, 1
      %p249 = scmp.lt.s32.totalorder %s246, 15
      %s250 = scalar_select %p249, %s246, 15
      %s251 = smul.addr %s250, 11
      %s252 = smul.addr %s248, 176
      %s253 = sadd.s32 %s251, %s252
      %s254 = smul.addr %s253, 4
      %s255 = scalar_lea.vmem %s0, %s254
      %s256 = smul.u32 16, %s20
      %p257 = scmp.lt.s32.totalorder %s19, 1
      %s258 = scalar_select %p257, %s19, 1
      %p259 = scmp.lt.s32.totalorder %s21, 0
      %s260 = scalar_select %p259, %s21, 0
      %s261 = smul.addr %s258, 162
      %s262 = sadd.s32 %s260, %s261
      %s263 = smul.addr %s262, 4
      %s264 = scalar_lea.vmem %s1, %s263
      %p265 = scmp.lt.s32.totalorder %s19, 1
      %s266 = scalar_select %p265, %s19, 1
      %p267 = scmp.lt.s32.totalorder %s21, 0
      %s268 = scalar_select %p267, %s21, 0
      %s269 = sadd.s32 %s268, %s266
      %s270 = scalar_lea.vmem %s2, %s269
      %s271 = smul.u32 16, %s20
      %p272 = scmp.lt.s32.totalorder %s19, 1
      %s273 = scalar_select %p272, %s19, 1
      %p274 = scmp.lt.s32.totalorder %s271, 15
      %s275 = scalar_select %p274, %s271, 15
      %p276 = scmp.lt.s32.totalorder %s21, 0
      %s277 = scalar_select %p276, %s21, 0
      %s278 = sadd.s32 %s277, %s275
      %s279 = smul.addr %s273, 16
      %s280 = sadd.s32 %s278, %s279
      %s281 = smul.addr %s280, 4
      %s282 = scalar_lea.vmem %s3, %s281
      %s283 = smul.u32 16, %s20
      %v285 = vld [vmem:[%s255] sm:$0xff]
      %v286 = vld [vmem:[%s255 + $0x8] sm:$0xff]
      %v287 = vld [vmem:[%s255 + $0x10] sm:$0xff]
      %v288 = vld [vmem:[%s255 + $0x18] sm:$0xff]
      %v289 = vld [vmem:[%s255 + $0x20] sm:$0xff]
      %v290 = vld [vmem:[%s255 + $0x28] sm:$0xf]
      %v291 = vld [vmem:[%s255 + $0x2c] sm:$0xff]
      %v292 = vld [vmem:[%s255 + $0x34] sm:$0xff]
      %v293 = vld [vmem:[%s255 + $0x3c] sm:$0xff]
      %v294 = vld [vmem:[%s255 + $0x44] sm:$0xff]
      %v295 = vld [vmem:[%s255 + $0x4c] sm:$0xff]
      %v296 = vld [vmem:[%s255 + $0x54] sm:$0xf]
      %v297 = vld [vmem:[%s255 + $0x58] sm:$0xff]
      %v298 = vld [vmem:[%s255 + $0x60] sm:$0xff]
      %v299 = vld [vmem:[%s255 + $0x68] sm:$0xff]
      %v300 = vld [vmem:[%s255 + $0x70] sm:$0xff]
      %v301 = vld [vmem:[%s255 + $0x78] sm:$0xff]
      %v302 = vld [vmem:[%s255 + $0x80] sm:$0xf]
      %v303 = vld [vmem:[%s255 + $0x84] sm:$0xff]
      %v304 = vld [vmem:[%s255 + $0x8c] sm:$0xff]
      %v305 = vld [vmem:[%s255 + $0x94] sm:$0xff]
      %v306 = vld [vmem:[%s255 + $0x9c] sm:$0xff]
      %v307 = vld [vmem:[%s255 + $0xa4] sm:$0xff]
      %v308 = vld [vmem:[%s255 + $0xac] sm:$0xf]
      %v309 = vld [vmem:[%s255 + $0xb0] sm:$0xff]
      %v310 = vld [vmem:[%s255 + $0xb8] sm:$0xff]
      %v311 = vld [vmem:[%s255 + $0xc0] sm:$0xff]
      %v312 = vld [vmem:[%s255 + $0xc8] sm:$0xff]
      %v313 = vld [vmem:[%s255 + $0xd0] sm:$0xff]
      %v314 = vld [vmem:[%s255 + $0xd8] sm:$0xf]
      %v315 = vld [vmem:[%s255 + $0xdc] sm:$0xff]
      %v316 = vld [vmem:[%s255 + $0xe4] sm:$0xff]
      %v317 = vld [vmem:[%s255 + $0xec] sm:$0xff]
      %v318 = vld [vmem:[%s255 + $0xf4] sm:$0xff]
      %v319 = vld [vmem:[%s255 + $0xfc] sm:$0xff]
      %v320 = vld [vmem:[%s255 + $0x104] sm:$0xf]
      %v321 = vld [vmem:[%s255 + $0x108] sm:$0xff]
      %v322 = vld [vmem:[%s255 + $0x110] sm:$0xff]
      %v323 = vld [vmem:[%s255 + $0x118] sm:$0xff]
      %v324 = vld [vmem:[%s255 + $0x120] sm:$0xff]
      %v325 = vld [vmem:[%s255 + $0x128] sm:$0xff]
      %v326 = vld [vmem:[%s255 + $0x130] sm:$0xf]
      %v327 = vld [vmem:[%s255 + $0x134] sm:$0xff]
      %v328 = vld [vmem:[%s255 + $0x13c] sm:$0xff]
      %v329 = vld [vmem:[%s255 + $0x144] sm:$0xff]
      %v330 = vld [vmem:[%s255 + $0x14c] sm:$0xff]
      %v331 = vld [vmem:[%s255 + $0x154] sm:$0xff]
      %v332 = vld [vmem:[%s255 + $0x15c] sm:$0xf]
      %v333 = vld [vmem:[%s255 + $0x160] sm:$0xff]
      %v334 = vld [vmem:[%s255 + $0x168] sm:$0xff]
      %v335 = vld [vmem:[%s255 + $0x170] sm:$0xff]
      %v336 = vld [vmem:[%s255 + $0x178] sm:$0xff]
      %v337 = vld [vmem:[%s255 + $0x180] sm:$0xff]
      %v338 = vld [vmem:[%s255 + $0x188] sm:$0xf]
      %v339 = vld [vmem:[%s255 + $0x18c] sm:$0xff]
      %v340 = vld [vmem:[%s255 + $0x194] sm:$0xff]
      %v341 = vld [vmem:[%s255 + $0x19c] sm:$0xff]
      %v342 = vld [vmem:[%s255 + $0x1a4] sm:$0xff]
      %v343 = vld [vmem:[%s255 + $0x1ac] sm:$0xff]
      %v344 = vld [vmem:[%s255 + $0x1b4] sm:$0xf]
      %v345 = vld [vmem:[%s255 + $0x1b8] sm:$0xff]
      %v346 = vld [vmem:[%s255 + $0x1c0] sm:$0xff]
      %v347 = vld [vmem:[%s255 + $0x1c8] sm:$0xff]
      %v348 = vld [vmem:[%s255 + $0x1d0] sm:$0xff]
      %v349 = vld [vmem:[%s255 + $0x1d8] sm:$0xff]
      %v350 = vld [vmem:[%s255 + $0x1e0] sm:$0xf]
      %v351 = vld [vmem:[%s255 + $0x1e4] sm:$0xff]
      %v352 = vld [vmem:[%s255 + $0x1ec] sm:$0xff]
      %v353 = vld [vmem:[%s255 + $0x1f4] sm:$0xff]
      %v354 = vld [vmem:[%s255 + $0x1fc] sm:$0xff]
      %v355 = vld [vmem:[%s255 + $0x204] sm:$0xff]
      %v356 = vld [vmem:[%s255 + $0x20c] sm:$0xf]
      %v357 = vld [vmem:[%s255 + $0x210] sm:$0xff]
      %v358 = vld [vmem:[%s255 + $0x218] sm:$0xff]
      %v359 = vld [vmem:[%s255 + $0x220] sm:$0xff]
      %v360 = vld [vmem:[%s255 + $0x228] sm:$0xff]
      %v361 = vld [vmem:[%s255 + $0x230] sm:$0xff]
      %v362 = vld [vmem:[%s255 + $0x238] sm:$0xf]
      %v363 = vld [vmem:[%s255 + $0x23c] sm:$0xff]
      %v364 = vld [vmem:[%s255 + $0x244] sm:$0xff]
      %v365 = vld [vmem:[%s255 + $0x24c] sm:$0xff]
      %v366 = vld [vmem:[%s255 + $0x254] sm:$0xff]
      %v367 = vld [vmem:[%s255 + $0x25c] sm:$0xff]
      %v368 = vld [vmem:[%s255 + $0x264] sm:$0xf]
      %v369 = vld [vmem:[%s255 + $0x268] sm:$0xff]
      %v370 = vld [vmem:[%s255 + $0x270] sm:$0xff]
      %v371 = vld [vmem:[%s255 + $0x278] sm:$0xff]
      %v372 = vld [vmem:[%s255 + $0x280] sm:$0xff]
      %v373 = vld [vmem:[%s255 + $0x288] sm:$0xff]
      %v374 = vld [vmem:[%s255 + $0x290] sm:$0xf]
      %v375 = vld [vmem:[%s255 + $0x294] sm:$0xff]
      %v376 = vld [vmem:[%s255 + $0x29c] sm:$0xff]
      %v377 = vld [vmem:[%s255 + $0x2a4] sm:$0xff]
      %v378 = vld [vmem:[%s255 + $0x2ac] sm:$0xff]
      %v379 = vld [vmem:[%s255 + $0x2b4] sm:$0xff]
      %v380 = vld [vmem:[%s255 + $0x2bc] sm:$0xf]
      %v381 = vld [vmem:[%s264] sm:$0xf]
      %v382 = vld [vmem:[%s264 + $0x4] sm:$0xf]
      %v383 = vld [vmem:[%s264 + $0x8] sm:$0xf]
      %v384 = vld [vmem:[%s264 + $0xc] sm:$0xf]
      %v385 = vld [vmem:[%s264 + $0x10] sm:$0xf]
      %v386 = vld [vmem:[%s264 + $0x14] sm:$0xf]
      %v387 = vld [vmem:[%s264 + $0x18] sm:$0xf]
      %v388 = vld [vmem:[%s264 + $0x1c] sm:$0xf]
      %v389 = vld [vmem:[%s264 + $0x20] sm:$0xf]
      %v390 = vld [vmem:[%s264 + $0x24] sm:$0xf]
      %v391 = vld [vmem:[%s264 + $0x28] sm:$0xf]
      %v392 = vld [vmem:[%s264 + $0x2c] sm:$0xf]
      %v393 = vld [vmem:[%s264 + $0x30] sm:$0xf]
      %v394 = vld [vmem:[%s264 + $0x34] sm:$0xf]
      %v395 = vld [vmem:[%s264 + $0x38] sm:$0xf]
      %v396 = vld [vmem:[%s264 + $0x3c] sm:$0xf]
      %v397 = vld [vmem:[%s264 + $0x40] sm:$0xf]
      %v398 = vld [vmem:[%s264 + $0x44] sm:$0xf]
      %v399 = vld [vmem:[%s264 + $0x48] sm:$0xf]
      %v400 = vld [vmem:[%s264 + $0x4c] sm:$0xf]
      %v401 = vld [vmem:[%s264 + $0x50] sm:$0xf]
      %v402 = vld [vmem:[%s264 + $0x54] sm:$0xf]
      %v403 = vld [vmem:[%s264 + $0x58] sm:$0xf]
      %v404 = vld [vmem:[%s264 + $0x5c] sm:$0xf]
      %v405 = vld [vmem:[%s264 + $0x60] sm:$0xf]
      %v406 = vld [vmem:[%s264 + $0x64] sm:$0xf]
      %v407 = vld [vmem:[%s264 + $0x68] sm:$0xf]
      %v408 = vld [vmem:[%s264 + $0x6c] sm:$0xf]
      %v409 = vld [vmem:[%s264 + $0x70] sm:$0xf]
      %v410 = vld [vmem:[%s264 + $0x74] sm:$0xf]
      %v411 = vld [vmem:[%s264 + $0x78] sm:$0xf]
      %v412 = vld [vmem:[%s264 + $0x7c] sm:$0xf]
      %v413 = vld [vmem:[%s264 + $0x80] sm:$0xf]
      %v414 = vld [vmem:[%s264 + $0x84] sm:$0xf]
      %v415 = vld [vmem:[%s264 + $0x88] sm:$0xf]
      %v416 = vld [vmem:[%s264 + $0x8c] sm:$0xf]
      %v417 = vld [vmem:[%s264 + $0x90] sm:$0xf]
      %v418 = vld [vmem:[%s264 + $0x94] sm:$0xf]
      %v419 = vld [vmem:[%s264 + $0x98] sm:$0xf]
      %v420 = vld [vmem:[%s264 + $0x9c] sm:$0xf]
      %v421 = vld [vmem:[%s264 + $0xa0] sm:$0xf]
      %v422 = vld [vmem:[%s264 + $0xa4] sm:$0xf]
      %v423 = vld [vmem:[%s264 + $0xa8] sm:$0xf]
      %v424 = vld [vmem:[%s264 + $0xac] sm:$0xf]
      %v425 = vld [vmem:[%s264 + $0xb0] sm:$0xf]
      %v426 = vld [vmem:[%s264 + $0xb4] sm:$0xf]
      %v427 = vld [vmem:[%s264 + $0xb8] sm:$0xf]
      %v428 = vld [vmem:[%s264 + $0xbc] sm:$0xf]
      %v429 = vld [vmem:[%s264 + $0xc0] sm:$0xf]
      %v430 = vld [vmem:[%s264 + $0xc4] sm:$0xf]
      %v431 = vld [vmem:[%s264 + $0xc8] sm:$0xf]
      %v432 = vld [vmem:[%s264 + $0xcc] sm:$0xf]
      %v433 = vld [vmem:[%s264 + $0xd0] sm:$0xf]
      %v434 = vld [vmem:[%s264 + $0xd4] sm:$0xf]
      %v435 = vld [vmem:[%s264 + $0xd8] sm:$0xf]
      %v436 = vld [vmem:[%s264 + $0xdc] sm:$0xf]
      %v437 = vld [vmem:[%s264 + $0xe0] sm:$0xf]
      %v438 = vld [vmem:[%s264 + $0xe4] sm:$0xf]
      %v439 = vld [vmem:[%s264 + $0xe8] sm:$0xf]
      %v440 = vld [vmem:[%s264 + $0xec] sm:$0xf]
      %v441 = vld [vmem:[%s264 + $0xf0] sm:$0xf]
      %v442 = vld [vmem:[%s264 + $0xf4] sm:$0xf]
      %v443 = vld [vmem:[%s264 + $0xf8] sm:$0xf]
      %v444 = vld [vmem:[%s264 + $0xfc] sm:$0xf]
      %v445 = vld [vmem:[%s264 + $0x100] sm:$0xf]
      %v446 = vld [vmem:[%s264 + $0x104] sm:$0xf]
      %v447 = vld [vmem:[%s264 + $0x108] sm:$0xf]
      %v448 = vld [vmem:[%s264 + $0x10c] sm:$0xf]
      %v449 = vld [vmem:[%s264 + $0x110] sm:$0xf]
      %v450 = vld [vmem:[%s264 + $0x114] sm:$0xf]
      %v451 = vld [vmem:[%s264 + $0x118] sm:$0xf]
      %v452 = vld [vmem:[%s264 + $0x11c] sm:$0xf]
      %v453 = vld [vmem:[%s264 + $0x120] sm:$0xf]
      %v454 = vld [vmem:[%s264 + $0x124] sm:$0xf]
      %v455 = vld [vmem:[%s264 + $0x128] sm:$0xf]
      %v456 = vld [vmem:[%s264 + $0x12c] sm:$0xf]
      %v457 = vld [vmem:[%s264 + $0x130] sm:$0xf]
      %v458 = vld [vmem:[%s264 + $0x134] sm:$0xf]
      %v459 = vld [vmem:[%s264 + $0x138] sm:$0xf]
      %v460 = vld [vmem:[%s264 + $0x13c] sm:$0xf]
      %v461 = vld [vmem:[%s264 + $0x140] sm:$0xf]
      %v462 = vld [vmem:[%s264 + $0x144] sm:$0xf]
      %v463 = vld [vmem:[%s264 + $0x148] sm:$0xf]
      %v464 = vld [vmem:[%s264 + $0x14c] sm:$0xf]
      %v465 = vld [vmem:[%s264 + $0x150] sm:$0xf]
      %v466 = vld [vmem:[%s264 + $0x154] sm:$0xf]
      %v467 = vld [vmem:[%s264 + $0x158] sm:$0xf]
      %v468 = vld [vmem:[%s264 + $0x15c] sm:$0xf]
      %v469 = vld [vmem:[%s264 + $0x160] sm:$0xf]
      %v470 = vld [vmem:[%s264 + $0x164] sm:$0xf]
      %v471 = vld [vmem:[%s264 + $0x168] sm:$0xf]
      %v472 = vld [vmem:[%s264 + $0x16c] sm:$0xf]
      %v473 = vld [vmem:[%s264 + $0x170] sm:$0xf]
      %v474 = vld [vmem:[%s264 + $0x174] sm:$0xf]
      %v475 = vld [vmem:[%s264 + $0x178] sm:$0xf]
      %v476 = vld [vmem:[%s264 + $0x17c] sm:$0xf]
      %v477 = vld [vmem:[%s264 + $0x180] sm:$0xf]
      %v478 = vld [vmem:[%s264 + $0x184] sm:$0xf]
      %v479 = vld [vmem:[%s264 + $0x188] sm:$0xf]
      %v480 = vld [vmem:[%s264 + $0x18c] sm:$0xf]
      %v481 = vld [vmem:[%s264 + $0x190] sm:$0xf]
      %v482 = vld [vmem:[%s264 + $0x194] sm:$0xf]
      %v483 = vld [vmem:[%s264 + $0x198] sm:$0xf]
      %v484 = vld [vmem:[%s264 + $0x19c] sm:$0xf]
      %v485 = vld [vmem:[%s264 + $0x1a0] sm:$0xf]
      %v486 = vld [vmem:[%s264 + $0x1a4] sm:$0xf]
      %v487 = vld [vmem:[%s264 + $0x1a8] sm:$0xf]
      %v488 = vld [vmem:[%s264 + $0x1ac] sm:$0xf]
      %v489 = vld [vmem:[%s264 + $0x1b0] sm:$0xf]
      %v490 = vld [vmem:[%s264 + $0x1b4] sm:$0xf]
      %v491 = vld [vmem:[%s264 + $0x1b8] sm:$0xf]
      %v492 = vld [vmem:[%s264 + $0x1bc] sm:$0xf]
      %v493 = vld [vmem:[%s264 + $0x1c0] sm:$0xf]
      %v494 = vld [vmem:[%s264 + $0x1c4] sm:$0xf]
      %v495 = vld [vmem:[%s264 + $0x1c8] sm:$0xf]
      %v496 = vld [vmem:[%s264 + $0x1cc] sm:$0xf]
      %v497 = vld [vmem:[%s264 + $0x1d0] sm:$0xf]
      %v498 = vld [vmem:[%s264 + $0x1d4] sm:$0xf]
      %v499 = vld [vmem:[%s264 + $0x1d8] sm:$0xf]
      %v500 = vld [vmem:[%s264 + $0x1dc] sm:$0xf]
      %v501 = vld [vmem:[%s264 + $0x1e0] sm:$0xf]
      %v502 = vld [vmem:[%s264 + $0x1e4] sm:$0xf]
      %v503 = vld [vmem:[%s264 + $0x1e8] sm:$0xf]
      %v504 = vld [vmem:[%s264 + $0x1ec] sm:$0xf]
      %v505 = vld [vmem:[%s264 + $0x1f0] sm:$0xf]
      %v506 = vld [vmem:[%s264 + $0x1f4] sm:$0xf]
      %v507 = vld [vmem:[%s264 + $0x1f8] sm:$0xf]
      %v508 = vld [vmem:[%s264 + $0x1fc] sm:$0xf]
      %v509 = vld [vmem:[%s264 + $0x200] sm:$0xf]
      %v510 = vld [vmem:[%s264 + $0x204] sm:$0xf]
      %v511 = vld [vmem:[%s264 + $0x208] sm:$0xf]
      %v512 = vld [vmem:[%s264 + $0x20c] sm:$0xf]
      %v513 = vld [vmem:[%s264 + $0x210] sm:$0xf]
      %v514 = vld [vmem:[%s264 + $0x214] sm:$0xf]
      %v515 = vld [vmem:[%s264 + $0x218] sm:$0xf]
      %v516 = vld [vmem:[%s264 + $0x21c] sm:$0xf]
      %v517 = vld [vmem:[%s264 + $0x220] sm:$0xf]
      %v518 = vld [vmem:[%s264 + $0x224] sm:$0xf]
      %v519 = vld [vmem:[%s264 + $0x228] sm:$0xf]
      %v520 = vld [vmem:[%s264 + $0x22c] sm:$0xf]
      %v521 = vld [vmem:[%s264 + $0x230] sm:$0xf]
      %v522 = vld [vmem:[%s264 + $0x234] sm:$0xf]
      %v523 = vld [vmem:[%s264 + $0x238] sm:$0xf]
      %v524 = vld [vmem:[%s264 + $0x23c] sm:$0xf]
      %v525 = vld [vmem:[%s264 + $0x240] sm:$0xf]
      %v526 = vld [vmem:[%s264 + $0x244] sm:$0xf]
      %v527 = vld [vmem:[%s264 + $0x248] sm:$0xf]
      %v528 = vld [vmem:[%s264 + $0x24c] sm:$0xf]
      %v529 = vld [vmem:[%s264 + $0x250] sm:$0xf]
      %v530 = vld [vmem:[%s264 + $0x254] sm:$0xf]
      %v531 = vld [vmem:[%s264 + $0x258] sm:$0xf]
      %v532 = vld [vmem:[%s264 + $0x25c] sm:$0xf]
      %v533 = vld [vmem:[%s264 + $0x260] sm:$0xf]
      %v534 = vld [vmem:[%s264 + $0x264] sm:$0xf]
      %v535 = vld [vmem:[%s264 + $0x268] sm:$0xf]
      %v536 = vld [vmem:[%s264 + $0x26c] sm:$0xf]
      %v537 = vld [vmem:[%s264 + $0x270] sm:$0xf]
      %v538 = vld [vmem:[%s264 + $0x274] sm:$0xf]
      %v539 = vld [vmem:[%s264 + $0x278] sm:$0xf]
      %v540 = vld [vmem:[%s264 + $0x27c] sm:$0xf]
      %v541 = vld [vmem:[%s264 + $0x280] sm:$0xf]
      %v542 = vld [vmem:[%s264 + $0x284] sm:$0xf]
      %v543 = vld [vmem:[%s270] sm:$0x1]
      %v545 = vperm.slane %v543, 0
      %v643 = vunpack.c.l.b16 %v285
      %v644 = vunpack.c.h.b16 %v285
      %v645 = vunpack.c.l.b16 %v286
      %v646 = vunpack.c.h.b16 %v286
      %v647 = vunpack.c.l.b16 %v287
      %v648 = vunpack.c.h.b16 %v287
      %v649 = vunpack.c.l.b16 %v288
      %v650 = vunpack.c.h.b16 %v288
      %v651 = vunpack.c.l.b16 %v289
      %v652 = vunpack.c.h.b16 %v289
      %v653 = vunpack.c.l.b16 %v290
      %v654 = vunpack.c.l.b16 %v291
      %v655 = vunpack.c.h.b16 %v291
      %v656 = vunpack.c.l.b16 %v292
      %v657 = vunpack.c.h.b16 %v292
      %v658 = vunpack.c.l.b16 %v293
      %v659 = vunpack.c.h.b16 %v293
      %v660 = vunpack.c.l.b16 %v294
      %v661 = vunpack.c.h.b16 %v294
      %v662 = vunpack.c.l.b16 %v295
      %v663 = vunpack.c.h.b16 %v295
      %v664 = vunpack.c.l.b16 %v296
      %v665 = vunpack.c.l.b16 %v297
      %v666 = vunpack.c.h.b16 %v297
      %v667 = vunpack.c.l.b16 %v298
      %v668 = vunpack.c.h.b16 %v298
      %v669 = vunpack.c.l.b16 %v299
      %v670 = vunpack.c.h.b16 %v299
      %v671 = vunpack.c.l.b16 %v300
      %v672 = vunpack.c.h.b16 %v300
      %v673 = vunpack.c.l.b16 %v301
      %v674 = vunpack.c.h.b16 %v301
      %v675 = vunpack.c.l.b16 %v302
      %v676 = vunpack.c.l.b16 %v303
      %v677 = vunpack.c.h.b16 %v303
      %v678 = vunpack.c.l.b16 %v304
      %v679 = vunpack.c.h.b16 %v304
      %v680 = vunpack.c.l.b16 %v305
      %v681 = vunpack.c.h.b16 %v305
      %v682 = vunpack.c.l.b16 %v306
      %v683 = vunpack.c.h.b16 %v306
      %v684 = vunpack.c.l.b16 %v307
      %v685 = vunpack.c.h.b16 %v307
      %v686 = vunpack.c.l.b16 %v308
      %v687 = vunpack.c.l.b16 %v309
      %v688 = vunpack.c.h.b16 %v309
      %v689 = vunpack.c.l.b16 %v310
      %v690 = vunpack.c.h.b16 %v310
      %v691 = vunpack.c.l.b16 %v311
      %v692 = vunpack.c.h.b16 %v311
      %v693 = vunpack.c.l.b16 %v312
      %v694 = vunpack.c.h.b16 %v312
      %v695 = vunpack.c.l.b16 %v313
      %v696 = vunpack.c.h.b16 %v313
      %v697 = vunpack.c.l.b16 %v314
      %v698 = vunpack.c.l.b16 %v315
      %v699 = vunpack.c.h.b16 %v315
      %v700 = vunpack.c.l.b16 %v316
      %v701 = vunpack.c.h.b16 %v316
      %v702 = vunpack.c.l.b16 %v317
      %v703 = vunpack.c.h.b16 %v317
      %v704 = vunpack.c.l.b16 %v318
      %v705 = vunpack.c.h.b16 %v318
      %v706 = vunpack.c.l.b16 %v319
      %v707 = vunpack.c.h.b16 %v319
      %v708 = vunpack.c.l.b16 %v320
      %v709 = vunpack.c.l.b16 %v321
      %v710 = vunpack.c.h.b16 %v321
      %v711 = vunpack.c.l.b16 %v322
      %v712 = vunpack.c.h.b16 %v322
      %v713 = vunpack.c.l.b16 %v323
      %v714 = vunpack.c.h.b16 %v323
      %v715 = vunpack.c.l.b16 %v324
      %v716 = vunpack.c.h.b16 %v324
      %v717 = vunpack.c.l.b16 %v325
      %v718 = vunpack.c.h.b16 %v325
      %v719 = vunpack.c.l.b16 %v326
      %v720 = vunpack.c.l.b16 %v327
      %v721 = vunpack.c.h.b16 %v327
      %v722 = vunpack.c.l.b16 %v328
      %v723 = vunpack.c.h.b16 %v328
      %v724 = vunpack.c.l.b16 %v329
      %v725 = vunpack.c.h.b16 %v329
      %v726 = vunpack.c.l.b16 %v330
      %v727 = vunpack.c.h.b16 %v330
      %v728 = vunpack.c.l.b16 %v331
      %v729 = vunpack.c.h.b16 %v331
      %v730 = vunpack.c.l.b16 %v332
      %v731 = vunpack.c.l.b16 %v333
      %v732 = vunpack.c.h.b16 %v333
      %v733 = vunpack.c.l.b16 %v334
      %v734 = vunpack.c.h.b16 %v334
      %v735 = vunpack.c.l.b16 %v335
      %v736 = vunpack.c.h.b16 %v335
      %v737 = vunpack.c.l.b16 %v336
      %v738 = vunpack.c.h.b16 %v336
      %v739 = vunpack.c.l.b16 %v337
      %v740 = vunpack.c.h.b16 %v337
      %v741 = vunpack.c.l.b16 %v338
      %v742 = vunpack.c.l.b16 %v339
      %v743 = vunpack.c.h.b16 %v339
      %v744 = vunpack.c.l.b16 %v340
      %v745 = vunpack.c.h.b16 %v340
      %v746 = vunpack.c.l.b16 %v341
      %v747 = vunpack.c.h.b16 %v341
      %v748 = vunpack.c.l.b16 %v342
      %v749 = vunpack.c.h.b16 %v342
      %v750 = vunpack.c.l.b16 %v343
      %v751 = vunpack.c.h.b16 %v343
      %v752 = vunpack.c.l.b16 %v344
      %v753 = vunpack.c.l.b16 %v345
      %v754 = vunpack.c.h.b16 %v345
      %v755 = vunpack.c.l.b16 %v346
      %v756 = vunpack.c.h.b16 %v346
      %v757 = vunpack.c.l.b16 %v347
      %v758 = vunpack.c.h.b16 %v347
      %v759 = vunpack.c.l.b16 %v348
      %v760 = vunpack.c.h.b16 %v348
      %v761 = vunpack.c.l.b16 %v349
      %v762 = vunpack.c.h.b16 %v349
      %v763 = vunpack.c.l.b16 %v350
      %v764 = vunpack.c.l.b16 %v351
      %v765 = vunpack.c.h.b16 %v351
      %v766 = vunpack.c.l.b16 %v352
      %v767 = vunpack.c.h.b16 %v352
      %v768 = vunpack.c.l.b16 %v353
      %v769 = vunpack.c.h.b16 %v353
      %v770 = vunpack.c.l.b16 %v354
      %v771 = vunpack.c.h.b16 %v354
      %v772 = vunpack.c.l.b16 %v355
      %v773 = vunpack.c.h.b16 %v355
      %v774 = vunpack.c.l.b16 %v356
      %v775 = vunpack.c.l.b16 %v357
      %v776 = vunpack.c.h.b16 %v357
      %v777 = vunpack.c.l.b16 %v358
      %v778 = vunpack.c.h.b16 %v358
      %v779 = vunpack.c.l.b16 %v359
      %v780 = vunpack.c.h.b16 %v359
      %v781 = vunpack.c.l.b16 %v360
      %v782 = vunpack.c.h.b16 %v360
      %v783 = vunpack.c.l.b16 %v361
      %v784 = vunpack.c.h.b16 %v361
      %v785 = vunpack.c.l.b16 %v362
      %v786 = vunpack.c.l.b16 %v363
      %v787 = vunpack.c.h.b16 %v363
      %v788 = vunpack.c.l.b16 %v364
      %v789 = vunpack.c.h.b16 %v364
      %v790 = vunpack.c.l.b16 %v365
      %v791 = vunpack.c.h.b16 %v365
      %v792 = vunpack.c.l.b16 %v366
      %v793 = vunpack.c.h.b16 %v366
      %v794 = vunpack.c.l.b16 %v367
      %v795 = vunpack.c.h.b16 %v367
      %v796 = vunpack.c.l.b16 %v368
      %v797 = vunpack.c.l.b16 %v369
      %v798 = vunpack.c.h.b16 %v369
      %v799 = vunpack.c.l.b16 %v370
      %v800 = vunpack.c.h.b16 %v370
      %v801 = vunpack.c.l.b16 %v371
      %v802 = vunpack.c.h.b16 %v371
      %v803 = vunpack.c.l.b16 %v372
      %v804 = vunpack.c.h.b16 %v372
      %v805 = vunpack.c.l.b16 %v373
      %v806 = vunpack.c.h.b16 %v373
      %v807 = vunpack.c.l.b16 %v374
      %v808 = vunpack.c.l.b16 %v375
      %v809 = vunpack.c.h.b16 %v375
      %v810 = vunpack.c.l.b16 %v376
      %v811 = vunpack.c.h.b16 %v376
      %v812 = vunpack.c.l.b16 %v377
      %v813 = vunpack.c.h.b16 %v377
      %v814 = vunpack.c.l.b16 %v378
      %v815 = vunpack.c.h.b16 %v378
      %v816 = vunpack.c.l.b16 %v379
      %v817 = vunpack.c.h.b16 %v379
      %v818 = vunpack.c.l.b16 %v380
      %v819 = vpack.c.b16 %v654, %v643
      %v820 = vpack.c.b16 %v655, %v644
      %v821 = vpack.c.b16 %v656, %v645
      %v822 = vpack.c.b16 %v657, %v646
      %v823 = vpack.c.b16 %v658, %v647
      %v824 = vpack.c.b16 %v659, %v648
      %v825 = vpack.c.b16 %v660, %v649
      %v826 = vpack.c.b16 %v661, %v650
      %v827 = vpack.c.b16 %v662, %v651
      %v828 = vpack.c.b16 %v663, %v652
      %v829 = vpack.c.b16 %v664, %v653
      %v830 = vpack.c.b16 %v676, %v665
      %v831 = vpack.c.b16 %v677, %v666
      %v832 = vpack.c.b16 %v678, %v667
      %v833 = vpack.c.b16 %v679, %v668
      %v834 = vpack.c.b16 %v680, %v669
      %v835 = vpack.c.b16 %v681, %v670
      %v836 = vpack.c.b16 %v682, %v671
      %v837 = vpack.c.b16 %v683, %v672
      %v838 = vpack.c.b16 %v684, %v673
      %v839 = vpack.c.b16 %v685, %v674
      %v840 = vpack.c.b16 %v686, %v675
      %v841 = vpack.c.b16 %v698, %v687
      %v842 = vpack.c.b16 %v699, %v688
      %v843 = vpack.c.b16 %v700, %v689
      %v844 = vpack.c.b16 %v701, %v690
      %v845 = vpack.c.b16 %v702, %v691
      %v846 = vpack.c.b16 %v703, %v692
      %v847 = vpack.c.b16 %v704, %v693
      %v848 = vpack.c.b16 %v705, %v694
      %v849 = vpack.c.b16 %v706, %v695
      %v850 = vpack.c.b16 %v707, %v696
      %v851 = vpack.c.b16 %v708, %v697
      %v852 = vpack.c.b16 %v720, %v709
      %v853 = vpack.c.b16 %v721, %v710
      %v854 = vpack.c.b16 %v722, %v711
      %v855 = vpack.c.b16 %v723, %v712
      %v856 = vpack.c.b16 %v724, %v713
      %v857 = vpack.c.b16 %v725, %v714
      %v858 = vpack.c.b16 %v726, %v715
      %v859 = vpack.c.b16 %v727, %v716
      %v860 = vpack.c.b16 %v728, %v717
      %v861 = vpack.c.b16 %v729, %v718
      %v862 = vpack.c.b16 %v730, %v719
      %v863 = vpack.c.b16 %v742, %v731
      %v864 = vpack.c.b16 %v743, %v732
      %v865 = vpack.c.b16 %v744, %v733
      %v866 = vpack.c.b16 %v745, %v734
      %v867 = vpack.c.b16 %v746, %v735
      %v868 = vpack.c.b16 %v747, %v736
      %v869 = vpack.c.b16 %v748, %v737
      %v870 = vpack.c.b16 %v749, %v738
      %v871 = vpack.c.b16 %v750, %v739
      %v872 = vpack.c.b16 %v751, %v740
      %v873 = vpack.c.b16 %v752, %v741
      %v874 = vpack.c.b16 %v764, %v753
      %v875 = vpack.c.b16 %v765, %v754
      %v876 = vpack.c.b16 %v766, %v755
      %v877 = vpack.c.b16 %v767, %v756
      %v878 = vpack.c.b16 %v768, %v757
      %v879 = vpack.c.b16 %v769, %v758
      %v880 = vpack.c.b16 %v770, %v759
      %v881 = vpack.c.b16 %v771, %v760
      %v882 = vpack.c.b16 %v772, %v761
      %v883 = vpack.c.b16 %v773, %v762
      %v884 = vpack.c.b16 %v774, %v763
      %v885 = vpack.c.b16 %v786, %v775
      %v886 = vpack.c.b16 %v787, %v776
      %v887 = vpack.c.b16 %v788, %v777
      %v888 = vpack.c.b16 %v789, %v778
      %v889 = vpack.c.b16 %v790, %v779
      %v890 = vpack.c.b16 %v791, %v780
      %v891 = vpack.c.b16 %v792, %v781
      %v892 = vpack.c.b16 %v793, %v782
      %v893 = vpack.c.b16 %v794, %v783
      %v894 = vpack.c.b16 %v795, %v784
      %v895 = vpack.c.b16 %v796, %v785
      %v896 = vpack.c.b16 %v808, %v797
      %v897 = vpack.c.b16 %v809, %v798
      %v898 = vpack.c.b16 %v810, %v799
      %v899 = vpack.c.b16 %v811, %v800
      %v900 = vpack.c.b16 %v812, %v801
      %v901 = vpack.c.b16 %v813, %v802
      %v902 = vpack.c.b16 %v814, %v803
      %v903 = vpack.c.b16 %v815, %v804
      %v904 = vpack.c.b16 %v816, %v805
      %v905 = vpack.c.b16 %v817, %v806
      %v906 = vpack.c.b16 %v818, %v807
      %v1149 = vunpack.c.l.b16 %v381
      %v1150 = vunpack.c.l.b16 %v382
      %v1151 = vunpack.c.l.b16 %v383
      %v1152 = vunpack.c.l.b16 %v384
      %v1153 = vunpack.c.l.b16 %v385
      %v1154 = vunpack.c.l.b16 %v386
      %v1155 = vunpack.c.l.b16 %v387
      %v1156 = vunpack.c.l.b16 %v388
      %v1157 = vunpack.c.l.b16 %v389
      %v1158 = vunpack.c.l.b16 %v390
      %v1159 = vunpack.c.l.b16 %v391
      %v1160 = vunpack.c.l.b16 %v392
      %v1161 = vunpack.c.l.b16 %v393
      %v1162 = vunpack.c.l.b16 %v394
      %v1163 = vunpack.c.l.b16 %v395
      %v1164 = vunpack.c.l.b16 %v396
      %v1165 = vunpack.c.l.b16 %v397
      %v1166 = vunpack.c.l.b16 %v398
      %v1167 = vunpack.c.l.b16 %v399
      %v1168 = vunpack.c.l.b16 %v400
      %v1169 = vunpack.c.l.b16 %v401
      %v1170 = vunpack.c.l.b16 %v402
      %v1171 = vunpack.c.l.b16 %v403
      %v1172 = vunpack.c.l.b16 %v404
      %v1173 = vunpack.c.l.b16 %v405
      %v1174 = vunpack.c.l.b16 %v406
      %v1175 = vunpack.c.l.b16 %v407
      %v1176 = vunpack.c.l.b16 %v408
      %v1177 = vunpack.c.l.b16 %v409
      %v1178 = vunpack.c.l.b16 %v410
      %v1179 = vunpack.c.l.b16 %v411
      %v1180 = vunpack.c.l.b16 %v412
      %v1181 = vunpack.c.l.b16 %v413
      %v1182 = vunpack.c.l.b16 %v414
      %v1183 = vunpack.c.l.b16 %v415
      %v1184 = vunpack.c.l.b16 %v416
      %v1185 = vunpack.c.l.b16 %v417
      %v1186 = vunpack.c.l.b16 %v418
      %v1187 = vunpack.c.l.b16 %v419
      %v1188 = vunpack.c.l.b16 %v420
      %v1189 = vunpack.c.l.b16 %v421
      %v1190 = vunpack.c.l.b16 %v422
      %v1191 = vunpack.c.l.b16 %v423
      %v1192 = vunpack.c.l.b16 %v424
      %v1193 = vunpack.c.l.b16 %v425
      %v1194 = vunpack.c.l.b16 %v426
      %v1195 = vunpack.c.l.b16 %v427
      %v1196 = vunpack.c.l.b16 %v428
      %v1197 = vunpack.c.l.b16 %v429
      %v1198 = vunpack.c.l.b16 %v430
      %v1199 = vunpack.c.l.b16 %v431
      %v1200 = vunpack.c.l.b16 %v432
      %v1201 = vunpack.c.l.b16 %v433
      %v1202 = vunpack.c.l.b16 %v434
      %v1203 = vunpack.c.l.b16 %v435
      %v1204 = vunpack.c.l.b16 %v436
      %v1205 = vunpack.c.l.b16 %v437
      %v1206 = vunpack.c.l.b16 %v438
      %v1207 = vunpack.c.l.b16 %v439
      %v1208 = vunpack.c.l.b16 %v440
      %v1209 = vunpack.c.l.b16 %v441
      %v1210 = vunpack.c.l.b16 %v442
      %v1211 = vunpack.c.l.b16 %v443
      %v1212 = vunpack.c.l.b16 %v444
      %v1213 = vunpack.c.l.b16 %v445
      %v1214 = vunpack.c.l.b16 %v446
      %v1215 = vunpack.c.l.b16 %v447
      %v1216 = vunpack.c.l.b16 %v448
      %v1217 = vunpack.c.l.b16 %v449
      %v1218 = vunpack.c.l.b16 %v450
      %v1219 = vunpack.c.l.b16 %v451
      %v1220 = vunpack.c.l.b16 %v452
      %v1221 = vunpack.c.l.b16 %v453
      %v1222 = vunpack.c.l.b16 %v454
      %v1223 = vunpack.c.l.b16 %v455
      %v1224 = vunpack.c.l.b16 %v456
      %v1225 = vunpack.c.l.b16 %v457
      %v1226 = vunpack.c.l.b16 %v458
      %v1227 = vunpack.c.l.b16 %v459
      %v1228 = vunpack.c.l.b16 %v460
      %v1229 = vunpack.c.l.b16 %v461
      %v1230 = vunpack.c.l.b16 %v462
      %v1231 = vunpack.c.l.b16 %v463
      %v1232 = vunpack.c.l.b16 %v464
      %v1233 = vunpack.c.l.b16 %v465
      %v1234 = vunpack.c.l.b16 %v466
      %v1235 = vunpack.c.l.b16 %v467
      %v1236 = vunpack.c.l.b16 %v468
      %v1237 = vunpack.c.l.b16 %v469
      %v1238 = vunpack.c.l.b16 %v470
      %v1239 = vunpack.c.l.b16 %v471
      %v1240 = vunpack.c.l.b16 %v472
      %v1241 = vunpack.c.l.b16 %v473
      %v1242 = vunpack.c.l.b16 %v474
      %v1243 = vunpack.c.l.b16 %v475
      %v1244 = vunpack.c.l.b16 %v476
      %v1245 = vunpack.c.l.b16 %v477
      %v1246 = vunpack.c.l.b16 %v478
      %v1247 = vunpack.c.l.b16 %v479
      %v1248 = vunpack.c.l.b16 %v480
      %v1249 = vunpack.c.l.b16 %v481
      %v1250 = vunpack.c.l.b16 %v482
      %v1251 = vunpack.c.l.b16 %v483
      %v1252 = vunpack.c.l.b16 %v484
      %v1253 = vunpack.c.l.b16 %v485
      %v1254 = vunpack.c.l.b16 %v486
      %v1255 = vunpack.c.l.b16 %v487
      %v1256 = vunpack.c.l.b16 %v488
      %v1257 = vunpack.c.l.b16 %v489
      %v1258 = vunpack.c.l.b16 %v490
      %v1259 = vunpack.c.l.b16 %v491
      %v1260 = vunpack.c.l.b16 %v492
      %v1261 = vunpack.c.l.b16 %v493
      %v1262 = vunpack.c.l.b16 %v494
      %v1263 = vunpack.c.l.b16 %v495
      %v1264 = vunpack.c.l.b16 %v496
      %v1265 = vunpack.c.l.b16 %v497
      %v1266 = vunpack.c.l.b16 %v498
      %v1267 = vunpack.c.l.b16 %v499
      %v1268 = vunpack.c.l.b16 %v500
      %v1269 = vunpack.c.l.b16 %v501
      %v1270 = vunpack.c.l.b16 %v502
      %v1271 = vunpack.c.l.b16 %v503
      %v1272 = vunpack.c.l.b16 %v504
      %v1273 = vunpack.c.l.b16 %v505
      %v1274 = vunpack.c.l.b16 %v506
      %v1275 = vunpack.c.l.b16 %v507
      %v1276 = vunpack.c.l.b16 %v508
      %v1277 = vunpack.c.l.b16 %v509
      %v1278 = vunpack.c.l.b16 %v510
      %v1279 = vunpack.c.l.b16 %v511
      %v1280 = vunpack.c.l.b16 %v512
      %v1281 = vunpack.c.l.b16 %v513
      %v1282 = vunpack.c.l.b16 %v514
      %v1283 = vunpack.c.l.b16 %v515
      %v1284 = vunpack.c.l.b16 %v516
      %v1285 = vunpack.c.l.b16 %v517
      %v1286 = vunpack.c.l.b16 %v518
      %v1287 = vunpack.c.l.b16 %v519
      %v1288 = vunpack.c.l.b16 %v520
      %v1289 = vunpack.c.l.b16 %v521
      %v1290 = vunpack.c.l.b16 %v522
      %v1291 = vunpack.c.l.b16 %v523
      %v1292 = vunpack.c.l.b16 %v524
      %v1293 = vunpack.c.l.b16 %v525
      %v1294 = vunpack.c.l.b16 %v526
      %v1295 = vunpack.c.l.b16 %v527
      %v1296 = vunpack.c.l.b16 %v528
      %v1297 = vunpack.c.l.b16 %v529
      %v1298 = vunpack.c.l.b16 %v530
      %v1299 = vunpack.c.l.b16 %v531
      %v1300 = vunpack.c.l.b16 %v532
      %v1301 = vunpack.c.l.b16 %v533
      %v1302 = vunpack.c.l.b16 %v534
      %v1303 = vunpack.c.l.b16 %v535
      %v1304 = vunpack.c.l.b16 %v536
      %v1305 = vunpack.c.l.b16 %v537
      %v1306 = vunpack.c.l.b16 %v538
      %v1307 = vunpack.c.l.b16 %v539
      %v1308 = vunpack.c.l.b16 %v540
      %v1309 = vunpack.c.l.b16 %v541
      %v1310 = vunpack.c.l.b16 %v542
      %v1311 = vpack.c.b16 %v1150, %v1149
      %v1312 = vpack.c.b16 %v1152, %v1151
      %v1313 = vpack.c.b16 %v1154, %v1153
      %v1314 = vpack.c.b16 %v1156, %v1155
      %v1315 = vpack.c.b16 %v1158, %v1157
      %v1316 = vpack.c.b16 %v1160, %v1159
      %v1317 = vpack.c.b16 %v1162, %v1161
      %v1318 = vpack.c.b16 %v1164, %v1163
      %v1319 = vpack.c.b16 %v1166, %v1165
      %v1320 = vpack.c.b16 %v1168, %v1167
      %v1321 = vpack.c.b16 %v1170, %v1169
      %v1322 = vpack.c.b16 %v1172, %v1171
      %v1323 = vpack.c.b16 %v1174, %v1173
      %v1324 = vpack.c.b16 %v1176, %v1175
      %v1325 = vpack.c.b16 %v1178, %v1177
      %v1326 = vpack.c.b16 %v1180, %v1179
      %v1327 = vpack.c.b16 %v1182, %v1181
      %v1328 = vpack.c.b16 %v1184, %v1183
      %v1329 = vpack.c.b16 %v1186, %v1185
      %v1330 = vpack.c.b16 %v1188, %v1187
      %v1331 = vpack.c.b16 %v1190, %v1189
      %v1332 = vpack.c.b16 %v1192, %v1191
      %v1333 = vpack.c.b16 %v1194, %v1193
      %v1334 = vpack.c.b16 %v1196, %v1195
      %v1335 = vpack.c.b16 %v1198, %v1197
      %v1336 = vpack.c.b16 %v1200, %v1199
      %v1337 = vpack.c.b16 %v1202, %v1201
      %v1338 = vpack.c.b16 %v1204, %v1203
      %v1339 = vpack.c.b16 %v1206, %v1205
      %v1340 = vpack.c.b16 %v1208, %v1207
      %v1341 = vpack.c.b16 %v1210, %v1209
      %v1342 = vpack.c.b16 %v1212, %v1211
      %v1343 = vpack.c.b16 %v1214, %v1213
      %v1344 = vpack.c.b16 %v1216, %v1215
      %v1345 = vpack.c.b16 %v1218, %v1217
      %v1346 = vpack.c.b16 %v1220, %v1219
      %v1347 = vpack.c.b16 %v1222, %v1221
      %v1348 = vpack.c.b16 %v1224, %v1223
      %v1349 = vpack.c.b16 %v1226, %v1225
      %v1350 = vpack.c.b16 %v1228, %v1227
      %v1351 = vpack.c.b16 %v1230, %v1229
      %v1352 = vpack.c.b16 %v1232, %v1231
      %v1353 = vpack.c.b16 %v1234, %v1233
      %v1354 = vpack.c.b16 %v1236, %v1235
      %v1355 = vpack.c.b16 %v1238, %v1237
      %v1356 = vpack.c.b16 %v1240, %v1239
      %v1357 = vpack.c.b16 %v1242, %v1241
      %v1358 = vpack.c.b16 %v1244, %v1243
      %v1359 = vpack.c.b16 %v1246, %v1245
      %v1360 = vpack.c.b16 %v1248, %v1247
      %v1361 = vpack.c.b16 %v1250, %v1249
      %v1362 = vpack.c.b16 %v1252, %v1251
      %v1363 = vpack.c.b16 %v1254, %v1253
      %v1364 = vpack.c.b16 %v1256, %v1255
      %v1365 = vpack.c.b16 %v1258, %v1257
      %v1366 = vpack.c.b16 %v1260, %v1259
      %v1367 = vpack.c.b16 %v1262, %v1261
      %v1368 = vpack.c.b16 %v1264, %v1263
      %v1369 = vpack.c.b16 %v1266, %v1265
      %v1370 = vpack.c.b16 %v1268, %v1267
      %v1371 = vpack.c.b16 %v1270, %v1269
      %v1372 = vpack.c.b16 %v1272, %v1271
      %v1373 = vpack.c.b16 %v1274, %v1273
      %v1374 = vpack.c.b16 %v1276, %v1275
      %v1375 = vpack.c.b16 %v1278, %v1277
      %v1376 = vpack.c.b16 %v1280, %v1279
      %v1377 = vpack.c.b16 %v1282, %v1281
      %v1378 = vpack.c.b16 %v1284, %v1283
      %v1379 = vpack.c.b16 %v1286, %v1285
      %v1380 = vpack.c.b16 %v1288, %v1287
      %v1381 = vpack.c.b16 %v1290, %v1289
      %v1382 = vpack.c.b16 %v1292, %v1291
      %v1383 = vpack.c.b16 %v1294, %v1293
      %v1384 = vpack.c.b16 %v1296, %v1295
      %v1385 = vpack.c.b16 %v1298, %v1297
      %v1386 = vpack.c.b16 %v1300, %v1299
      %v1387 = vpack.c.b16 %v1302, %v1301
      %v1388 = vpack.c.b16 %v1304, %v1303
      %v1389 = vpack.c.b16 %v1306, %v1305
      %v1390 = vpack.c.b16 %v1308, %v1307
      %v1391 = vpack.c.b16 %v1310, %v1309
      %vm1473 = vcmask 130048
      %v1475 = vsel %vm1473, %v829, 0
      %v1478 = vsel %vm1473, %v840, 0
      %v1481 = vsel %vm1473, %v851, 0
      %v1484 = vsel %vm1473, %v862, 0
      %v1487 = vsel %vm1473, %v873, 0
      %v1490 = vsel %vm1473, %v884, 0
      %v1493 = vsel %vm1473, %v895, 0
      %v1496 = vsel %vm1473, %v906, 0
      %1498 = vmatpush.bf16.msra.mxu0 %v1318
      %1499 = vmatpush.bf16.msra.mxu0 %v1317
      %1500 = vmatpush.bf16.msra.mxu0 %v1316
      %1501 = vmatpush.bf16.msra.mxu0 %v1315
      %1502 = vmatpush.bf16.msra.mxu0 %v1314
      %1503 = vmatpush.bf16.msra.mxu0 %v1313
      %1504 = vmatpush.bf16.msra.mxu0 %v1312
      %1505 = vmatpush.bf16.msra.mxu0 %v1311
      %1506 = vmatmul.bf16.gmra.mxu0 %v819
      %v1507 = vpop.f32.mrf.mxu0
      %v1508 = vadd.f32 %v545, %v1507
      %v1509 = vpop.f32.mrf.mxu0
      %v1510 = vadd.f32 %v545, %v1509
      %1511 = vmatmul.bf16.gmra.mxu0 %v830
      %v1512 = vpop.f32.mrf.mxu0
      %v1513 = vadd.f32 %v545, %v1512
      %v1514 = vpop.f32.mrf.mxu0
      %v1515 = vadd.f32 %v545, %v1514
      %1516 = vmatmul.bf16.gmra.mxu0 %v841
      %v1517 = vpop.f32.mrf.mxu0
      %v1518 = vadd.f32 %v545, %v1517
      %v1519 = vpop.f32.mrf.mxu0
      %v1520 = vadd.f32 %v545, %v1519
      %1521 = vmatmul.bf16.gmra.mxu0 %v852
      %v1522 = vpop.f32.mrf.mxu0
      %v1523 = vadd.f32 %v545, %v1522
      %v1524 = vpop.f32.mrf.mxu0
      %v1525 = vadd.f32 %v545, %v1524
      %1526 = vmatmul.bf16.gmra.mxu0 %v863
      %v1527 = vpop.f32.mrf.mxu0
      %v1528 = vadd.f32 %v545, %v1527
      %v1529 = vpop.f32.mrf.mxu0
      %v1530 = vadd.f32 %v545, %v1529
      %1531 = vmatmul.bf16.gmra.mxu0 %v874
      %v1532 = vpop.f32.mrf.mxu0
      %v1533 = vadd.f32 %v545, %v1532
      %v1534 = vpop.f32.mrf.mxu0
      %v1535 = vadd.f32 %v545, %v1534
      %1536 = vmatmul.bf16.gmra.mxu0 %v885
      %v1537 = vpop.f32.mrf.mxu0
      %v1538 = vadd.f32 %v545, %v1537
      %v1539 = vpop.f32.mrf.mxu0
      %v1540 = vadd.f32 %v545, %v1539
      %1541 = vmatmul.bf16.gmra.mxu0 %v896
      %v1542 = vpop.f32.mrf.mxu0
      %v1543 = vadd.f32 %v545, %v1542
      %v1544 = vpop.f32.mrf.mxu0
      %v1545 = vadd.f32 %v545, %v1544
      %1546 = vdwg.mxu0
      %1547 = vmatpush.bf16.msra.mxu0 %v1326
      %1548 = vmatpush.bf16.msra.mxu0 %v1325
      %1549 = vmatpush.bf16.msra.mxu0 %v1324
      %1550 = vmatpush.bf16.msra.mxu0 %v1323
      %1551 = vmatpush.bf16.msra.mxu0 %v1322
      %1552 = vmatpush.bf16.msra.mxu0 %v1321
      %1553 = vmatpush.bf16.msra.mxu0 %v1320
      %1554 = vmatpush.bf16.msra.mxu0 %v1319
      %1555 = vmatmul.bf16.gmra.mxu0 %v820
      %v1556 = vpop.f32.mrf.mxu0
      %v1557 = vadd.f32 %v1508, %v1556
      %v1558 = vpop.f32.mrf.mxu0
      %v1559 = vadd.f32 %v1510, %v1558
      %1560 = vmatmul.bf16.gmra.mxu0 %v831
      %v1561 = vpop.f32.mrf.mxu0
      %v1562 = vadd.f32 %v1513, %v1561
      %v1563 = vpop.f32.mrf.mxu0
      %v1564 = vadd.f32 %v1515, %v1563
      %1565 = vmatmul.bf16.gmra.mxu0 %v842
      %v1566 = vpop.f32.mrf.mxu0
      %v1567 = vadd.f32 %v1518, %v1566
      %v1568 = vpop.f32.mrf.mxu0
      %v1569 = vadd.f32 %v1520, %v1568
      %1570 = vmatmul.bf16.gmra.mxu0 %v853
      %v1571 = vpop.f32.mrf.mxu0
      %v1572 = vadd.f32 %v1523, %v1571
      %v1573 = vpop.f32.mrf.mxu0
      %v1574 = vadd.f32 %v1525, %v1573
      %1575 = vmatmul.bf16.gmra.mxu0 %v864
      %v1576 = vpop.f32.mrf.mxu0
      %v1577 = vadd.f32 %v1528, %v1576
      %v1578 = vpop.f32.mrf.mxu0
      %v1579 = vadd.f32 %v1530, %v1578
      %1580 = vmatmul.bf16.gmra.mxu0 %v875
      %v1581 = vpop.f32.mrf.mxu0
      %v1582 = vadd.f32 %v1533, %v1581
      %v1583 = vpop.f32.mrf.mxu0
      %v1584 = vadd.f32 %v1535, %v1583
      %1585 = vmatmul.bf16.gmra.mxu0 %v886
      %v1586 = vpop.f32.mrf.mxu0
      %v1587 = vadd.f32 %v1538, %v1586
      %v1588 = vpop.f32.mrf.mxu0
      %v1589 = vadd.f32 %v1540, %v1588
      %1590 = vmatmul.bf16.gmra.mxu0 %v897
      %v1591 = vpop.f32.mrf.mxu0
      %v1592 = vadd.f32 %v1543, %v1591
      %v1593 = vpop.f32.mrf.mxu0
      %v1594 = vadd.f32 %v1545, %v1593
      %1595 = vdwg.mxu0
      %1596 = vmatpush.bf16.msra.mxu0 %v1334
      %1597 = vmatpush.bf16.msra.mxu0 %v1333
      %1598 = vmatpush.bf16.msra.mxu0 %v1332
      %1599 = vmatpush.bf16.msra.mxu0 %v1331
      %1600 = vmatpush.bf16.msra.mxu0 %v1330
      %1601 = vmatpush.bf16.msra.mxu0 %v1329
      %1602 = vmatpush.bf16.msra.mxu0 %v1328
      %1603 = vmatpush.bf16.msra.mxu0 %v1327
      %1604 = vmatmul.bf16.gmra.mxu0 %v821
      %v1605 = vpop.f32.mrf.mxu0
      %v1606 = vadd.f32 %v1557, %v1605
      %v1607 = vpop.f32.mrf.mxu0
      %v1608 = vadd.f32 %v1559, %v1607
      %1609 = vmatmul.bf16.gmra.mxu0 %v832
      %v1610 = vpop.f32.mrf.mxu0
      %v1611 = vadd.f32 %v1562, %v1610
      %v1612 = vpop.f32.mrf.mxu0
      %v1613 = vadd.f32 %v1564, %v1612
      %1614 = vmatmul.bf16.gmra.mxu0 %v843
      %v1615 = vpop.f32.mrf.mxu0
      %v1616 = vadd.f32 %v1567, %v1615
      %v1617 = vpop.f32.mrf.mxu0
      %v1618 = vadd.f32 %v1569, %v1617
      %1619 = vmatmul.bf16.gmra.mxu0 %v854
      %v1620 = vpop.f32.mrf.mxu0
      %v1621 = vadd.f32 %v1572, %v1620
      %v1622 = vpop.f32.mrf.mxu0
      %v1623 = vadd.f32 %v1574, %v1622
      %1624 = vmatmul.bf16.gmra.mxu0 %v865
      %v1625 = vpop.f32.mrf.mxu0
      %v1626 = vadd.f32 %v1577, %v1625
      %v1627 = vpop.f32.mrf.mxu0
      %v1628 = vadd.f32 %v1579, %v1627
      %1629 = vmatmul.bf16.gmra.mxu0 %v876
      %v1630 = vpop.f32.mrf.mxu0
      %v1631 = vadd.f32 %v1582, %v1630
      %v1632 = vpop.f32.mrf.mxu0
      %v1633 = vadd.f32 %v1584, %v1632
      %1634 = vmatmul.bf16.gmra.mxu0 %v887
      %v1635 = vpop.f32.mrf.mxu0
      %v1636 = vadd.f32 %v1587, %v1635
      %v1637 = vpop.f32.mrf.mxu0
      %v1638 = vadd.f32 %v1589, %v1637
      %1639 = vmatmul.bf16.gmra.mxu0 %v898
      %v1640 = vpop.f32.mrf.mxu0
      %v1641 = vadd.f32 %v1592, %v1640
      %v1642 = vpop.f32.mrf.mxu0
      %v1643 = vadd.f32 %v1594, %v1642
      %1644 = vdwg.mxu0
      %1645 = vmatpush.bf16.msra.mxu0 %v1342
      %1646 = vmatpush.bf16.msra.mxu0 %v1341
      %1647 = vmatpush.bf16.msra.mxu0 %v1340
      %1648 = vmatpush.bf16.msra.mxu0 %v1339
      %1649 = vmatpush.bf16.msra.mxu0 %v1338
      %1650 = vmatpush.bf16.msra.mxu0 %v1337
      %1651 = vmatpush.bf16.msra.mxu0 %v1336
      %1652 = vmatpush.bf16.msra.mxu0 %v1335
      %1653 = vmatmul.bf16.gmra.mxu0 %v822
      %v1654 = vpop.f32.mrf.mxu0
      %v1655 = vadd.f32 %v1606, %v1654
      %v1656 = vpop.f32.mrf.mxu0
      %v1657 = vadd.f32 %v1608, %v1656
      %1658 = vmatmul.bf16.gmra.mxu0 %v833
      %v1659 = vpop.f32.mrf.mxu0
      %v1660 = vadd.f32 %v1611, %v1659
      %v1661 = vpop.f32.mrf.mxu0
      %v1662 = vadd.f32 %v1613, %v1661
      %1663 = vmatmul.bf16.gmra.mxu0 %v844
      %v1664 = vpop.f32.mrf.mxu0
      %v1665 = vadd.f32 %v1616, %v1664
      %v1666 = vpop.f32.mrf.mxu0
      %v1667 = vadd.f32 %v1618, %v1666
      %1668 = vmatmul.bf16.gmra.mxu0 %v855
      %v1669 = vpop.f32.mrf.mxu0
      %v1670 = vadd.f32 %v1621, %v1669
      %v1671 = vpop.f32.mrf.mxu0
      %v1672 = vadd.f32 %v1623, %v1671
      %1673 = vmatmul.bf16.gmra.mxu0 %v866
      %v1674 = vpop.f32.mrf.mxu0
      %v1675 = vadd.f32 %v1626, %v1674
      %v1676 = vpop.f32.mrf.mxu0
      %v1677 = vadd.f32 %v1628, %v1676
      %1678 = vmatmul.bf16.gmra.mxu0 %v877
      %v1679 = vpop.f32.mrf.mxu0
      %v1680 = vadd.f32 %v1631, %v1679
      %v1681 = vpop.f32.mrf.mxu0
      %v1682 = vadd.f32 %v1633, %v1681
      %1683 = vmatmul.bf16.gmra.mxu0 %v888
      %v1684 = vpop.f32.mrf.mxu0
      %v1685 = vadd.f32 %v1636, %v1684
      %v1686 = vpop.f32.mrf.mxu0
      %v1687 = vadd.f32 %v1638, %v1686
      %1688 = vmatmul.bf16.gmra.mxu0 %v899
      %v1689 = vpop.f32.mrf.mxu0
      %v1690 = vadd.f32 %v1641, %v1689
      %v1691 = vpop.f32.mrf.mxu0
      %v1692 = vadd.f32 %v1643, %v1691
      %1693 = vdwg.mxu0
      %1694 = vmatpush.bf16.msra.mxu0 %v1350
      %1695 = vmatpush.bf16.msra.mxu0 %v1349
      %1696 = vmatpush.bf16.msra.mxu0 %v1348
      %1697 = vmatpush.bf16.msra.mxu0 %v1347
      %1698 = vmatpush.bf16.msra.mxu0 %v1346
      %1699 = vmatpush.bf16.msra.mxu0 %v1345
      %1700 = vmatpush.bf16.msra.mxu0 %v1344
      %1701 = vmatpush.bf16.msra.mxu0 %v1343
      %1702 = vmatmul.bf16.gmra.mxu0 %v823
      %v1703 = vpop.f32.mrf.mxu0
      %v1704 = vadd.f32 %v1655, %v1703
      %v1705 = vpop.f32.mrf.mxu0
      %v1706 = vadd.f32 %v1657, %v1705
      %1707 = vmatmul.bf16.gmra.mxu0 %v834
      %v1708 = vpop.f32.mrf.mxu0
      %v1709 = vadd.f32 %v1660, %v1708
      %v1710 = vpop.f32.mrf.mxu0
      %v1711 = vadd.f32 %v1662, %v1710
      %1712 = vmatmul.bf16.gmra.mxu0 %v845
      %v1713 = vpop.f32.mrf.mxu0
      %v1714 = vadd.f32 %v1665, %v1713
      %v1715 = vpop.f32.mrf.mxu0
      %v1716 = vadd.f32 %v1667, %v1715
      %1717 = vmatmul.bf16.gmra.mxu0 %v856
      %v1718 = vpop.f32.mrf.mxu0
      %v1719 = vadd.f32 %v1670, %v1718
      %v1720 = vpop.f32.mrf.mxu0
      %v1721 = vadd.f32 %v1672, %v1720
      %1722 = vmatmul.bf16.gmra.mxu0 %v867
      %v1723 = vpop.f32.mrf.mxu0
      %v1724 = vadd.f32 %v1675, %v1723
      %v1725 = vpop.f32.mrf.mxu0
      %v1726 = vadd.f32 %v1677, %v1725
      %1727 = vmatmul.bf16.gmra.mxu0 %v878
      %v1728 = vpop.f32.mrf.mxu0
      %v1729 = vadd.f32 %v1680, %v1728
      %v1730 = vpop.f32.mrf.mxu0
      %v1731 = vadd.f32 %v1682, %v1730
      %1732 = vmatmul.bf16.gmra.mxu0 %v889
      %v1733 = vpop.f32.mrf.mxu0
      %v1734 = vadd.f32 %v1685, %v1733
      %v1735 = vpop.f32.mrf.mxu0
      %v1736 = vadd.f32 %v1687, %v1735
      %1737 = vmatmul.bf16.gmra.mxu0 %v900
      %v1738 = vpop.f32.mrf.mxu0
      %v1739 = vadd.f32 %v1690, %v1738
      %v1740 = vpop.f32.mrf.mxu0
      %v1741 = vadd.f32 %v1692, %v1740
      %1742 = vdwg.mxu0
      %1743 = vmatpush.bf16.msra.mxu0 %v1358
      %1744 = vmatpush.bf16.msra.mxu0 %v1357
      %1745 = vmatpush.bf16.msra.mxu0 %v1356
      %1746 = vmatpush.bf16.msra.mxu0 %v1355
      %1747 = vmatpush.bf16.msra.mxu0 %v1354
      %1748 = vmatpush.bf16.msra.mxu0 %v1353
      %1749 = vmatpush.bf16.msra.mxu0 %v1352
      %1750 = vmatpush.bf16.msra.mxu0 %v1351
      %1751 = vmatmul.bf16.gmra.mxu0 %v824
      %v1752 = vpop.f32.mrf.mxu0
      %v1753 = vadd.f32 %v1704, %v1752
      %v1754 = vpop.f32.mrf.mxu0
      %v1755 = vadd.f32 %v1706, %v1754
      %1756 = vmatmul.bf16.gmra.mxu0 %v835
      %v1757 = vpop.f32.mrf.mxu0
      %v1758 = vadd.f32 %v1709, %v1757
      %v1759 = vpop.f32.mrf.mxu0
      %v1760 = vadd.f32 %v1711, %v1759
      %1761 = vmatmul.bf16.gmra.mxu0 %v846
      %v1762 = vpop.f32.mrf.mxu0
      %v1763 = vadd.f32 %v1714, %v1762
      %v1764 = vpop.f32.mrf.mxu0
      %v1765 = vadd.f32 %v1716, %v1764
      %1766 = vmatmul.bf16.gmra.mxu0 %v857
      %v1767 = vpop.f32.mrf.mxu0
      %v1768 = vadd.f32 %v1719, %v1767
      %v1769 = vpop.f32.mrf.mxu0
      %v1770 = vadd.f32 %v1721, %v1769
      %1771 = vmatmul.bf16.gmra.mxu0 %v868
      %v1772 = vpop.f32.mrf.mxu0
      %v1773 = vadd.f32 %v1724, %v1772
      %v1774 = vpop.f32.mrf.mxu0
      %v1775 = vadd.f32 %v1726, %v1774
      %1776 = vmatmul.bf16.gmra.mxu0 %v879
      %v1777 = vpop.f32.mrf.mxu0
      %v1778 = vadd.f32 %v1729, %v1777
      %v1779 = vpop.f32.mrf.mxu0
      %v1780 = vadd.f32 %v1731, %v1779
      %1781 = vmatmul.bf16.gmra.mxu0 %v890
      %v1782 = vpop.f32.mrf.mxu0
      %v1783 = vadd.f32 %v1734, %v1782
      %v1784 = vpop.f32.mrf.mxu0
      %v1785 = vadd.f32 %v1736, %v1784
      %1786 = vmatmul.bf16.gmra.mxu0 %v901
      %v1787 = vpop.f32.mrf.mxu0
      %v1788 = vadd.f32 %v1739, %v1787
      %v1789 = vpop.f32.mrf.mxu0
      %v1790 = vadd.f32 %v1741, %v1789
      %1791 = vdwg.mxu0
      %1792 = vmatpush.bf16.msra.mxu0 %v1366
      %1793 = vmatpush.bf16.msra.mxu0 %v1365
      %1794 = vmatpush.bf16.msra.mxu0 %v1364
      %1795 = vmatpush.bf16.msra.mxu0 %v1363
      %1796 = vmatpush.bf16.msra.mxu0 %v1362
      %1797 = vmatpush.bf16.msra.mxu0 %v1361
      %1798 = vmatpush.bf16.msra.mxu0 %v1360
      %1799 = vmatpush.bf16.msra.mxu0 %v1359
      %1800 = vmatmul.bf16.gmra.mxu0 %v825
      %v1801 = vpop.f32.mrf.mxu0
      %v1802 = vadd.f32 %v1753, %v1801
      %v1803 = vpop.f32.mrf.mxu0
      %v1804 = vadd.f32 %v1755, %v1803
      %1805 = vmatmul.bf16.gmra.mxu0 %v836
      %v1806 = vpop.f32.mrf.mxu0
      %v1807 = vadd.f32 %v1758, %v1806
      %v1808 = vpop.f32.mrf.mxu0
      %v1809 = vadd.f32 %v1760, %v1808
      %1810 = vmatmul.bf16.gmra.mxu0 %v847
      %v1811 = vpop.f32.mrf.mxu0
      %v1812 = vadd.f32 %v1763, %v1811
      %v1813 = vpop.f32.mrf.mxu0
      %v1814 = vadd.f32 %v1765, %v1813
      %1815 = vmatmul.bf16.gmra.mxu0 %v858
      %v1816 = vpop.f32.mrf.mxu0
      %v1817 = vadd.f32 %v1768, %v1816
      %v1818 = vpop.f32.mrf.mxu0
      %v1819 = vadd.f32 %v1770, %v1818
      %1820 = vmatmul.bf16.gmra.mxu0 %v869
      %v1821 = vpop.f32.mrf.mxu0
      %v1822 = vadd.f32 %v1773, %v1821
      %v1823 = vpop.f32.mrf.mxu0
      %v1824 = vadd.f32 %v1775, %v1823
      %1825 = vmatmul.bf16.gmra.mxu0 %v880
      %v1826 = vpop.f32.mrf.mxu0
      %v1827 = vadd.f32 %v1778, %v1826
      %v1828 = vpop.f32.mrf.mxu0
      %v1829 = vadd.f32 %v1780, %v1828
      %1830 = vmatmul.bf16.gmra.mxu0 %v891
      %v1831 = vpop.f32.mrf.mxu0
      %v1832 = vadd.f32 %v1783, %v1831
      %v1833 = vpop.f32.mrf.mxu0
      %v1834 = vadd.f32 %v1785, %v1833
      %1835 = vmatmul.bf16.gmra.mxu0 %v902
      %v1836 = vpop.f32.mrf.mxu0
      %v1837 = vadd.f32 %v1788, %v1836
      %v1838 = vpop.f32.mrf.mxu0
      %v1839 = vadd.f32 %v1790, %v1838
      %1840 = vdwg.mxu0
      %1841 = vmatpush.bf16.msra.mxu0 %v1374
      %1842 = vmatpush.bf16.msra.mxu0 %v1373
      %1843 = vmatpush.bf16.msra.mxu0 %v1372
      %1844 = vmatpush.bf16.msra.mxu0 %v1371
      %1845 = vmatpush.bf16.msra.mxu0 %v1370
      %1846 = vmatpush.bf16.msra.mxu0 %v1369
      %1847 = vmatpush.bf16.msra.mxu0 %v1368
      %1848 = vmatpush.bf16.msra.mxu0 %v1367
      %1849 = vmatmul.bf16.gmra.mxu0 %v826
      %v1850 = vpop.f32.mrf.mxu0
      %v1851 = vadd.f32 %v1802, %v1850
      %v1852 = vpop.f32.mrf.mxu0
      %v1853 = vadd.f32 %v1804, %v1852
      %1854 = vmatmul.bf16.gmra.mxu0 %v837
      %v1855 = vpop.f32.mrf.mxu0
      %v1856 = vadd.f32 %v1807, %v1855
      %v1857 = vpop.f32.mrf.mxu0
      %v1858 = vadd.f32 %v1809, %v1857
      %1859 = vmatmul.bf16.gmra.mxu0 %v848
      %v1860 = vpop.f32.mrf.mxu0
      %v1861 = vadd.f32 %v1812, %v1860
      %v1862 = vpop.f32.mrf.mxu0
      %v1863 = vadd.f32 %v1814, %v1862
      %1864 = vmatmul.bf16.gmra.mxu0 %v859
      %v1865 = vpop.f32.mrf.mxu0
      %v1866 = vadd.f32 %v1817, %v1865
      %v1867 = vpop.f32.mrf.mxu0
      %v1868 = vadd.f32 %v1819, %v1867
      %1869 = vmatmul.bf16.gmra.mxu0 %v870
      %v1870 = vpop.f32.mrf.mxu0
      %v1871 = vadd.f32 %v1822, %v1870
      %v1872 = vpop.f32.mrf.mxu0
      %v1873 = vadd.f32 %v1824, %v1872
      %1874 = vmatmul.bf16.gmra.mxu0 %v881
      %v1875 = vpop.f32.mrf.mxu0
      %v1876 = vadd.f32 %v1827, %v1875
      %v1877 = vpop.f32.mrf.mxu0
      %v1878 = vadd.f32 %v1829, %v1877
      %1879 = vmatmul.bf16.gmra.mxu0 %v892
      %v1880 = vpop.f32.mrf.mxu0
      %v1881 = vadd.f32 %v1832, %v1880
      %v1882 = vpop.f32.mrf.mxu0
      %v1883 = vadd.f32 %v1834, %v1882
      %1884 = vmatmul.bf16.gmra.mxu0 %v903
      %v1885 = vpop.f32.mrf.mxu0
      %v1886 = vadd.f32 %v1837, %v1885
      %v1887 = vpop.f32.mrf.mxu0
      %v1888 = vadd.f32 %v1839, %v1887
      %1889 = vdwg.mxu0
      %1890 = vmatpush.bf16.msra.mxu0 %v1382
      %1891 = vmatpush.bf16.msra.mxu0 %v1381
      %1892 = vmatpush.bf16.msra.mxu0 %v1380
      %1893 = vmatpush.bf16.msra.mxu0 %v1379
      %1894 = vmatpush.bf16.msra.mxu0 %v1378
      %1895 = vmatpush.bf16.msra.mxu0 %v1377
      %1896 = vmatpush.bf16.msra.mxu0 %v1376
      %1897 = vmatpush.bf16.msra.mxu0 %v1375
      %1898 = vmatmul.bf16.gmra.mxu0 %v827
      %v1899 = vpop.f32.mrf.mxu0
      %v1900 = vadd.f32 %v1851, %v1899
      %v1901 = vpop.f32.mrf.mxu0
      %v1902 = vadd.f32 %v1853, %v1901
      %1903 = vmatmul.bf16.gmra.mxu0 %v838
      %v1904 = vpop.f32.mrf.mxu0
      %v1905 = vadd.f32 %v1856, %v1904
      %v1906 = vpop.f32.mrf.mxu0
      %v1907 = vadd.f32 %v1858, %v1906
      %1908 = vmatmul.bf16.gmra.mxu0 %v849
      %v1909 = vpop.f32.mrf.mxu0
      %v1910 = vadd.f32 %v1861, %v1909
      %v1911 = vpop.f32.mrf.mxu0
      %v1912 = vadd.f32 %v1863, %v1911
      %1913 = vmatmul.bf16.gmra.mxu0 %v860
      %v1914 = vpop.f32.mrf.mxu0
      %v1915 = vadd.f32 %v1866, %v1914
      %v1916 = vpop.f32.mrf.mxu0
      %v1917 = vadd.f32 %v1868, %v1916
      %1918 = vmatmul.bf16.gmra.mxu0 %v871
      %v1919 = vpop.f32.mrf.mxu0
      %v1920 = vadd.f32 %v1871, %v1919
      %v1921 = vpop.f32.mrf.mxu0
      %v1922 = vadd.f32 %v1873, %v1921
      %1923 = vmatmul.bf16.gmra.mxu0 %v882
      %v1924 = vpop.f32.mrf.mxu0
      %v1925 = vadd.f32 %v1876, %v1924
      %v1926 = vpop.f32.mrf.mxu0
      %v1927 = vadd.f32 %v1878, %v1926
      %1928 = vmatmul.bf16.gmra.mxu0 %v893
      %v1929 = vpop.f32.mrf.mxu0
      %v1930 = vadd.f32 %v1881, %v1929
      %v1931 = vpop.f32.mrf.mxu0
      %v1932 = vadd.f32 %v1883, %v1931
      %1933 = vmatmul.bf16.gmra.mxu0 %v904
      %v1934 = vpop.f32.mrf.mxu0
      %v1935 = vadd.f32 %v1886, %v1934
      %v1936 = vpop.f32.mrf.mxu0
      %v1937 = vadd.f32 %v1888, %v1936
      %1938 = vdwg.mxu0
      %1939 = vmatpush.bf16.msra.mxu0 %v1390
      %1940 = vmatpush.bf16.msra.mxu0 %v1389
      %1941 = vmatpush.bf16.msra.mxu0 %v1388
      %1942 = vmatpush.bf16.msra.mxu0 %v1387
      %1943 = vmatpush.bf16.msra.mxu0 %v1386
      %1944 = vmatpush.bf16.msra.mxu0 %v1385
      %1945 = vmatpush.bf16.msra.mxu0 %v1384
      %1946 = vmatpush.bf16.msra.mxu0 %v1383
      %1947 = vmatmul.bf16.gmra.mxu0 %v828
      %v1948 = vpop.f32.mrf.mxu0
      %v1949 = vadd.f32 %v1900, %v1948
      %v1950 = vpop.f32.mrf.mxu0
      %v1951 = vadd.f32 %v1902, %v1950
      %1952 = vmatmul.bf16.gmra.mxu0 %v839
      %v1953 = vpop.f32.mrf.mxu0
      %v1954 = vadd.f32 %v1905, %v1953
      %v1955 = vpop.f32.mrf.mxu0
      %v1956 = vadd.f32 %v1907, %v1955
      %1957 = vmatmul.bf16.gmra.mxu0 %v850
      %v1958 = vpop.f32.mrf.mxu0
      %v1959 = vadd.f32 %v1910, %v1958
      %v1960 = vpop.f32.mrf.mxu0
      %v1961 = vadd.f32 %v1912, %v1960
      %1962 = vmatmul.bf16.gmra.mxu0 %v861
      %v1963 = vpop.f32.mrf.mxu0
      %v1964 = vadd.f32 %v1915, %v1963
      %v1965 = vpop.f32.mrf.mxu0
      %v1966 = vadd.f32 %v1917, %v1965
      %1967 = vmatmul.bf16.gmra.mxu0 %v872
      %v1968 = vpop.f32.mrf.mxu0
      %v1969 = vadd.f32 %v1920, %v1968
      %v1970 = vpop.f32.mrf.mxu0
      %v1971 = vadd.f32 %v1922, %v1970
      %1972 = vmatmul.bf16.gmra.mxu0 %v883
      %v1973 = vpop.f32.mrf.mxu0
      %v1974 = vadd.f32 %v1925, %v1973
      %v1975 = vpop.f32.mrf.mxu0
      %v1976 = vadd.f32 %v1927, %v1975
      %1977 = vmatmul.bf16.gmra.mxu0 %v894
      %v1978 = vpop.f32.mrf.mxu0
      %v1979 = vadd.f32 %v1930, %v1978
      %v1980 = vpop.f32.mrf.mxu0
      %v1981 = vadd.f32 %v1932, %v1980
      %1982 = vmatmul.bf16.gmra.mxu0 %v905
      %v1983 = vpop.f32.mrf.mxu0
      %v1984 = vadd.f32 %v1935, %v1983
      %v1985 = vpop.f32.mrf.mxu0
      %v1986 = vadd.f32 %v1937, %v1985
      %1987 = vdwg.mxu0
      %1988 = vmatpush.bf16.msra.mxu0 0
      %1989 = vmatpush.bf16.msra.mxu0 0
      %1990 = vmatpush.bf16.msra.mxu0 0
      %1991 = vmatpush.bf16.msra.mxu0 0
      %1992 = vmatpush.bf16.msra.mxu0 0
      %1993 = vmatpush.bf16.msra.mxu0 0
      %1994 = vmatpush.bf16.msra.mxu0 0
      %1995 = vmatpush.bf16.msra.mxu0 %v1391
      %1996 = vmatmul.bf16.gmra.mxu0 %v1475
      %v1997 = vpop.f32.mrf.mxu0
      %v1998 = vadd.f32 %v1949, %v1997
      %v1999 = vpop.f32.mrf.mxu0
      %v2000 = vadd.f32 %v1951, %v1999
      %2001 = vmatmul.bf16.gmra.mxu0 %v1478
      %v2002 = vpop.f32.mrf.mxu0
      %v2003 = vadd.f32 %v1954, %v2002
      %v2004 = vpop.f32.mrf.mxu0
      %v2005 = vadd.f32 %v1956, %v2004
      %2006 = vmatmul.bf16.gmra.mxu0 %v1481
      %v2007 = vpop.f32.mrf.mxu0
      %v2008 = vadd.f32 %v1959, %v2007
      %v2009 = vpop.f32.mrf.mxu0
      %v2010 = vadd.f32 %v1961, %v2009
      %2011 = vmatmul.bf16.gmra.mxu0 %v1484
      %v2012 = vpop.f32.mrf.mxu0
      %v2013 = vadd.f32 %v1964, %v2012
      %v2014 = vpop.f32.mrf.mxu0
      %v2015 = vadd.f32 %v1966, %v2014
      %2016 = vmatmul.bf16.gmra.mxu0 %v1487
      %v2017 = vpop.f32.mrf.mxu0
      %v2018 = vadd.f32 %v1969, %v2017
      %v2019 = vpop.f32.mrf.mxu0
      %v2020 = vadd.f32 %v1971, %v2019
      %2021 = vmatmul.bf16.gmra.mxu0 %v1490
      %v2022 = vpop.f32.mrf.mxu0
      %v2023 = vadd.f32 %v1974, %v2022
      %v2024 = vpop.f32.mrf.mxu0
      %v2025 = vadd.f32 %v1976, %v2024
      %2026 = vmatmul.bf16.gmra.mxu0 %v1493
      %v2027 = vpop.f32.mrf.mxu0
      %v2028 = vadd.f32 %v1979, %v2027
      %v2029 = vpop.f32.mrf.mxu0
      %v2030 = vadd.f32 %v1981, %v2029
      %2031 = vmatmul.bf16.gmra.mxu0 %v1496
      %v2032 = vpop.f32.mrf.mxu0
      %v2033 = vadd.f32 %v1984, %v2032
      %v2034 = vpop.f32.mrf.mxu0
      %v2035 = vadd.f32 %v1986, %v2034
      %2036 = vdwg.mxu0
      %v2037 = vmax.f32 %v1998, 0.0
      %v2038 = vmax.f32 %v2000, 0.0
      %v2039 = vmax.f32 %v2003, 0.0
      %v2040 = vmax.f32 %v2005, 0.0
      %v2041 = vmax.f32 %v2008, 0.0
      %v2042 = vmax.f32 %v2010, 0.0
      %v2043 = vmax.f32 %v2013, 0.0
      %v2044 = vmax.f32 %v2015, 0.0
      %v2045 = vmax.f32 %v2018, 0.0
      %v2046 = vmax.f32 %v2020, 0.0
      %v2047 = vmax.f32 %v2023, 0.0
      %v2048 = vmax.f32 %v2025, 0.0
      %v2049 = vmax.f32 %v2028, 0.0
      %v2050 = vmax.f32 %v2030, 0.0
      %v2051 = vmax.f32 %v2033, 0.0
      %v2052 = vmax.f32 %v2035, 0.0
      %v2053 = vpack.c.bf16 %v2037, %v2037
      %v2054 = vpack.c.bf16 %v2038, %v2038
      %v2055 = vpack.c.bf16 %v2039, %v2039
      %v2056 = vpack.c.bf16 %v2040, %v2040
      %v2057 = vpack.c.bf16 %v2041, %v2041
      %v2058 = vpack.c.bf16 %v2042, %v2042
      %v2059 = vpack.c.bf16 %v2043, %v2043
      %v2060 = vpack.c.bf16 %v2044, %v2044
      %v2061 = vpack.c.bf16 %v2045, %v2045
      %v2062 = vpack.c.bf16 %v2046, %v2046
      %v2063 = vpack.c.bf16 %v2047, %v2047
      %v2064 = vpack.c.bf16 %v2048, %v2048
      %v2065 = vpack.c.bf16 %v2049, %v2049
      %v2066 = vpack.c.bf16 %v2050, %v2050
      %v2067 = vpack.c.bf16 %v2051, %v2051
      %v2068 = vpack.c.bf16 %v2052, %v2052
      %2069 = vst [vmem:[%s282] sm:$0xf] %v2053
      %2070 = vst [vmem:[%s282 + $0x4] sm:$0xf] %v2054
      %2071 = vst [vmem:[%s282 + $0x8] sm:$0xf] %v2055
      %2072 = vst [vmem:[%s282 + $0xc] sm:$0xf] %v2056
      %2073 = vst [vmem:[%s282 + $0x10] sm:$0xf] %v2057
      %2074 = vst [vmem:[%s282 + $0x14] sm:$0xf] %v2058
      %2075 = vst [vmem:[%s282 + $0x18] sm:$0xf] %v2059
      %2076 = vst [vmem:[%s282 + $0x1c] sm:$0xf] %v2060
      %2077 = vst [vmem:[%s282 + $0x20] sm:$0xf] %v2061
      %2078 = vst [vmem:[%s282 + $0x24] sm:$0xf] %v2062
      %2079 = vst [vmem:[%s282 + $0x28] sm:$0xf] %v2063
      %2080 = vst [vmem:[%s282 + $0x2c] sm:$0xf] %v2064
      %2081 = vst [vmem:[%s282 + $0x30] sm:$0xf] %v2065
      %2082 = vst [vmem:[%s282 + $0x34] sm:$0xf] %v2066
      %2083 = vst [vmem:[%s282 + $0x38] sm:$0xf] %v2067
      %2084 = vst [vmem:[%s282 + $0x3c] sm:$0xf] %v2068
      %s2085 = smul.u32 16, %s20
      %p2086 = scmp.lt.s32.totalorder %s19, 1
      %s2087 = scalar_select %p2086, %s19, 1
      %p2088 = scmp.lt.s32.totalorder %s2085, 15
      %s2089 = scalar_select %p2088, %s2085, 15
      %p2090 = scmp.lt.s32.totalorder %s21, 0
      %s2091 = scalar_select %p2090, %s21, 0
      %s2092 = sadd.s32 %s2091, %s2089
      %s2093 = smul.addr %s2087, 16
      %s2094 = sadd.s32 %s2092, %s2093
      %s2095 = smul.addr %s2094, 4
      %s2096 = scalar_lea.vmem %s3, %s2095
      // Predicated region
      $region33: #{hsi_lidar_couple_cross.4} parent=31 // pred_check
        %p2097 = pneg %p139
      $region34: #{hsi_lidar_couple_cross.4} parent=31 // pred_check_branch
        %2099 = sbr.rel (%p2097) target = $region36
      $region35: #{hsi_lidar_couple_cross.4} parent=31 // pred_region
        %s2100 = smul.u32 16, %s20
      $region36: #{hsi_lidar_couple_cross.4} parent=31 // pred_fallthru
        _
    $region32: #{hsi_lidar_couple_cross.4} parent=5 // pred_fallthru
      _
    %p2101 = scmp.le.s32.totalorder 2, %s9
    // Predicated region
    $region37: #{hsi_lidar_couple_cross.4} parent=5 // pred_check
      %p2102 = pneg %p2101
    $region38: #{hsi_lidar_couple_cross.4} parent=5 // pred_check_branch
      %2104 = sbr.rel (%p2102) target = $region40
    $region39: #{hsi_lidar_couple_cross.4} parent=5 // pred_region
      %s2105 = ssub.s32 %s9, 2
      // Predicated region
      $region41: #{hsi_lidar_couple_cross.4} parent=39 // pred_check
        %p2106 = pneg %p145
      $region42: #{hsi_lidar_couple_cross.4} parent=39 // pred_check_branch
        %2108 = sbr.rel (%p2106) target = $region44
      $region43: #{hsi_lidar_couple_cross.4} parent=39 // pred_region
        %s2109 = smul.u32 16, %s23
        %p2110 = scmp.lt.s32.totalorder %s22, 1
        %s2111 = scalar_select %p2110, %s22, 1
        %p2112 = scmp.lt.s32.totalorder %s2109, 15
        %s2113 = scalar_select %p2112, %s2109, 15
        %p2114 = scmp.lt.s32.totalorder %s24, 0
        %s2115 = scalar_select %p2114, %s24, 0
        %s2116 = sadd.s32 %s2115, %s2113
        %s2117 = smul.addr %s2111, 16
        %s2118 = sadd.s32 %s2116, %s2117
        %s2119 = smul.addr %s2118, 4
        %s2120 = scalar_lea.vmem %s3, %s2119
      $region44: #{hsi_lidar_couple_cross.4} parent=39 // pred_fallthru
        _
    $region40: #{hsi_lidar_couple_cross.4} parent=5 // pred_fallthru
      _
  $region6: #{hsi_lidar_couple_cross.4} parent=0 // loop_footer
    %s13 = sadd.s32 1, %s9
  $region7: #{hsi_lidar_couple_cross.4} parent=0 // loop_footer_branch
    %8 = sbr.rel target = $region3
  $region8: #{hsi_lidar_couple_cross.4} parent=0 // loop_exit
    _

// kernel: hsi_lidar_couple_cross.5
$region0: #{hsi_lidar_couple_cross.5}
  #allocation0 [shape = 'u32[]', space=smem, size = 0x4, offset = 0x4, fixed_abs, tag = 'smem constant byte address 0x4 - core index']
  #allocation1 [shape = 'u32[72,128]{1,0:T(1,128)}', space=vmem, size = 0x9000, scoped, tag = 'internal scratch']
  %s0 = inlined_call_operand.vmem [shape: bf16[2,128,288], index: 0, kind: input, shape index: {}]
  %s1 = inlined_call_operand.vmem [shape: bf16[2,288,128], index: 1, kind: input, shape index: {}]
  %s2 = inlined_call_operand.vmem [shape: f32[2,1,128], index: 2, kind: input, shape index: {}]
  %s3 = inlined_call_operand.vmem [shape: bf16[2,128,128], index: 3, kind: output, shape index: {}]
  %s4 = sld [smem:[#allocation0]]
  $region45: #{hsi_lidar_couple_cross.5} parent=0
    _
  %s6 = ssub.s32 1, %s4
  %s7 = scalar_select 0, %s6, %s4
  loop: start=0, step=1, limit=4
  $region2: #{hsi_lidar_couple_cross.5} parent=0 // loop_pre_header
    _
  $region3: #{hsi_lidar_couple_cross.5} parent=0 // loop_header
    %s9 = sphi 0, %s13
    %p10 = scmp.ge.s32.totalorder %s9, 4
    %s16 = sphi 0, %s35
    %s17 = sphi 0, %s31
    %s18 = sphi 0, %s27
    %s19 = sphi 0, %s16
    %s20 = sphi 0, %s17
    %s21 = sphi 0, %s18
    %s22 = sphi 0, %s19
    %s23 = sphi 0, %s20
    %s24 = sphi 0, %s21
    %s40 = sphi 0, %s42
    %s43 = sphi 0, %s40
    %s44 = sphi 0, %s43
    %s60 = sphi 0, %s44
    %s68 = sphi 0, %s70
    %s71 = sphi 0, %s68
    %s72 = sphi 0, %s71
    %s88 = sphi 0, %s72
    %s96 = sphi 0, %s98
    %s99 = sphi 0, %s96
    %s100 = sphi 0, %s99
    %s116 = sphi 0, %s100
    %s126 = sphi 0, %s128
    %s129 = sphi 0, %s126
    %s130 = sphi 0, %s129
    %s146 = sphi 0, %s130
  $region4: #{hsi_lidar_couple_cross.5} parent=0 // loop_header_branch
    %12 = sbr.rel (%p10) target = $region8
  $region5: #{hsi_lidar_couple_cross.5} parent=0 // loop_body
    %s14 = ssub.s32 %s9, 1
    %s15 = ssub.s32 %s9, 2
    %s25 = sadd.s32 1, %s18
    %p26 = scmp.ge.s32.totalorder %s25, 1
    %s27 = scalar_select %p26, 0, %s25
    %s28 = sadd.s32 1, %s17
    %s29 = scalar_select %p26, %s28, %s17
    %p30 = scmp.ge.s32.totalorder %s29, 1
    %s31 = scalar_select %p30, 0, %s29
    %s32 = sadd.s32 1, %s16
    %s33 = scalar_select %p30, %s32, %s16
    %p34 = scmp.ge.s32.totalorder %s33, 2
    %s35 = scalar_select %p34, 0, %s33
    %s36 = ssub.s32 %s16, %s35
    %s37 = ssub.s32 %s17, %s31
    %s38 = sor.u32 %s36, %s37
    %p39 = scmp.eq.s32.totalorder %s38, 0
    %s41 = sadd.s32 %s40, 1
    %s42 = scalar_select %p39, %s40, %s41
    %p45 = pneg %p39
    %p46 = scmp.eq.s32.totalorder %s9, 1
    %p47 = por %p45, %p46
    %p48 = scmp.ne.s32.totalorder %s40, %s43
    %p49 = scmp.eq.s32.totalorder %s9, 0
    %p50 = por %p48, %p49
    %p51 = scmp.ne.s32.totalorder %s40, %s43
    %p52 = scmp.eq.s32.totalorder %s14, 1
    %p53 = por %p51, %p52
    %p54 = scmp.ne.s32.totalorder %s43, %s44
    %p55 = scmp.eq.s32.totalorder %s14, 0
    %p56 = por %p54, %p55
    %p57 = scmp.ne.s32.totalorder %s43, %s44
    %p58 = scmp.eq.s32.totalorder %s15, 1
    %p59 = por %p57, %p58
    %p61 = scmp.ne.s32.totalorder %s44, %s60
    %p62 = scmp.eq.s32.totalorder %s15, 0
    %p63 = por %p61, %p62
    %s64 = ssub.s32 %s16, %s35
    %s65 = ssub.s32 %s18, %s27
    %s66 = sor.u32 %s64, %s65
    %p67 = scmp.eq.s32.totalorder %s66, 0
    %s69 = sadd.s32 %s68, 1
    %s70 = scalar_select %p67, %s68, %s69
    %p73 = pneg %p67
    %p74 = scmp.eq.s32.totalorder %s9, 1
    %p75 = por %p73, %p74
    %p76 = scmp.ne.s32.totalorder %s68, %s71
    %p77 = scmp.eq.s32.totalorder %s9, 0
    %p78 = por %p76, %p77
    %p79 = scmp.ne.s32.totalorder %s68, %s71
    %p80 = scmp.eq.s32.totalorder %s14, 1
    %p81 = por %p79, %p80
    %p82 = scmp.ne.s32.totalorder %s71, %s72
    %p83 = scmp.eq.s32.totalorder %s14, 0
    %p84 = por %p82, %p83
    %p85 = scmp.ne.s32.totalorder %s71, %s72
    %p86 = scmp.eq.s32.totalorder %s15, 1
    %p87 = por %p85, %p86
    %p89 = scmp.ne.s32.totalorder %s72, %s88
    %p90 = scmp.eq.s32.totalorder %s15, 0
    %p91 = por %p89, %p90
    %s92 = ssub.s32 %s16, %s35
    %s93 = ssub.s32 %s18, %s27
    %s94 = sor.u32 %s92, %s93
    %p95 = scmp.eq.s32.totalorder %s94, 0
    %s97 = sadd.s32 %s96, 1
    %s98 = scalar_select %p95, %s96, %s97
    %p101 = pneg %p95
    %p102 = scmp.eq.s32.totalorder %s9, 1
    %p103 = por %p101, %p102
    %p104 = scmp.ne.s32.totalorder %s96, %s99
    %p105 = scmp.eq.s32.totalorder %s9, 0
    %p106 = por %p104, %p105
    %p107 = scmp.ne.s32.totalorder %s96, %s99
    %p108 = scmp.eq.s32.totalorder %s14, 1
    %p109 = por %p107, %p108
    %p110 = scmp.ne.s32.totalorder %s99, %s100
    %p111 = scmp.eq.s32.totalorder %s14, 0
    %p112 = por %p110, %p111
    %p113 = scmp.ne.s32.totalorder %s99, %s100
    %p114 = scmp.eq.s32.totalorder %s15, 1
    %p115 = por %p113, %p114
    %p117 = scmp.ne.s32.totalorder %s100, %s116
    %p118 = scmp.eq.s32.totalorder %s15, 0
    %p119 = por %p117, %p118
    %s120 = ssub.s32 %s16, %s35
    %s121 = ssub.s32 %s17, %s31
    %s122 = sor.u32 %s120, %s121
    %s123 = ssub.s32 %s18, %s27
    %s124 = sor.u32 %s122, %s123
    %p125 = scmp.eq.s32.totalorder %s124, 0
    %s127 = sadd.s32 %s126, 1
    %s128 = scalar_select %p125, %s126, %s127
    %p131 = pneg %p125
    %p132 = scmp.eq.s32.totalorder %s9, 1
    %p133 = por %p131, %p132
    %p134 = scmp.ne.s32.totalorder %s126, %s129
    %p135 = scmp.eq.s32.totalorder %s9, 0
    %p136 = por %p134, %p135
    %p137 = scmp.ne.s32.totalorder %s126, %s129
    %p138 = scmp.eq.s32.totalorder %s14, 1
    %p139 = por %p137, %p138
    %p140 = scmp.ne.s32.totalorder %s129, %s130
    %p141 = scmp.eq.s32.totalorder %s14, 0
    %p142 = por %p140, %p141
    %p143 = scmp.ne.s32.totalorder %s129, %s130
    %p144 = scmp.eq.s32.totalorder %s15, 1
    %p145 = por %p143, %p144
    %p147 = scmp.ne.s32.totalorder %s130, %s146
    %p148 = scmp.eq.s32.totalorder %s15, 0
    %p149 = por %p147, %p148
    %p150 = scmp.le.s32.totalorder 1, %s9
    %p151 = scmp.lt.s32.totalorder %s9, 3
    %p152 = pnand %p150, %p151
    %p153 = pneg %p152
    // Predicated region
    $region9: #{hsi_lidar_couple_cross.5} parent=5 // pred_check
      _
    $region10: #{hsi_lidar_couple_cross.5} parent=5 // pred_check_branch
      %155 = sbr.rel (%p152) target = $region12
    $region11: #{hsi_lidar_couple_cross.5} parent=5 // pred_region
      %s156 = ssub.s32 %s9, 1
    $region12: #{hsi_lidar_couple_cross.5} parent=5 // pred_fallthru
      _
    %p157 = scmp.lt.s32.totalorder %s9, 2
    // Predicated region
    $region13: #{hsi_lidar_couple_cross.5} parent=5 // pred_check
      %p158 = pneg %p157
    $region14: #{hsi_lidar_couple_cross.5} parent=5 // pred_check_branch
      %160 = sbr.rel (%p158) target = $region16
    $region15: #{hsi_lidar_couple_cross.5} parent=5 // pred_region
      // Predicated region
      $region17: #{hsi_lidar_couple_cross.5} parent=15 // pred_check
        %p161 = pneg %p50
      $region18: #{hsi_lidar_couple_cross.5} parent=15 // pred_check_branch
        %163 = sbr.rel (%p161) target = $region20
      $region19: #{hsi_lidar_couple_cross.5} parent=15 // pred_region
        %s164 = smul.u32 16, %s17
        %p165 = scmp.lt.s32.totalorder %s16, 1
        %s166 = scalar_select %p165, %s16, 1
        %p167 = scmp.lt.s32.totalorder %s164, 15
        %s168 = scalar_select %p167, %s164, 15
        %s169 = smul.addr %s168, 3
        %s170 = smul.addr %s166, 48
        %s171 = sadd.s32 %s169, %s170
        %s172 = smul.addr %s171, 4
        %s173 = scalar_lea.vmem %s0, %s172
        %s174 = smul.u32 16, %s17
      $region20: #{hsi_lidar_couple_cross.5} parent=15 // pred_fallthru
        _
      // Predicated region
      $region21: #{hsi_lidar_couple_cross.5} parent=15 // pred_check
        %p175 = pneg %p78
      $region22: #{hsi_lidar_couple_cross.5} parent=15 // pred_check_branch
        %177 = sbr.rel (%p175) target = $region24
      $region23: #{hsi_lidar_couple_cross.5} parent=15 // pred_region
        %p178 = scmp.lt.s32.totalorder %s16, 1
        %s179 = scalar_select %p178, %s16, 1
        %p180 = scmp.lt.s32.totalorder %s18, 0
        %s181 = scalar_select %p180, %s18, 0
        %s182 = smul.addr %s179, 36
        %s183 = sadd.s32 %s181, %s182
        %s184 = smul.addr %s183, 4
        %s185 = scalar_lea.vmem %s1, %s184
      $region24: #{hsi_lidar_couple_cross.5} parent=15 // pred_fallthru
        _
      // Predicated region
      $region25: #{hsi_lidar_couple_cross.5} parent=15 // pred_check
        %p186 = pneg %p106
      $region26: #{hsi_lidar_couple_cross.5} parent=15 // pred_check_branch
        %188 = sbr.rel (%p186) target = $region28
      $region27: #{hsi_lidar_couple_cross.5} parent=15 // pred_region
        %p189 = scmp.lt.s32.totalorder %s16, 1
        %s190 = scalar_select %p189, %s16, 1
        %p191 = scmp.lt.s32.totalorder %s18, 0
        %s192 = scalar_select %p191, %s18, 0
        %s193 = sadd.s32 %s192, %s190
        %s194 = scalar_lea.vmem %s2, %s193
      $region28: #{hsi_lidar_couple_cross.5} parent=15 // pred_fallthru
        _
    $region16: #{hsi_lidar_couple_cross.5} parent=5 // pred_fallthru
      _
    %p195 = scmp.le.s32.totalorder 1, %s9
    %p196 = scmp.lt.s32.totalorder %s9, 3
    %p197 = pnand %p195, %p196
    %p198 = pneg %p197
    // Predicated region
    $region29: #{hsi_lidar_couple_cross.5} parent=5 // pred_check
      _
    $region30: #{hsi_lidar_couple_cross.5} parent=5 // pred_check_branch
      %200 = sbr.rel (%p197) target = $region32
    $region31: #{hsi_lidar_couple_cross.5} parent=5 // pred_region
      %s201 = ssub.s32 %s9, 1
      %s202 = smul.u32 16, %s20
      %p203 = scmp.lt.s32.totalorder %s19, 1
      %s204 = scalar_select %p203, %s19, 1
      %p205 = scmp.lt.s32.totalorder %s202, 15
      %s206 = scalar_select %p205, %s202, 15
      %s207 = smul.addr %s206, 3
      %s208 = smul.addr %s204, 48
      %s209 = sadd.s32 %s207, %s208
      %s210 = smul.addr %s209, 4
      %s211 = scalar_lea.vmem %s0, %s210
      %p212 = pneg %p56
      %p213 = pneg %p53
      %p214 = scmp.lt.s32.totalorder %s19, 1
      %s215 = scalar_select %p214, %s19, 1
      %p216 = scmp.lt.s32.totalorder %s21, 0
      %s217 = scalar_select %p216, %s21, 0
      %s218 = smul.addr %s215, 36
      %s219 = sadd.s32 %s217, %s218
      %s220 = smul.addr %s219, 4
      %s221 = scalar_lea.vmem %s1, %s220
      %p222 = pneg %p84
      %p223 = pneg %p81
      %p224 = scmp.lt.s32.totalorder %s19, 1
      %s225 = scalar_select %p224, %s19, 1
      %p226 = scmp.lt.s32.totalorder %s21, 0
      %s227 = scalar_select %p226, %s21, 0
      %s228 = sadd.s32 %s227, %s225
      %s229 = scalar_lea.vmem %s2, %s228
      %p230 = pneg %p112
      %p231 = pneg %p109
      %p232 = pneg %p142
      %p233 = pneg %p139
      %s234 = smul.u32 16, %s20
      %p235 = scmp.lt.s32.totalorder %s19, 1
      %s236 = scalar_select %p235, %s19, 1
      %p237 = scmp.lt.s32.totalorder %s234, 15
      %s238 = scalar_select %p237, %s234, 15
      %p239 = scmp.lt.s32.totalorder %s21, 0
      %s240 = scalar_select %p239, %s21, 0
      %s241 = sadd.s32 %s240, %s238
      %s242 = smul.addr %s236, 16
      %s243 = sadd.s32 %s241, %s242
      %s244 = smul.addr %s243, 4
      %s245 = scalar_lea.vmem %s3, %s244
      %s246 = smul.u32 16, %s20
      %p247 = scmp.lt.s32.totalorder %s19, 1
      %s248 = scalar_select %p247, %s19, 1
      %p249 = scmp.lt.s32.totalorder %s246, 15
      %s250 = scalar_select %p249, %s246, 15
      %s251 = smul.addr %s250, 3
      %s252 = smul.addr %s248, 48
      %s253 = sadd.s32 %s251, %s252
      %s254 = smul.addr %s253, 4
      %s255 = scalar_lea.vmem %s0, %s254
      %s256 = smul.u32 16, %s20
      %p257 = scmp.lt.s32.totalorder %s19, 1
      %s258 = scalar_select %p257, %s19, 1
      %p259 = scmp.lt.s32.totalorder %s21, 0
      %s260 = scalar_select %p259, %s21, 0
      %s261 = smul.addr %s258, 36
      %s262 = sadd.s32 %s260, %s261
      %s263 = smul.addr %s262, 4
      %s264 = scalar_lea.vmem %s1, %s263
      %p265 = scmp.lt.s32.totalorder %s19, 1
      %s266 = scalar_select %p265, %s19, 1
      %p267 = scmp.lt.s32.totalorder %s21, 0
      %s268 = scalar_select %p267, %s21, 0
      %s269 = sadd.s32 %s268, %s266
      %s270 = scalar_lea.vmem %s2, %s269
      %s271 = smul.u32 16, %s20
      %p272 = scmp.lt.s32.totalorder %s19, 1
      %s273 = scalar_select %p272, %s19, 1
      %p274 = scmp.lt.s32.totalorder %s271, 15
      %s275 = scalar_select %p274, %s271, 15
      %p276 = scmp.lt.s32.totalorder %s21, 0
      %s277 = scalar_select %p276, %s21, 0
      %s278 = sadd.s32 %s277, %s275
      %s279 = smul.addr %s273, 16
      %s280 = sadd.s32 %s278, %s279
      %s281 = smul.addr %s280, 4
      %s282 = scalar_lea.vmem %s3, %s281
      %s283 = smul.u32 16, %s20
      %v285 = vld [vmem:[%s255] sm:$0xff]
      %v286 = vld [vmem:[%s255 + $0x8] sm:$0xf]
      %v287 = vld [vmem:[%s255 + $0xc] sm:$0xff]
      %v288 = vld [vmem:[%s255 + $0x14] sm:$0xf]
      %v289 = vld [vmem:[%s255 + $0x18] sm:$0xff]
      %v290 = vld [vmem:[%s255 + $0x20] sm:$0xf]
      %v291 = vld [vmem:[%s255 + $0x24] sm:$0xff]
      %v292 = vld [vmem:[%s255 + $0x2c] sm:$0xf]
      %v293 = vld [vmem:[%s255 + $0x30] sm:$0xff]
      %v294 = vld [vmem:[%s255 + $0x38] sm:$0xf]
      %v295 = vld [vmem:[%s255 + $0x3c] sm:$0xff]
      %v296 = vld [vmem:[%s255 + $0x44] sm:$0xf]
      %v297 = vld [vmem:[%s255 + $0x48] sm:$0xff]
      %v298 = vld [vmem:[%s255 + $0x50] sm:$0xf]
      %v299 = vld [vmem:[%s255 + $0x54] sm:$0xff]
      %v300 = vld [vmem:[%s255 + $0x5c] sm:$0xf]
      %v301 = vld [vmem:[%s255 + $0x60] sm:$0xff]
      %v302 = vld [vmem:[%s255 + $0x68] sm:$0xf]
      %v303 = vld [vmem:[%s255 + $0x6c] sm:$0xff]
      %v304 = vld [vmem:[%s255 + $0x74] sm:$0xf]
      %v305 = vld [vmem:[%s255 + $0x78] sm:$0xff]
      %v306 = vld [vmem:[%s255 + $0x80] sm:$0xf]
      %v307 = vld [vmem:[%s255 + $0x84] sm:$0xff]
      %v308 = vld [vmem:[%s255 + $0x8c] sm:$0xf]
      %v309 = vld [vmem:[%s255 + $0x90] sm:$0xff]
      %v310 = vld [vmem:[%s255 + $0x98] sm:$0xf]
      %v311 = vld [vmem:[%s255 + $0x9c] sm:$0xff]
      %v312 = vld [vmem:[%s255 + $0xa4] sm:$0xf]
      %v313 = vld [vmem:[%s255 + $0xa8] sm:$0xff]
      %v314 = vld [vmem:[%s255 + $0xb0] sm:$0xf]
      %v315 = vld [vmem:[%s255 + $0xb4] sm:$0xff]
      %v316 = vld [vmem:[%s255 + $0xbc] sm:$0xf]
      %v317 = vld [vmem:[%s264] sm:$0xf]
      %v318 = vld [vmem:[%s264 + $0x4] sm:$0xf]
      %v319 = vld [vmem:[%s264 + $0x8] sm:$0xf]
      %v320 = vld [vmem:[%s264 + $0xc] sm:$0xf]
      %v321 = vld [vmem:[%s264 + $0x10] sm:$0xf]
      %v322 = vld [vmem:[%s264 + $0x14] sm:$0xf]
      %v323 = vld [vmem:[%s264 + $0x18] sm:$0xf]
      %v324 = vld [vmem:[%s264 + $0x1c] sm:$0xf]
      %v325 = vld [vmem:[%s264 + $0x20] sm:$0xf]
      %v326 = vld [vmem:[%s264 + $0x24] sm:$0xf]
      %v327 = vld [vmem:[%s264 + $0x28] sm:$0xf]
      %v328 = vld [vmem:[%s264 + $0x2c] sm:$0xf]
      %v329 = vld [vmem:[%s264 + $0x30] sm:$0xf]
      %v330 = vld [vmem:[%s264 + $0x34] sm:$0xf]
      %v331 = vld [vmem:[%s264 + $0x38] sm:$0xf]
      %v332 = vld [vmem:[%s264 + $0x3c] sm:$0xf]
      %v333 = vld [vmem:[%s264 + $0x40] sm:$0xf]
      %v334 = vld [vmem:[%s264 + $0x44] sm:$0xf]
      %v335 = vld [vmem:[%s264 + $0x48] sm:$0xf]
      %v336 = vld [vmem:[%s264 + $0x4c] sm:$0xf]
      %v337 = vld [vmem:[%s264 + $0x50] sm:$0xf]
      %v338 = vld [vmem:[%s264 + $0x54] sm:$0xf]
      %v339 = vld [vmem:[%s264 + $0x58] sm:$0xf]
      %v340 = vld [vmem:[%s264 + $0x5c] sm:$0xf]
      %v341 = vld [vmem:[%s264 + $0x60] sm:$0xf]
      %v342 = vld [vmem:[%s264 + $0x64] sm:$0xf]
      %v343 = vld [vmem:[%s264 + $0x68] sm:$0xf]
      %v344 = vld [vmem:[%s264 + $0x6c] sm:$0xf]
      %v345 = vld [vmem:[%s264 + $0x70] sm:$0xf]
      %v346 = vld [vmem:[%s264 + $0x74] sm:$0xf]
      %v347 = vld [vmem:[%s264 + $0x78] sm:$0xf]
      %v348 = vld [vmem:[%s264 + $0x7c] sm:$0xf]
      %v349 = vld [vmem:[%s264 + $0x80] sm:$0xf]
      %v350 = vld [vmem:[%s264 + $0x84] sm:$0xf]
      %v351 = vld [vmem:[%s264 + $0x88] sm:$0xf]
      %v352 = vld [vmem:[%s264 + $0x8c] sm:$0xf]
      %v353 = vld [vmem:[%s270] sm:$0x1]
      %v355 = vperm.slane %v353, 0
      %v389 = vunpack.c.l.b16 %v285
      %v390 = vunpack.c.h.b16 %v285
      %v391 = vunpack.c.l.b16 %v286
      %v392 = vunpack.c.l.b16 %v287
      %v393 = vunpack.c.h.b16 %v287
      %v394 = vunpack.c.l.b16 %v288
      %v395 = vunpack.c.l.b16 %v289
      %v396 = vunpack.c.h.b16 %v289
      %v397 = vunpack.c.l.b16 %v290
      %v398 = vunpack.c.l.b16 %v291
      %v399 = vunpack.c.h.b16 %v291
      %v400 = vunpack.c.l.b16 %v292
      %v401 = vunpack.c.l.b16 %v293
      %v402 = vunpack.c.h.b16 %v293
      %v403 = vunpack.c.l.b16 %v294
      %v404 = vunpack.c.l.b16 %v295
      %v405 = vunpack.c.h.b16 %v295
      %v406 = vunpack.c.l.b16 %v296
      %v407 = vunpack.c.l.b16 %v297
      %v408 = vunpack.c.h.b16 %v297
      %v409 = vunpack.c.l.b16 %v298
      %v410 = vunpack.c.l.b16 %v299
      %v411 = vunpack.c.h.b16 %v299
      %v412 = vunpack.c.l.b16 %v300
      %v413 = vunpack.c.l.b16 %v301
      %v414 = vunpack.c.h.b16 %v301
      %v415 = vunpack.c.l.b16 %v302
      %v416 = vunpack.c.l.b16 %v303
      %v417 = vunpack.c.h.b16 %v303
      %v418 = vunpack.c.l.b16 %v304
      %v419 = vunpack.c.l.b16 %v305
      %v420 = vunpack.c.h.b16 %v305
      %v421 = vunpack.c.l.b16 %v306
      %v422 = vunpack.c.l.b16 %v307
      %v423 = vunpack.c.h.b16 %v307
      %v424 = vunpack.c.l.b16 %v308
      %v425 = vunpack.c.l.b16 %v309
      %v426 = vunpack.c.h.b16 %v309
      %v427 = vunpack.c.l.b16 %v310
      %v428 = vunpack.c.l.b16 %v311
      %v429 = vunpack.c.h.b16 %v311
      %v430 = vunpack.c.l.b16 %v312
      %v431 = vunpack.c.l.b16 %v313
      %v432 = vunpack.c.h.b16 %v313
      %v433 = vunpack.c.l.b16 %v314
      %v434 = vunpack.c.l.b16 %v315
      %v435 = vunpack.c.h.b16 %v315
      %v436 = vunpack.c.l.b16 %v316
      %v437 = vpack.c.b16 %v392, %v389
      %v438 = vpack.c.b16 %v393, %v390
      %v439 = vpack.c.b16 %v394, %v391
      %v440 = vpack.c.b16 %v398, %v395
      %v441 = vpack.c.b16 %v399, %v396
      %v442 = vpack.c.b16 %v400, %v397
      %v443 = vpack.c.b16 %v404, %v401
      %v444 = vpack.c.b16 %v405, %v402
      %v445 = vpack.c.b16 %v406, %v403
      %v446 = vpack.c.b16 %v410, %v407
      %v447 = vpack.c.b16 %v411, %v408
      %v448 = vpack.c.b16 %v412, %v409
      %v449 = vpack.c.b16 %v416, %v413
      %v450 = vpack.c.b16 %v417, %v414
      %v451 = vpack.c.b16 %v418, %v415
      %v452 = vpack.c.b16 %v422, %v419
      %v453 = vpack.c.b16 %v423, %v420
      %v454 = vpack.c.b16 %v424, %v421
      %v455 = vpack.c.b16 %v428, %v425
      %v456 = vpack.c.b16 %v429, %v426
      %v457 = vpack.c.b16 %v430, %v427
      %v458 = vpack.c.b16 %v434, %v431
      %v459 = vpack.c.b16 %v435, %v432
      %v460 = vpack.c.b16 %v436, %v433
      %v513 = vunpack.c.l.b16 %v317
      %v514 = vunpack.c.l.b16 %v318
      %v515 = vunpack.c.l.b16 %v319
      %v516 = vunpack.c.l.b16 %v320
      %v517 = vunpack.c.l.b16 %v321
      %v518 = vunpack.c.l.b16 %v322
      %v519 = vunpack.c.l.b16 %v323
      %v520 = vunpack.c.l.b16 %v324
      %v521 = vunpack.c.l.b16 %v325
      %v522 = vunpack.c.l.b16 %v326
      %v523 = vunpack.c.l.b16 %v327
      %v524 = vunpack.c.l.b16 %v328
      %v525 = vunpack.c.l.b16 %v329
      %v526 = vunpack.c.l.b16 %v330
      %v527 = vunpack.c.l.b16 %v331
      %v528 = vunpack.c.l.b16 %v332
      %v529 = vunpack.c.l.b16 %v333
      %v530 = vunpack.c.l.b16 %v334
      %v531 = vunpack.c.l.b16 %v335
      %v532 = vunpack.c.l.b16 %v336
      %v533 = vunpack.c.l.b16 %v337
      %v534 = vunpack.c.l.b16 %v338
      %v535 = vunpack.c.l.b16 %v339
      %v536 = vunpack.c.l.b16 %v340
      %v537 = vunpack.c.l.b16 %v341
      %v538 = vunpack.c.l.b16 %v342
      %v539 = vunpack.c.l.b16 %v343
      %v540 = vunpack.c.l.b16 %v344
      %v541 = vunpack.c.l.b16 %v345
      %v542 = vunpack.c.l.b16 %v346
      %v543 = vunpack.c.l.b16 %v347
      %v544 = vunpack.c.l.b16 %v348
      %v545 = vunpack.c.l.b16 %v349
      %v546 = vunpack.c.l.b16 %v350
      %v547 = vunpack.c.l.b16 %v351
      %v548 = vunpack.c.l.b16 %v352
      %v549 = vpack.c.b16 %v514, %v513
      %v550 = vpack.c.b16 %v516, %v515
      %v551 = vpack.c.b16 %v518, %v517
      %v552 = vpack.c.b16 %v520, %v519
      %v553 = vpack.c.b16 %v522, %v521
      %v554 = vpack.c.b16 %v524, %v523
      %v555 = vpack.c.b16 %v526, %v525
      %v556 = vpack.c.b16 %v528, %v527
      %v557 = vpack.c.b16 %v530, %v529
      %v558 = vpack.c.b16 %v532, %v531
      %v559 = vpack.c.b16 %v534, %v533
      %v560 = vpack.c.b16 %v536, %v535
      %v561 = vpack.c.b16 %v538, %v537
      %v562 = vpack.c.b16 %v540, %v539
      %v563 = vpack.c.b16 %v542, %v541
      %v564 = vpack.c.b16 %v544, %v543
      %v565 = vpack.c.b16 %v546, %v545
      %v566 = vpack.c.b16 %v548, %v547
      %vm585 = vcmask 261120
      %v587 = vsel %vm585, %v439, 0
      %v590 = vsel %vm585, %v442, 0
      %v593 = vsel %vm585, %v445, 0
      %v596 = vsel %vm585, %v448, 0
      %v599 = vsel %vm585, %v451, 0
      %v602 = vsel %vm585, %v454, 0
      %v605 = vsel %vm585, %v457, 0
      %v608 = vsel %vm585, %v460, 0
      %610 = vmatpush.bf16.msra.mxu0 %v556
      %611 = vmatpush.bf16.msra.mxu0 %v555
      %612 = vmatpush.bf16.msra.mxu0 %v554
      %613 = vmatpush.bf16.msra.mxu0 %v553
      %614 = vmatpush.bf16.msra.mxu0 %v552
      %615 = vmatpush.bf16.msra.mxu0 %v551
      %616 = vmatpush.bf16.msra.mxu0 %v550
      %617 = vmatpush.bf16.msra.mxu0 %v549
      %618 = vmatmul.bf16.gmra.mxu0 %v437
      %v619 = vpop.f32.mrf.mxu0
      %v620 = vadd.f32 %v355, %v619
      %v621 = vpop.f32.mrf.mxu0
      %v622 = vadd.f32 %v355, %v621
      %623 = vmatmul.bf16.gmra.mxu0 %v440
      %v624 = vpop.f32.mrf.mxu0
      %v625 = vadd.f32 %v355, %v624
      %v626 = vpop.f32.mrf.mxu0
      %v627 = vadd.f32 %v355, %v626
      %628 = vmatmul.bf16.gmra.mxu0 %v443
      %v629 = vpop.f32.mrf.mxu0
      %v630 = vadd.f32 %v355, %v629
      %v631 = vpop.f32.mrf.mxu0
      %v632 = vadd.f32 %v355, %v631
      %633 = vmatmul.bf16.gmra.mxu0 %v446
      %v634 = vpop.f32.mrf.mxu0
      %v635 = vadd.f32 %v355, %v634
      %v636 = vpop.f32.mrf.mxu0
      %v637 = vadd.f32 %v355, %v636
      %638 = vmatmul.bf16.gmra.mxu0 %v449
      %v639 = vpop.f32.mrf.mxu0
      %v640 = vadd.f32 %v355, %v639
      %v641 = vpop.f32.mrf.mxu0
      %v642 = vadd.f32 %v355, %v641
      %643 = vmatmul.bf16.gmra.mxu0 %v452
      %v644 = vpop.f32.mrf.mxu0
      %v645 = vadd.f32 %v355, %v644
      %v646 = vpop.f32.mrf.mxu0
      %v647 = vadd.f32 %v355, %v646
      %648 = vmatmul.bf16.gmra.mxu0 %v455
      %v649 = vpop.f32.mrf.mxu0
      %v650 = vadd.f32 %v355, %v649
      %v651 = vpop.f32.mrf.mxu0
      %v652 = vadd.f32 %v355, %v651
      %653 = vmatmul.bf16.gmra.mxu0 %v458
      %v654 = vpop.f32.mrf.mxu0
      %v655 = vadd.f32 %v355, %v654
      %v656 = vpop.f32.mrf.mxu0
      %v657 = vadd.f32 %v355, %v656
      %658 = vdwg.mxu0
      %659 = vmatpush.bf16.msra.mxu0 %v564
      %660 = vmatpush.bf16.msra.mxu0 %v563
      %661 = vmatpush.bf16.msra.mxu0 %v562
      %662 = vmatpush.bf16.msra.mxu0 %v561
      %663 = vmatpush.bf16.msra.mxu0 %v560
      %664 = vmatpush.bf16.msra.mxu0 %v559
      %665 = vmatpush.bf16.msra.mxu0 %v558
      %666 = vmatpush.bf16.msra.mxu0 %v557
      %667 = vmatmul.bf16.gmra.mxu0 %v438
      %v668 = vpop.f32.mrf.mxu0
      %v669 = vadd.f32 %v620, %v668
      %v670 = vpop.f32.mrf.mxu0
      %v671 = vadd.f32 %v622, %v670
      %672 = vmatmul.bf16.gmra.mxu0 %v441
      %v673 = vpop.f32.mrf.mxu0
      %v674 = vadd.f32 %v625, %v673
      %v675 = vpop.f32.mrf.mxu0
      %v676 = vadd.f32 %v627, %v675
      %677 = vmatmul.bf16.gmra.mxu0 %v444
      %v678 = vpop.f32.mrf.mxu0
      %v679 = vadd.f32 %v630, %v678
      %v680 = vpop.f32.mrf.mxu0
      %v681 = vadd.f32 %v632, %v680
      %682 = vmatmul.bf16.gmra.mxu0 %v447
      %v683 = vpop.f32.mrf.mxu0
      %v684 = vadd.f32 %v635, %v683
      %v685 = vpop.f32.mrf.mxu0
      %v686 = vadd.f32 %v637, %v685
      %687 = vmatmul.bf16.gmra.mxu0 %v450
      %v688 = vpop.f32.mrf.mxu0
      %v689 = vadd.f32 %v640, %v688
      %v690 = vpop.f32.mrf.mxu0
      %v691 = vadd.f32 %v642, %v690
      %692 = vmatmul.bf16.gmra.mxu0 %v453
      %v693 = vpop.f32.mrf.mxu0
      %v694 = vadd.f32 %v645, %v693
      %v695 = vpop.f32.mrf.mxu0
      %v696 = vadd.f32 %v647, %v695
      %697 = vmatmul.bf16.gmra.mxu0 %v456
      %v698 = vpop.f32.mrf.mxu0
      %v699 = vadd.f32 %v650, %v698
      %v700 = vpop.f32.mrf.mxu0
      %v701 = vadd.f32 %v652, %v700
      %702 = vmatmul.bf16.gmra.mxu0 %v459
      %v703 = vpop.f32.mrf.mxu0
      %v704 = vadd.f32 %v655, %v703
      %v705 = vpop.f32.mrf.mxu0
      %v706 = vadd.f32 %v657, %v705
      %707 = vdwg.mxu0
      %708 = vmatpush.bf16.msra.mxu0 0
      %709 = vmatpush.bf16.msra.mxu0 0
      %710 = vmatpush.bf16.msra.mxu0 0
      %711 = vmatpush.bf16.msra.mxu0 0
      %712 = vmatpush.bf16.msra.mxu0 0
      %713 = vmatpush.bf16.msra.mxu0 0
      %714 = vmatpush.bf16.msra.mxu0 %v566
      %715 = vmatpush.bf16.msra.mxu0 %v565
      %716 = vmatmul.bf16.gmra.mxu0 %v587
      %v717 = vpop.f32.mrf.mxu0
      %v718 = vadd.f32 %v669, %v717
      %v719 = vpop.f32.mrf.mxu0
      %v720 = vadd.f32 %v671, %v719
      %721 = vmatmul.bf16.gmra.mxu0 %v590
      %v722 = vpop.f32.mrf.mxu0
      %v723 = vadd.f32 %v674, %v722
      %v724 = vpop.f32.mrf.mxu0
      %v725 = vadd.f32 %v676, %v724
      %726 = vmatmul.bf16.gmra.mxu0 %v593
      %v727 = vpop.f32.mrf.mxu0
      %v728 = vadd.f32 %v679, %v727
      %v729 = vpop.f32.mrf.mxu0
      %v730 = vadd.f32 %v681, %v729
      %731 = vmatmul.bf16.gmra.mxu0 %v596
      %v732 = vpop.f32.mrf.mxu0
      %v733 = vadd.f32 %v684, %v732
      %v734 = vpop.f32.mrf.mxu0
      %v735 = vadd.f32 %v686, %v734
      %736 = vmatmul.bf16.gmra.mxu0 %v599
      %v737 = vpop.f32.mrf.mxu0
      %v738 = vadd.f32 %v689, %v737
      %v739 = vpop.f32.mrf.mxu0
      %v740 = vadd.f32 %v691, %v739
      %741 = vmatmul.bf16.gmra.mxu0 %v602
      %v742 = vpop.f32.mrf.mxu0
      %v743 = vadd.f32 %v694, %v742
      %v744 = vpop.f32.mrf.mxu0
      %v745 = vadd.f32 %v696, %v744
      %746 = vmatmul.bf16.gmra.mxu0 %v605
      %v747 = vpop.f32.mrf.mxu0
      %v748 = vadd.f32 %v699, %v747
      %v749 = vpop.f32.mrf.mxu0
      %v750 = vadd.f32 %v701, %v749
      %751 = vmatmul.bf16.gmra.mxu0 %v608
      %v752 = vpop.f32.mrf.mxu0
      %v753 = vadd.f32 %v704, %v752
      %v754 = vpop.f32.mrf.mxu0
      %v755 = vadd.f32 %v706, %v754
      %756 = vdwg.mxu0
      %v757 = vmax.f32 %v718, 0.0
      %v758 = vmax.f32 %v720, 0.0
      %v759 = vmax.f32 %v723, 0.0
      %v760 = vmax.f32 %v725, 0.0
      %v761 = vmax.f32 %v728, 0.0
      %v762 = vmax.f32 %v730, 0.0
      %v763 = vmax.f32 %v733, 0.0
      %v764 = vmax.f32 %v735, 0.0
      %v765 = vmax.f32 %v738, 0.0
      %v766 = vmax.f32 %v740, 0.0
      %v767 = vmax.f32 %v743, 0.0
      %v768 = vmax.f32 %v745, 0.0
      %v769 = vmax.f32 %v748, 0.0
      %v770 = vmax.f32 %v750, 0.0
      %v771 = vmax.f32 %v753, 0.0
      %v772 = vmax.f32 %v755, 0.0
      %v773 = vpack.c.bf16 %v757, %v757
      %v774 = vpack.c.bf16 %v758, %v758
      %v775 = vpack.c.bf16 %v759, %v759
      %v776 = vpack.c.bf16 %v760, %v760
      %v777 = vpack.c.bf16 %v761, %v761
      %v778 = vpack.c.bf16 %v762, %v762
      %v779 = vpack.c.bf16 %v763, %v763
      %v780 = vpack.c.bf16 %v764, %v764
      %v781 = vpack.c.bf16 %v765, %v765
      %v782 = vpack.c.bf16 %v766, %v766
      %v783 = vpack.c.bf16 %v767, %v767
      %v784 = vpack.c.bf16 %v768, %v768
      %v785 = vpack.c.bf16 %v769, %v769
      %v786 = vpack.c.bf16 %v770, %v770
      %v787 = vpack.c.bf16 %v771, %v771
      %v788 = vpack.c.bf16 %v772, %v772
      %789 = vst [vmem:[%s282] sm:$0xf] %v773
      %790 = vst [vmem:[%s282 + $0x4] sm:$0xf] %v774
      %791 = vst [vmem:[%s282 + $0x8] sm:$0xf] %v775
      %792 = vst [vmem:[%s282 + $0xc] sm:$0xf] %v776
      %793 = vst [vmem:[%s282 + $0x10] sm:$0xf] %v777
      %794 = vst [vmem:[%s282 + $0x14] sm:$0xf] %v778
      %795 = vst [vmem:[%s282 + $0x18] sm:$0xf] %v779
      %796 = vst [vmem:[%s282 + $0x1c] sm:$0xf] %v780
      %797 = vst [vmem:[%s282 + $0x20] sm:$0xf] %v781
      %798 = vst [vmem:[%s282 + $0x24] sm:$0xf] %v782
      %799 = vst [vmem:[%s282 + $0x28] sm:$0xf] %v783
      %800 = vst [vmem:[%s282 + $0x2c] sm:$0xf] %v784
      %801 = vst [vmem:[%s282 + $0x30] sm:$0xf] %v785
      %802 = vst [vmem:[%s282 + $0x34] sm:$0xf] %v786
      %803 = vst [vmem:[%s282 + $0x38] sm:$0xf] %v787
      %804 = vst [vmem:[%s282 + $0x3c] sm:$0xf] %v788
      %s805 = smul.u32 16, %s20
      %p806 = scmp.lt.s32.totalorder %s19, 1
      %s807 = scalar_select %p806, %s19, 1
      %p808 = scmp.lt.s32.totalorder %s805, 15
      %s809 = scalar_select %p808, %s805, 15
      %p810 = scmp.lt.s32.totalorder %s21, 0
      %s811 = scalar_select %p810, %s21, 0
      %s812 = sadd.s32 %s811, %s809
      %s813 = smul.addr %s807, 16
      %s814 = sadd.s32 %s812, %s813
      %s815 = smul.addr %s814, 4
      %s816 = scalar_lea.vmem %s3, %s815
      // Predicated region
      $region33: #{hsi_lidar_couple_cross.5} parent=31 // pred_check
        %p817 = pneg %p139
      $region34: #{hsi_lidar_couple_cross.5} parent=31 // pred_check_branch
        %819 = sbr.rel (%p817) target = $region36
      $region35: #{hsi_lidar_couple_cross.5} parent=31 // pred_region
        %s820 = smul.u32 16, %s20
      $region36: #{hsi_lidar_couple_cross.5} parent=31 // pred_fallthru
        _
    $region32: #{hsi_lidar_couple_cross.5} parent=5 // pred_fallthru
      _
    %p821 = scmp.le.s32.totalorder 2, %s9
    // Predicated region
    $region37: #{hsi_lidar_couple_cross.5} parent=5 // pred_check
      %p822 = pneg %p821
    $region38: #{hsi_lidar_couple_cross.5} parent=5 // pred_check_branch
      %824 = sbr.rel (%p822) target = $region40
    $region39: #{hsi_lidar_couple_cross.5} parent=5 // pred_region
      %s825 = ssub.s32 %s9, 2
      // Predicated region
      $region41: #{hsi_lidar_couple_cross.5} parent=39 // pred_check
        %p826 = pneg %p145
      $region42: #{hsi_lidar_couple_cross.5} parent=39 // pred_check_branch
        %828 = sbr.rel (%p826) target = $region44
      $region43: #{hsi_lidar_couple_cross.5} parent=39 // pred_region
        %s829 = smul.u32 16, %s23
        %p830 = scmp.lt.s32.totalorder %s22, 1
        %s831 = scalar_select %p830, %s22, 1
        %p832 = scmp.lt.s32.totalorder %s829, 15
        %s833 = scalar_select %p832, %s829, 15
        %p834 = scmp.lt.s32.totalorder %s24, 0
        %s835 = scalar_select %p834, %s24, 0
        %s836 = sadd.s32 %s835, %s833
        %s837 = smul.addr %s831, 16
        %s838 = sadd.s32 %s836, %s837
        %s839 = smul.addr %s838, 4
        %s840 = scalar_lea.vmem %s3, %s839
      $region44: #{hsi_lidar_couple_cross.5} parent=39 // pred_fallthru
        _
    $region40: #{hsi_lidar_couple_cross.5} parent=5 // pred_fallthru
      _
  $region6: #{hsi_lidar_couple_cross.5} parent=0 // loop_footer
    %s13 = sadd.s32 1, %s9
  $region7: #{hsi_lidar_couple_cross.5} parent=0 // loop_footer_branch
    %8 = sbr.rel target = $region3
  $region8: #{hsi_lidar_couple_cross.5} parent=0 // loop_exit
    _

// kernel: squeeze.11
$region0: #{squeeze.11}
  %s0 = inlined_call_operand.vmem [shape: bf16[1,32,256], index: 0, kind: input, shape index: {}]
  %s1 = inlined_call_operand.vmem [shape: bf16[2,4,4,256], index: 1, kind: output, shape index: {}]
  $region1: #{squeeze.11} parent=0
    #allocation0 [shape = 'u8[65536]{0}', space=vmem, size = 0x10000, scoped, tag = 'scoped mem for output reshape']
    #allocation1 [shape = 'u8[32768]{0}', space=vmem, size = 0x8000, scoped, tag = 'scoped mem for input reshape']
    %s3 = ssub.s32 256, 1
    %s4 = scalar_lea.vmem %s0, 28
    %s5 = sshrl.u32 %s3, 1
    %s6 = sor.u32 %s3, %s5
    %s7 = sand.u32 %s6, 85
    %s8 = sshrl.u32 %s7, 1
    %s9 = sor.u32 %s7, %s8
    %s10 = sand.u32 51, %s9
    %s11 = sshrl.u32 %s10, 2
    %s12 = sor.u32 %s10, %s11
    %s13 = sand.u32 15, %s12
    %v14 = vld [vmem:[%s4] sm:%s13]
    %v15 = vunpack.c.l.bf16 %v14
    %v16 = vunpack.c.h.bf16 %v14
    %s17 = scalar_lea.vmem [#allocation1], 56
    %18 = vst [vmem:[%s17] sm:%s3] %v15
    %s19 = scalar_lea.vmem %s0, 24
    %s20 = sshrl.u32 %s3, 1
    %s21 = sor.u32 %s3, %s20
    %s22 = sand.u32 %s21, 85
    %s23 = sshrl.u32 %s22, 1
    %s24 = sor.u32 %s22, %s23
    %s25 = sand.u32 51, %s24
    %s26 = sshrl.u32 %s25, 2
    %s27 = sor.u32 %s25, %s26
    %s28 = sand.u32 15, %s27
    %v29 = vld [vmem:[%s19] sm:%s28]
    %v30 = vunpack.c.l.bf16 %v29
    %v31 = vunpack.c.h.bf16 %v29
    %s32 = scalar_lea.vmem [#allocation1], 48
    %33 = vst [vmem:[%s32] sm:%s3] %v30
    %s34 = scalar_lea.vmem %s0, 20
    %s35 = sshrl.u32 %s3, 1
    %s36 = sor.u32 %s3, %s35
    %s37 = sand.u32 %s36, 85
    %s38 = sshrl.u32 %s37, 1
    %s39 = sor.u32 %s37, %s38
    %s40 = sand.u32 51, %s39
    %s41 = sshrl.u32 %s40, 2
    %s42 = sor.u32 %s40, %s41
    %s43 = sand.u32 15, %s42
    %v44 = vld [vmem:[%s34] sm:%s43]
    %v45 = vunpack.c.l.bf16 %v44
    %v46 = vunpack.c.h.bf16 %v44
    %s47 = scalar_lea.vmem [#allocation1], 40
    %48 = vst [vmem:[%s47] sm:%s3] %v45
    %s49 = scalar_lea.vmem %s0, 16
    %s50 = sshrl.u32 %s3, 1
    %s51 = sor.u32 %s3, %s50
    %s52 = sand.u32 %s51, 85
    %s53 = sshrl.u32 %s52, 1
    %s54 = sor.u32 %s52, %s53
    %s55 = sand.u32 51, %s54
    %s56 = sshrl.u32 %s55, 2
    %s57 = sor.u32 %s55, %s56
    %s58 = sand.u32 15, %s57
    %v59 = vld [vmem:[%s49] sm:%s58]
    %v60 = vunpack.c.l.bf16 %v59
    %v61 = vunpack.c.h.bf16 %v59
    %s62 = scalar_lea.vmem [#allocation1], 32
    %63 = vst [vmem:[%s62] sm:%s3] %v60
    %s64 = scalar_lea.vmem %s0, 12
    %s65 = sshrl.u32 %s3, 1
    %s66 = sor.u32 %s3, %s65
    %s67 = sand.u32 %s66, 85
    %s68 = sshrl.u32 %s67, 1
    %s69 = sor.u32 %s67, %s68
    %s70 = sand.u32 51, %s69
    %s71 = sshrl.u32 %s70, 2
    %s72 = sor.u32 %s70, %s71
    %s73 = sand.u32 15, %s72
    %v74 = vld [vmem:[%s64] sm:%s73]
    %v75 = vunpack.c.l.bf16 %v74
    %v76 = vunpack.c.h.bf16 %v74
    %s77 = scalar_lea.vmem [#allocation1], 24
    %78 = vst [vmem:[%s77] sm:%s3] %v75
    %s79 = scalar_lea.vmem %s0, 8
    %s80 = sshrl.u32 %s3, 1
    %s81 = sor.u32 %s3, %s80
    %s82 = sand.u32 %s81, 85
    %s83 = sshrl.u32 %s82, 1
    %s84 = sor.u32 %s82, %s83
    %s85 = sand.u32 51, %s84
    %s86 = sshrl.u32 %s85, 2
    %s87 = sor.u32 %s85, %s86
    %s88 = sand.u32 15, %s87
    %v89 = vld [vmem:[%s79] sm:%s88]
    %v90 = vunpack.c.l.bf16 %v89
    %v91 = vunpack.c.h.bf16 %v89
    %s92 = scalar_lea.vmem [#allocation1], 16
    %93 = vst [vmem:[%s92] sm:%s3] %v90
    %s94 = scalar_lea.vmem %s0, 4
    %s95 = sshrl.u32 %s3, 1
    %s96 = sor.u32 %s3, %s95
    %s97 = sand.u32 %s96, 85
    %s98 = sshrl.u32 %s97, 1
    %s99 = sor.u32 %s97, %s98
    %s100 = sand.u32 51, %s99
    %s101 = sshrl.u32 %s100, 2
    %s102 = sor.u32 %s100, %s101
    %s103 = sand.u32 15, %s102
    %v104 = vld [vmem:[%s94] sm:%s103]
    %v105 = vunpack.c.l.bf16 %v104
    %v106 = vunpack.c.h.bf16 %v104
    %s107 = scalar_lea.vmem [#allocation1], 8
    %108 = vst [vmem:[%s107] sm:%s3] %v105
    %s109 = sshrl.u32 %s3, 1
    %s110 = sor.u32 %s3, %s109
    %s111 = sand.u32 %s110, 85
    %s112 = sshrl.u32 %s111, 1
    %s113 = sor.u32 %s111, %s112
    %s114 = sand.u32 51, %s113
    %s115 = sshrl.u32 %s114, 2
    %s116 = sor.u32 %s114, %s115
    %s117 = sand.u32 15, %s116
    %v118 = vld [vmem:[%s0] sm:%s117]
    %v119 = vunpack.c.l.bf16 %v118
    %v120 = vunpack.c.h.bf16 %v118
    %121 = vst [vmem:[#allocation1] sm:%s3] %v119
    %v122 = vld [vmem:[#allocation1] sm:$0xff]
    %123 = vst [vmem:[#allocation0] sm:$0xf] %v122
    %s124 = scalar_lea.vmem [#allocation0], 12
    %125 = vst [vmem:[%s124] sm:$0xf0] %v122
    %s126 = scalar_lea.vmem [#allocation1], 8
    %v127 = vld [vmem:[%s126] sm:$0xff]
    %s128 = scalar_lea.vmem [#allocation0], 8
    %129 = vst [vmem:[%s128] sm:$0xf] %v127
    %s130 = scalar_lea.vmem [#allocation0], 20
    %131 = vst [vmem:[%s130] sm:$0xf0] %v127
    %s132 = scalar_lea.vmem [#allocation1], 16
    %v133 = vld [vmem:[%s132] sm:$0xff]
    %s134 = scalar_lea.vmem [#allocation0], 32
    %135 = vst [vmem:[%s134] sm:$0xf] %v133
    %s136 = scalar_lea.vmem [#allocation0], 44
    %137 = vst [vmem:[%s136] sm:$0xf0] %v133
    %s138 = scalar_lea.vmem [#allocation1], 24
    %v139 = vld [vmem:[%s138] sm:$0xff]
    %s140 = scalar_lea.vmem [#allocation0], 40
    %141 = vst [vmem:[%s140] sm:$0xf] %v139
    %s142 = scalar_lea.vmem [#allocation0], 52
    %143 = vst [vmem:[%s142] sm:$0xf0] %v139
    %s144 = scalar_lea.vmem [#allocation1], 32
    %v145 = vld [vmem:[%s144] sm:$0xff]
    %s146 = scalar_lea.vmem [#allocation0], 64
    %147 = vst [vmem:[%s146] sm:$0xf] %v145
    %s148 = scalar_lea.vmem [#allocation0], 76
    %149 = vst [vmem:[%s148] sm:$0xf0] %v145
    %s150 = scalar_lea.vmem [#allocation1], 40
    %v151 = vld [vmem:[%s150] sm:$0xff]
    %s152 = scalar_lea.vmem [#allocation0], 72
    %153 = vst [vmem:[%s152] sm:$0xf] %v151
    %s154 = scalar_lea.vmem [#allocation0], 84
    %155 = vst [vmem:[%s154] sm:$0xf0] %v151
    %s156 = scalar_lea.vmem [#allocation1], 48
    %v157 = vld [vmem:[%s156] sm:$0xff]
    %s158 = scalar_lea.vmem [#allocation0], 96
    %159 = vst [vmem:[%s158] sm:$0xf] %v157
    %s160 = scalar_lea.vmem [#allocation0], 108
    %161 = vst [vmem:[%s160] sm:$0xf0] %v157
    %s162 = scalar_lea.vmem [#allocation1], 56
    %v163 = vld [vmem:[%s162] sm:$0xff]
    %s164 = scalar_lea.vmem [#allocation0], 104
    %165 = vst [vmem:[%s164] sm:$0xf] %v163
    %s166 = scalar_lea.vmem [#allocation0], 116
    %167 = vst [vmem:[%s166] sm:$0xf0] %v163
    %s169 = ssub.s32 16, 1
    %v170 = vld [vmem:[#allocation0] sm:%s169]
    %v171 = vpack.c.bf16 0.0, %v170
    %s173 = ssub.s32 4, 1
    %174 = vst [vmem:[%s1] sm:%s173] %v171
    %s175 = scalar_lea.vmem [#allocation0], 8
    %v176 = vld [vmem:[%s175] sm:%s169]
    %v177 = vpack.c.bf16 0.0, %v176
    %s179 = ssub.s32 4, 1
    %s180 = scalar_lea.vmem %s1, 2
    %181 = vst [vmem:[%s180] sm:%s179] %v177
    %s182 = scalar_lea.vmem [#allocation0], 16
    %v183 = vld [vmem:[%s182] sm:%s169]
    %v184 = vpack.c.bf16 0.0, %v183
    %s186 = ssub.s32 4, 1
    %s187 = scalar_lea.vmem %s1, 4
    %188 = vst [vmem:[%s187] sm:%s186] %v184
    %s189 = scalar_lea.vmem [#allocation0], 24
    %v190 = vld [vmem:[%s189] sm:%s169]
    %v191 = vpack.c.bf16 0.0, %v190
    %s193 = ssub.s32 4, 1
    %s194 = scalar_lea.vmem %s1, 6
    %195 = vst [vmem:[%s194] sm:%s193] %v191
    %s196 = scalar_lea.vmem [#allocation0], 32
    %v197 = vld [vmem:[%s196] sm:%s169]
    %v198 = vpack.c.bf16 0.0, %v197
    %s200 = ssub.s32 4, 1
    %s201 = scalar_lea.vmem %s1, 8
    %202 = vst [vmem:[%s201] sm:%s200] %v198
    %s203 = scalar_lea.vmem [#allocation0], 40
    %v204 = vld [vmem:[%s203] sm:%s169]
    %v205 = vpack.c.bf16 0.0, %v204
    %s207 = ssub.s32 4, 1
    %s208 = scalar_lea.vmem %s1, 10
    %209 = vst [vmem:[%s208] sm:%s207] %v205
    %s210 = scalar_lea.vmem [#allocation0], 48
    %v211 = vld [vmem:[%s210] sm:%s169]
    %v212 = vpack.c.bf16 0.0, %v211
    %s214 = ssub.s32 4, 1
    %s215 = scalar_lea.vmem %s1, 12
    %216 = vst [vmem:[%s215] sm:%s214] %v212
    %s217 = scalar_lea.vmem [#allocation0], 56
    %v218 = vld [vmem:[%s217] sm:%s169]
    %v219 = vpack.c.bf16 0.0, %v218
    %s221 = ssub.s32 4, 1
    %s222 = scalar_lea.vmem %s1, 14
    %223 = vst [vmem:[%s222] sm:%s221] %v219
    %s224 = scalar_lea.vmem [#allocation0], 64
    %v225 = vld [vmem:[%s224] sm:%s169]
    %v226 = vpack.c.bf16 0.0, %v225
    %s228 = ssub.s32 4, 1
    %s229 = scalar_lea.vmem %s1, 16
    %230 = vst [vmem:[%s229] sm:%s228] %v226
    %s231 = scalar_lea.vmem [#allocation0], 72
    %v232 = vld [vmem:[%s231] sm:%s169]
    %v233 = vpack.c.bf16 0.0, %v232
    %s235 = ssub.s32 4, 1
    %s236 = scalar_lea.vmem %s1, 18
    %237 = vst [vmem:[%s236] sm:%s235] %v233
    %s238 = scalar_lea.vmem [#allocation0], 80
    %v239 = vld [vmem:[%s238] sm:%s169]
    %v240 = vpack.c.bf16 0.0, %v239
    %s242 = ssub.s32 4, 1
    %s243 = scalar_lea.vmem %s1, 20
    %244 = vst [vmem:[%s243] sm:%s242] %v240
    %s245 = scalar_lea.vmem [#allocation0], 88
    %v246 = vld [vmem:[%s245] sm:%s169]
    %v247 = vpack.c.bf16 0.0, %v246
    %s249 = ssub.s32 4, 1
    %s250 = scalar_lea.vmem %s1, 22
    %251 = vst [vmem:[%s250] sm:%s249] %v247
    %s252 = scalar_lea.vmem [#allocation0], 96
    %v253 = vld [vmem:[%s252] sm:%s169]
    %v254 = vpack.c.bf16 0.0, %v253
    %s256 = ssub.s32 4, 1
    %s257 = scalar_lea.vmem %s1, 24
    %258 = vst [vmem:[%s257] sm:%s256] %v254
    %s259 = scalar_lea.vmem [#allocation0], 104
    %v260 = vld [vmem:[%s259] sm:%s169]
    %v261 = vpack.c.bf16 0.0, %v260
    %s263 = ssub.s32 4, 1
    %s264 = scalar_lea.vmem %s1, 26
    %265 = vst [vmem:[%s264] sm:%s263] %v261
    %s266 = scalar_lea.vmem [#allocation0], 112
    %v267 = vld [vmem:[%s266] sm:%s169]
    %v268 = vpack.c.bf16 0.0, %v267
    %s270 = ssub.s32 4, 1
    %s271 = scalar_lea.vmem %s1, 28
    %272 = vst [vmem:[%s271] sm:%s270] %v268
    %s273 = scalar_lea.vmem [#allocation0], 120
    %v274 = vld [vmem:[%s273] sm:%s169]
    %v275 = vpack.c.bf16 0.0, %v274
    %s277 = ssub.s32 4, 1
    %s278 = scalar_lea.vmem %s1, 30
    %279 = vst [vmem:[%s278] sm:%s277] %v275

// kernel: hsi_lidar_couple_cross.6
$region0: #{hsi_lidar_couple_cross.6}
  #allocation0 [shape = 'u32[]', space=smem, size = 0x4, offset = 0x4, fixed_abs, tag = 'smem constant byte address 0x4 - core index']
  #allocation1 [shape = 'u32[72,128]{1,0:T(1,128)}', space=vmem, size = 0x9000, scoped, tag = 'internal scratch']
  %s0 = inlined_call_operand.vmem [shape: bf16[2,32,576], index: 0, kind: input, shape index: {}]
  %s1 = inlined_call_operand.vmem [shape: bf16[1,576,256], index: 1, kind: input, shape index: {}]
  %s2 = inlined_call_operand.vmem [shape: f32[1,1,256], index: 2, kind: input, shape index: {}]
  %s3 = inlined_call_operand.vmem [shape: bf16[2,32,256], index: 3, kind: output, shape index: {}]
  %s4 = sld [smem:[#allocation0]]
  $region45: #{hsi_lidar_couple_cross.6} parent=0
    _
  %s6 = ssub.s32 1, %s4
  %s7 = scalar_select 0, %s6, %s4
  loop: start=0, step=1, limit=4
  $region2: #{hsi_lidar_couple_cross.6} parent=0 // loop_pre_header
    _
  $region3: #{hsi_lidar_couple_cross.6} parent=0 // loop_header
    %s9 = sphi 0, %s13
    %p10 = scmp.ge.s32.totalorder %s9, 4
    %s16 = sphi 0, %s35
    %s17 = sphi 0, %s31
    %s18 = sphi 0, %s27
    %s19 = sphi 0, %s16
    %s20 = sphi 0, %s17
    %s21 = sphi 0, %s18
    %s22 = sphi 0, %s19
    %s23 = sphi 0, %s20
    %s24 = sphi 0, %s21
    %s40 = sphi 0, %s42
    %s43 = sphi 0, %s40
    %s44 = sphi 0, %s43
    %s60 = sphi 0, %s44
    %s66 = sphi 0, %s68
    %s69 = sphi 0, %s66
    %s70 = sphi 0, %s69
    %s86 = sphi 0, %s70
    %s92 = sphi 0, %s94
    %s95 = sphi 0, %s92
    %s96 = sphi 0, %s95
    %s112 = sphi 0, %s96
    %s122 = sphi 0, %s124
    %s125 = sphi 0, %s122
    %s126 = sphi 0, %s125
    %s142 = sphi 0, %s126
  $region4: #{hsi_lidar_couple_cross.6} parent=0 // loop_header_branch
    %12 = sbr.rel (%p10) target = $region8
  $region5: #{hsi_lidar_couple_cross.6} parent=0 // loop_body
    %s14 = ssub.s32 %s9, 1
    %s15 = ssub.s32 %s9, 2
    %s25 = sadd.s32 1, %s18
    %p26 = scmp.ge.s32.totalorder %s25, 1
    %s27 = scalar_select %p26, 0, %s25
    %s28 = sadd.s32 1, %s17
    %s29 = scalar_select %p26, %s28, %s17
    %p30 = scmp.ge.s32.totalorder %s29, 1
    %s31 = scalar_select %p30, 0, %s29
    %s32 = sadd.s32 1, %s16
    %s33 = scalar_select %p30, %s32, %s16
    %p34 = scmp.ge.s32.totalorder %s33, 2
    %s35 = scalar_select %p34, 0, %s33
    %s36 = ssub.s32 %s16, %s35
    %s37 = ssub.s32 %s17, %s31
    %s38 = sor.u32 %s36, %s37
    %p39 = scmp.eq.s32.totalorder %s38, 0
    %s41 = sadd.s32 %s40, 1
    %s42 = scalar_select %p39, %s40, %s41
    %p45 = pneg %p39
    %p46 = scmp.eq.s32.totalorder %s9, 1
    %p47 = por %p45, %p46
    %p48 = scmp.ne.s32.totalorder %s40, %s43
    %p49 = scmp.eq.s32.totalorder %s9, 0
    %p50 = por %p48, %p49
    %p51 = scmp.ne.s32.totalorder %s40, %s43
    %p52 = scmp.eq.s32.totalorder %s14, 1
    %p53 = por %p51, %p52
    %p54 = scmp.ne.s32.totalorder %s43, %s44
    %p55 = scmp.eq.s32.totalorder %s14, 0
    %p56 = por %p54, %p55
    %p57 = scmp.ne.s32.totalorder %s43, %s44
    %p58 = scmp.eq.s32.totalorder %s15, 1
    %p59 = por %p57, %p58
    %p61 = scmp.ne.s32.totalorder %s44, %s60
    %p62 = scmp.eq.s32.totalorder %s15, 0
    %p63 = por %p61, %p62
    %s64 = ssub.s32 %s18, %s27
    %p65 = scmp.eq.s32.totalorder %s64, 0
    %s67 = sadd.s32 %s66, 1
    %s68 = scalar_select %p65, %s66, %s67
    %p71 = pneg %p65
    %p72 = scmp.eq.s32.totalorder %s9, 1
    %p73 = por %p71, %p72
    %p74 = scmp.ne.s32.totalorder %s66, %s69
    %p75 = scmp.eq.s32.totalorder %s9, 0
    %p76 = por %p74, %p75
    %p77 = scmp.ne.s32.totalorder %s66, %s69
    %p78 = scmp.eq.s32.totalorder %s14, 1
    %p79 = por %p77, %p78
    %p80 = scmp.ne.s32.totalorder %s69, %s70
    %p81 = scmp.eq.s32.totalorder %s14, 0
    %p82 = por %p80, %p81
    %p83 = scmp.ne.s32.totalorder %s69, %s70
    %p84 = scmp.eq.s32.totalorder %s15, 1
    %p85 = por %p83, %p84
    %p87 = scmp.ne.s32.totalorder %s70, %s86
    %p88 = scmp.eq.s32.totalorder %s15, 0
    %p89 = por %p87, %p88
    %s90 = ssub.s32 %s18, %s27
    %p91 = scmp.eq.s32.totalorder %s90, 0
    %s93 = sadd.s32 %s92, 1
    %s94 = scalar_select %p91, %s92, %s93
    %p97 = pneg %p91
    %p98 = scmp.eq.s32.totalorder %s9, 1
    %p99 = por %p97, %p98
    %p100 = scmp.ne.s32.totalorder %s92, %s95
    %p101 = scmp.eq.s32.totalorder %s9, 0
    %p102 = por %p100, %p101
    %p103 = scmp.ne.s32.totalorder %s92, %s95
    %p104 = scmp.eq.s32.totalorder %s14, 1
    %p105 = por %p103, %p104
    %p106 = scmp.ne.s32.totalorder %s95, %s96
    %p107 = scmp.eq.s32.totalorder %s14, 0
    %p108 = por %p106, %p107
    %p109 = scmp.ne.s32.totalorder %s95, %s96
    %p110 = scmp.eq.s32.totalorder %s15, 1
    %p111 = por %p109, %p110
    %p113 = scmp.ne.s32.totalorder %s96, %s112
    %p114 = scmp.eq.s32.totalorder %s15, 0
    %p115 = por %p113, %p114
    %s116 = ssub.s32 %s16, %s35
    %s117 = ssub.s32 %s17, %s31
    %s118 = sor.u32 %s116, %s117
    %s119 = ssub.s32 %s18, %s27
    %s120 = sor.u32 %s118, %s119
    %p121 = scmp.eq.s32.totalorder %s120, 0
    %s123 = sadd.s32 %s122, 1
    %s124 = scalar_select %p121, %s122, %s123
    %p127 = pneg %p121
    %p128 = scmp.eq.s32.totalorder %s9, 1
    %p129 = por %p127, %p128
    %p130 = scmp.ne.s32.totalorder %s122, %s125
    %p131 = scmp.eq.s32.totalorder %s9, 0
    %p132 = por %p130, %p131
    %p133 = scmp.ne.s32.totalorder %s122, %s125
    %p134 = scmp.eq.s32.totalorder %s14, 1
    %p135 = por %p133, %p134
    %p136 = scmp.ne.s32.totalorder %s125, %s126
    %p137 = scmp.eq.s32.totalorder %s14, 0
    %p138 = por %p136, %p137
    %p139 = scmp.ne.s32.totalorder %s125, %s126
    %p140 = scmp.eq.s32.totalorder %s15, 1
    %p141 = por %p139, %p140
    %p143 = scmp.ne.s32.totalorder %s126, %s142
    %p144 = scmp.eq.s32.totalorder %s15, 0
    %p145 = por %p143, %p144
    %p146 = scmp.le.s32.totalorder 1, %s9
    %p147 = scmp.lt.s32.totalorder %s9, 3
    %p148 = pnand %p146, %p147
    %p149 = pneg %p148
    // Predicated region
    $region9: #{hsi_lidar_couple_cross.6} parent=5 // pred_check
      _
    $region10: #{hsi_lidar_couple_cross.6} parent=5 // pred_check_branch
      %151 = sbr.rel (%p148) target = $region12
    $region11: #{hsi_lidar_couple_cross.6} parent=5 // pred_region
      %s152 = ssub.s32 %s9, 1
      // Predicated region
      $region13: #{hsi_lidar_couple_cross.6} parent=11 // pred_check
        %p153 = pneg %p82
      $region14: #{hsi_lidar_couple_cross.6} parent=11 // pred_check_branch
        %155 = sbr.rel (%p153) target = $region16
      $region15: #{hsi_lidar_couple_cross.6} parent=11 // pred_region
        %s156 = smul.u32 2, %s21
        %p157 = scmp.lt.s32.totalorder %s156, 1
        %s158 = scalar_select %p157, %s156, 1
        %s159 = smul.addr %s158, 4
        %s160 = scalar_lea.vmem %s1, %s159
        %s161 = smul.u32 2, %s21
      $region16: #{hsi_lidar_couple_cross.6} parent=11 // pred_fallthru
        _
      // Predicated region
      $region17: #{hsi_lidar_couple_cross.6} parent=11 // pred_check
        %p162 = pneg %p108
      $region18: #{hsi_lidar_couple_cross.6} parent=11 // pred_check_branch
        %164 = sbr.rel (%p162) target = $region20
      $region19: #{hsi_lidar_couple_cross.6} parent=11 // pred_region
        %s165 = smul.u32 2, %s21
        %p166 = scmp.lt.s32.totalorder %s165, 1
        %s167 = scalar_select %p166, %s165, 1
        %s168 = scalar_lea.vmem %s2, %s167
        %s169 = smul.u32 2, %s21
      $region20: #{hsi_lidar_couple_cross.6} parent=11 // pred_fallthru
        _
    $region12: #{hsi_lidar_couple_cross.6} parent=5 // pred_fallthru
      _
    %p170 = scmp.lt.s32.totalorder %s9, 2
    // Predicated region
    $region21: #{hsi_lidar_couple_cross.6} parent=5 // pred_check
      %p171 = pneg %p170
    $region22: #{hsi_lidar_couple_cross.6} parent=5 // pred_check_branch
      %173 = sbr.rel (%p171) target = $region24
    $region23: #{hsi_lidar_couple_cross.6} parent=5 // pred_region
      // Predicated region
      $region25: #{hsi_lidar_couple_cross.6} parent=23 // pred_check
        %p174 = pneg %p50
      $region26: #{hsi_lidar_couple_cross.6} parent=23 // pred_check_branch
        %176 = sbr.rel (%p174) target = $region28
      $region27: #{hsi_lidar_couple_cross.6} parent=23 // pred_region
        %s177 = smul.u32 4, %s17
        %p178 = scmp.lt.s32.totalorder %s16, 1
        %s179 = scalar_select %p178, %s16, 1
        %p180 = scmp.lt.s32.totalorder %s177, 3
        %s181 = scalar_select %p180, %s177, 3
        %s182 = smul.addr %s181, 5
        %s183 = smul.addr %s179, 20
        %s184 = sadd.s32 %s182, %s183
        %s185 = smul.addr %s184, 4
        %s186 = scalar_lea.vmem %s0, %s185
        %s187 = smul.u32 4, %s17
      $region28: #{hsi_lidar_couple_cross.6} parent=23 // pred_fallthru
        _
    $region24: #{hsi_lidar_couple_cross.6} parent=5 // pred_fallthru
      _
    %p188 = scmp.le.s32.totalorder 1, %s9
    %p189 = scmp.lt.s32.totalorder %s9, 3
    %p190 = pnand %p188, %p189
    %p191 = pneg %p190
    // Predicated region
    $region29: #{hsi_lidar_couple_cross.6} parent=5 // pred_check
      _
    $region30: #{hsi_lidar_couple_cross.6} parent=5 // pred_check_branch
      %193 = sbr.rel (%p190) target = $region32
    $region31: #{hsi_lidar_couple_cross.6} parent=5 // pred_region
      %s194 = ssub.s32 %s9, 1
      %s195 = smul.u32 4, %s20
      %p196 = scmp.lt.s32.totalorder %s19, 1
      %s197 = scalar_select %p196, %s19, 1
      %p198 = scmp.lt.s32.totalorder %s195, 3
      %s199 = scalar_select %p198, %s195, 3
      %s200 = smul.addr %s199, 5
      %s201 = smul.addr %s197, 20
      %s202 = sadd.s32 %s200, %s201
      %s203 = smul.addr %s202, 4
      %s204 = scalar_lea.vmem %s0, %s203
      %p205 = pneg %p56
      %p206 = pneg %p53
      %s207 = smul.u32 2, %s21
      %p208 = scmp.lt.s32.totalorder %s207, 1
      %s209 = scalar_select %p208, %s207, 1
      %s210 = smul.addr %s209, 4
      %s211 = scalar_lea.vmem %s1, %s210
      %p212 = pneg %p82
      %p213 = pneg %p79
      %s214 = smul.u32 2, %s21
      %p215 = scmp.lt.s32.totalorder %s214, 1
      %s216 = scalar_select %p215, %s214, 1
      %s217 = scalar_lea.vmem %s2, %s216
      %p218 = pneg %p108
      %p219 = pneg %p105
      %p220 = pneg %p138
      %p221 = pneg %p135
      %s222 = smul.u32 4, %s20
      %s223 = smul.u32 2, %s21
      %p224 = scmp.lt.s32.totalorder %s19, 1
      %s225 = scalar_select %p224, %s19, 1
      %p226 = scmp.lt.s32.totalorder %s222, 3
      %s227 = scalar_select %p226, %s222, 3
      %p228 = scmp.lt.s32.totalorder %s223, 1
      %s229 = scalar_select %p228, %s223, 1
      %s230 = smul.addr %s227, 2
      %s231 = sadd.s32 %s229, %s230
      %s232 = smul.addr %s225, 8
      %s233 = sadd.s32 %s231, %s232
      %s234 = smul.addr %s233, 4
      %s235 = scalar_lea.vmem %s3, %s234
      %s236 = smul.u32 4, %s20
      %p237 = scmp.lt.s32.totalorder %s19, 1
      %s238 = scalar_select %p237, %s19, 1
      %p239 = scmp.lt.s32.totalorder %s236, 3
      %s240 = scalar_select %p239, %s236, 3
      %s241 = smul.addr %s240, 5
      %s242 = smul.addr %s238, 20
      %s243 = sadd.s32 %s241, %s242
      %s244 = smul.addr %s243, 4
      %s245 = scalar_lea.vmem %s0, %s244
      %s246 = smul.u32 4, %s20
      %s247 = smul.u32 2, %s21
      %p248 = scmp.lt.s32.totalorder %s247, 1
      %s249 = scalar_select %p248, %s247, 1
      %s250 = smul.addr %s249, 4
      %s251 = scalar_lea.vmem %s1, %s250
      %s252 = smul.u32 2, %s21
      %s253 = smul.u32 2, %s21
      %p254 = scmp.lt.s32.totalorder %s253, 1
      %s255 = scalar_select %p254, %s253, 1
      %s256 = scalar_lea.vmem %s2, %s255
      %s257 = smul.u32 2, %s21
      %s258 = smul.u32 4, %s20
      %s259 = smul.u32 2, %s21
      %p260 = scmp.lt.s32.totalorder %s19, 1
      %s261 = scalar_select %p260, %s19, 1
      %p262 = scmp.lt.s32.totalorder %s258, 3
      %s263 = scalar_select %p262, %s258, 3
      %p264 = scmp.lt.s32.totalorder %s259, 1
      %s265 = scalar_select %p264, %s259, 1
      %s266 = smul.addr %s263, 2
      %s267 = sadd.s32 %s265, %s266
      %s268 = smul.addr %s261, 8
      %s269 = sadd.s32 %s267, %s268
      %s270 = smul.addr %s269, 4
      %s271 = scalar_lea.vmem %s3, %s270
      %s272 = smul.u32 4, %s20
      %s273 = smul.u32 2, %s21
      %v275 = vld [vmem:[%s245] sm:$0xff]
      %v276 = vld [vmem:[%s245 + $0x8] sm:$0xff]
      %v277 = vld [vmem:[%s245 + $0x10] sm:$0xf]
      %v278 = vld [vmem:[%s245 + $0x14] sm:$0xff]
      %v279 = vld [vmem:[%s245 + $0x1c] sm:$0xff]
      %v280 = vld [vmem:[%s245 + $0x24] sm:$0xf]
      %v281 = vld [vmem:[%s245 + $0x28] sm:$0xff]
      %v282 = vld [vmem:[%s245 + $0x30] sm:$0xff]
      %v283 = vld [vmem:[%s245 + $0x38] sm:$0xf]
      %v284 = vld [vmem:[%s245 + $0x3c] sm:$0xff]
      %v285 = vld [vmem:[%s245 + $0x44] sm:$0xff]
      %v286 = vld [vmem:[%s245 + $0x4c] sm:$0xf]
      %v287 = vld [vmem:[%s251] sm:$0xff]
      %v288 = vld [vmem:[%s251 + $0x8] sm:$0xff]
      %v289 = vld [vmem:[%s251 + $0x10] sm:$0xff]
      %v290 = vld [vmem:[%s251 + $0x18] sm:$0xff]
      %v291 = vld [vmem:[%s251 + $0x20] sm:$0xff]
      %v292 = vld [vmem:[%s251 + $0x28] sm:$0xff]
      %v293 = vld [vmem:[%s251 + $0x30] sm:$0xff]
      %v294 = vld [vmem:[%s251 + $0x38] sm:$0xff]
      %v295 = vld [vmem:[%s251 + $0x40] sm:$0xff]
      %v296 = vld [vmem:[%s251 + $0x48] sm:$0xff]
      %v297 = vld [vmem:[%s251 + $0x50] sm:$0xff]
      %v298 = vld [vmem:[%s251 + $0x58] sm:$0xff]
      %v299 = vld [vmem:[%s251 + $0x60] sm:$0xff]
      %v300 = vld [vmem:[%s251 + $0x68] sm:$0xff]
      %v301 = vld [vmem:[%s251 + $0x70] sm:$0xff]
      %v302 = vld [vmem:[%s251 + $0x78] sm:$0xff]
      %v303 = vld [vmem:[%s251 + $0x80] sm:$0xff]
      %v304 = vld [vmem:[%s251 + $0x88] sm:$0xff]
      %v305 = vld [vmem:[%s251 + $0x90] sm:$0xff]
      %v306 = vld [vmem:[%s251 + $0x98] sm:$0xff]
      %v307 = vld [vmem:[%s251 + $0xa0] sm:$0xff]
      %v308 = vld [vmem:[%s251 + $0xa8] sm:$0xff]
      %v309 = vld [vmem:[%s251 + $0xb0] sm:$0xff]
      %v310 = vld [vmem:[%s251 + $0xb8] sm:$0xff]
      %v311 = vld [vmem:[%s251 + $0xc0] sm:$0xff]
      %v312 = vld [vmem:[%s251 + $0xc8] sm:$0xff]
      %v313 = vld [vmem:[%s251 + $0xd0] sm:$0xff]
      %v314 = vld [vmem:[%s251 + $0xd8] sm:$0xff]
      %v315 = vld [vmem:[%s251 + $0xe0] sm:$0xff]
      %v316 = vld [vmem:[%s251 + $0xe8] sm:$0xff]
      %v317 = vld [vmem:[%s251 + $0xf0] sm:$0xff]
      %v318 = vld [vmem:[%s251 + $0xf8] sm:$0xff]
      %v319 = vld [vmem:[%s251 + $0x100] sm:$0xff]
      %v320 = vld [vmem:[%s251 + $0x108] sm:$0xff]
      %v321 = vld [vmem:[%s251 + $0x110] sm:$0xff]
      %v322 = vld [vmem:[%s251 + $0x118] sm:$0xff]
      %v323 = vld [vmem:[%s251 + $0x120] sm:$0xff]
      %v324 = vld [vmem:[%s251 + $0x128] sm:$0xff]
      %v325 = vld [vmem:[%s251 + $0x130] sm:$0xff]
      %v326 = vld [vmem:[%s251 + $0x138] sm:$0xff]
      %v327 = vld [vmem:[%s251 + $0x140] sm:$0xff]
      %v328 = vld [vmem:[%s251 + $0x148] sm:$0xff]
      %v329 = vld [vmem:[%s251 + $0x150] sm:$0xff]
      %v330 = vld [vmem:[%s251 + $0x158] sm:$0xff]
      %v331 = vld [vmem:[%s251 + $0x160] sm:$0xff]
      %v332 = vld [vmem:[%s251 + $0x168] sm:$0xff]
      %v333 = vld [vmem:[%s251 + $0x170] sm:$0xff]
      %v334 = vld [vmem:[%s251 + $0x178] sm:$0xff]
      %v335 = vld [vmem:[%s251 + $0x180] sm:$0xff]
      %v336 = vld [vmem:[%s251 + $0x188] sm:$0xff]
      %v337 = vld [vmem:[%s251 + $0x190] sm:$0xff]
      %v338 = vld [vmem:[%s251 + $0x198] sm:$0xff]
      %v339 = vld [vmem:[%s251 + $0x1a0] sm:$0xff]
      %v340 = vld [vmem:[%s251 + $0x1a8] sm:$0xff]
      %v341 = vld [vmem:[%s251 + $0x1b0] sm:$0xff]
      %v342 = vld [vmem:[%s251 + $0x1b8] sm:$0xff]
      %v343 = vld [vmem:[%s251 + $0x1c0] sm:$0xff]
      %v344 = vld [vmem:[%s251 + $0x1c8] sm:$0xff]
      %v345 = vld [vmem:[%s251 + $0x1d0] sm:$0xff]
      %v346 = vld [vmem:[%s251 + $0x1d8] sm:$0xff]
      %v347 = vld [vmem:[%s251 + $0x1e0] sm:$0xff]
      %v348 = vld [vmem:[%s251 + $0x1e8] sm:$0xff]
      %v349 = vld [vmem:[%s251 + $0x1f0] sm:$0xff]
      %v350 = vld [vmem:[%s251 + $0x1f8] sm:$0xff]
      %v351 = vld [vmem:[%s251 + $0x200] sm:$0xff]
      %v352 = vld [vmem:[%s251 + $0x208] sm:$0xff]
      %v353 = vld [vmem:[%s251 + $0x210] sm:$0xff]
      %v354 = vld [vmem:[%s251 + $0x218] sm:$0xff]
      %v355 = vld [vmem:[%s251 + $0x220] sm:$0xff]
      %v356 = vld [vmem:[%s251 + $0x228] sm:$0xff]
      %v357 = vld [vmem:[%s251 + $0x230] sm:$0xff]
      %v358 = vld [vmem:[%s251 + $0x238] sm:$0xff]
      %v359 = vld [vmem:[%s256] sm:$0x3]
      %v361 = vperm.slane %v359, 0
      %v362 = vperm.slane %v359, 1
      %v377 = vunpack.c.l.b16 %v275
      %v378 = vunpack.c.h.b16 %v275
      %v379 = vunpack.c.l.b16 %v276
      %v380 = vunpack.c.h.b16 %v276
      %v381 = vunpack.c.l.b16 %v277
      %v382 = vunpack.c.l.b16 %v278
      %v383 = vunpack.c.h.b16 %v278
      %v384 = vunpack.c.l.b16 %v279
      %v385 = vunpack.c.h.b16 %v279
      %v386 = vunpack.c.l.b16 %v280
      %v387 = vunpack.c.l.b16 %v281
      %v388 = vunpack.c.h.b16 %v281
      %v389 = vunpack.c.l.b16 %v282
      %v390 = vunpack.c.h.b16 %v282
      %v391 = vunpack.c.l.b16 %v283
      %v392 = vunpack.c.l.b16 %v284
      %v393 = vunpack.c.h.b16 %v284
      %v394 = vunpack.c.l.b16 %v285
      %v395 = vunpack.c.h.b16 %v285
      %v396 = vunpack.c.l.b16 %v286
      %v397 = vpack.c.b16 %v382, %v377
      %v398 = vpack.c.b16 %v383, %v378
      %v399 = vpack.c.b16 %v384, %v379
      %v400 = vpack.c.b16 %v385, %v380
      %v401 = vpack.c.b16 %v386, %v381
      %v402 = vpack.c.b16 %v392, %v387
      %v403 = vpack.c.b16 %v393, %v388
      %v404 = vpack.c.b16 %v394, %v389
      %v405 = vpack.c.b16 %v395, %v390
      %v406 = vpack.c.b16 %v396, %v391
      %v487 = vunpack.c.l.b16 %v287
      %v488 = vunpack.c.h.b16 %v287
      %v489 = vunpack.c.l.b16 %v288
      %v490 = vunpack.c.h.b16 %v288
      %v491 = vunpack.c.l.b16 %v289
      %v492 = vunpack.c.h.b16 %v289
      %v493 = vunpack.c.l.b16 %v290
      %v494 = vunpack.c.h.b16 %v290
      %v495 = vunpack.c.l.b16 %v291
      %v496 = vunpack.c.h.b16 %v291
      %v497 = vunpack.c.l.b16 %v292
      %v498 = vunpack.c.h.b16 %v292
      %v499 = vunpack.c.l.b16 %v293
      %v500 = vunpack.c.h.b16 %v293
      %v501 = vunpack.c.l.b16 %v294
      %v502 = vunpack.c.h.b16 %v294
      %v503 = vunpack.c.l.b16 %v295
      %v504 = vunpack.c.h.b16 %v295
      %v505 = vunpack.c.l.b16 %v296
      %v506 = vunpack.c.h.b16 %v296
      %v507 = vunpack.c.l.b16 %v297
      %v508 = vunpack.c.h.b16 %v297
      %v509 = vunpack.c.l.b16 %v298
      %v510 = vunpack.c.h.b16 %v298
      %v511 = vunpack.c.l.b16 %v299
      %v512 = vunpack.c.h.b16 %v299
      %v513 = vunpack.c.l.b16 %v300
      %v514 = vunpack.c.h.b16 %v300
      %v515 = vunpack.c.l.b16 %v301
      %v516 = vunpack.c.h.b16 %v301
      %v517 = vunpack.c.l.b16 %v302
      %v518 = vunpack.c.h.b16 %v302
      %v519 = vunpack.c.l.b16 %v303
      %v520 = vunpack.c.h.b16 %v303
      %v521 = vunpack.c.l.b16 %v304
      %v522 = vunpack.c.h.b16 %v304
      %v523 = vunpack.c.l.b16 %v305
      %v524 = vunpack.c.h.b16 %v305
      %v525 = vunpack.c.l.b16 %v306
      %v526 = vunpack.c.h.b16 %v306
      %v527 = vunpack.c.l.b16 %v307
      %v528 = vunpack.c.h.b16 %v307
      %v529 = vunpack.c.l.b16 %v308
      %v530 = vunpack.c.h.b16 %v308
      %v531 = vunpack.c.l.b16 %v309
      %v532 = vunpack.c.h.b16 %v309
      %v533 = vunpack.c.l.b16 %v310
      %v534 = vunpack.c.h.b16 %v310
      %v535 = vunpack.c.l.b16 %v311
      %v536 = vunpack.c.h.b16 %v311
      %v537 = vunpack.c.l.b16 %v312
      %v538 = vunpack.c.h.b16 %v312
      %v539 = vunpack.c.l.b16 %v313
      %v540 = vunpack.c.h.b16 %v313
      %v541 = vunpack.c.l.b16 %v314
      %v542 = vunpack.c.h.b16 %v314
      %v543 = vunpack.c.l.b16 %v315
      %v544 = vunpack.c.h.b16 %v315
      %v545 = vunpack.c.l.b16 %v316
      %v546 = vunpack.c.h.b16 %v316
      %v547 = vunpack.c.l.b16 %v317
      %v548 = vunpack.c.h.b16 %v317
      %v549 = vunpack.c.l.b16 %v318
      %v550 = vunpack.c.h.b16 %v318
      %v551 = vunpack.c.l.b16 %v319
      %v552 = vunpack.c.h.b16 %v319
      %v553 = vunpack.c.l.b16 %v320
      %v554 = vunpack.c.h.b16 %v320
      %v555 = vunpack.c.l.b16 %v321
      %v556 = vunpack.c.h.b16 %v321
      %v557 = vunpack.c.l.b16 %v322
      %v558 = vunpack.c.h.b16 %v322
      %v559 = vunpack.c.l.b16 %v323
      %v560 = vunpack.c.h.b16 %v323
      %v561 = vunpack.c.l.b16 %v324
      %v562 = vunpack.c.h.b16 %v324
      %v563 = vunpack.c.l.b16 %v325
      %v564 = vunpack.c.h.b16 %v325
      %v565 = vunpack.c.l.b16 %v326
      %v566 = vunpack.c.h.b16 %v326
      %v567 = vunpack.c.l.b16 %v327
      %v568 = vunpack.c.h.b16 %v327
      %v569 = vunpack.c.l.b16 %v328
      %v570 = vunpack.c.h.b16 %v328
      %v571 = vunpack.c.l.b16 %v329
      %v572 = vunpack.c.h.b16 %v329
      %v573 = vunpack.c.l.b16 %v330
      %v574 = vunpack.c.h.b16 %v330
      %v575 = vunpack.c.l.b16 %v331
      %v576 = vunpack.c.h.b16 %v331
      %v577 = vunpack.c.l.b16 %v332
      %v578 = vunpack.c.h.b16 %v332
      %v579 = vunpack.c.l.b16 %v333
      %v580 = vunpack.c.h.b16 %v333
      %v581 = vunpack.c.l.b16 %v334
      %v582 = vunpack.c.h.b16 %v334
      %v583 = vunpack.c.l.b16 %v335
      %v584 = vunpack.c.h.b16 %v335
      %v585 = vunpack.c.l.b16 %v336
      %v586 = vunpack.c.h.b16 %v336
      %v587 = vunpack.c.l.b16 %v337
      %v588 = vunpack.c.h.b16 %v337
      %v589 = vunpack.c.l.b16 %v338
      %v590 = vunpack.c.h.b16 %v338
      %v591 = vunpack.c.l.b16 %v339
      %v592 = vunpack.c.h.b16 %v339
      %v593 = vunpack.c.l.b16 %v340
      %v594 = vunpack.c.h.b16 %v340
      %v595 = vunpack.c.l.b16 %v341
      %v596 = vunpack.c.h.b16 %v341
      %v597 = vunpack.c.l.b16 %v342
      %v598 = vunpack.c.h.b16 %v342
      %v599 = vunpack.c.l.b16 %v343
      %v600 = vunpack.c.h.b16 %v343
      %v601 = vunpack.c.l.b16 %v344
      %v602 = vunpack.c.h.b16 %v344
      %v603 = vunpack.c.l.b16 %v345
      %v604 = vunpack.c.h.b16 %v345
      %v605 = vunpack.c.l.b16 %v346
      %v606 = vunpack.c.h.b16 %v346
      %v607 = vunpack.c.l.b16 %v347
      %v608 = vunpack.c.h.b16 %v347
      %v609 = vunpack.c.l.b16 %v348
      %v610 = vunpack.c.h.b16 %v348
      %v611 = vunpack.c.l.b16 %v349
      %v612 = vunpack.c.h.b16 %v349
      %v613 = vunpack.c.l.b16 %v350
      %v614 = vunpack.c.h.b16 %v350
      %v615 = vunpack.c.l.b16 %v351
      %v616 = vunpack.c.h.b16 %v351
      %v617 = vunpack.c.l.b16 %v352
      %v618 = vunpack.c.h.b16 %v352
      %v619 = vunpack.c.l.b16 %v353
      %v620 = vunpack.c.h.b16 %v353
      %v621 = vunpack.c.l.b16 %v354
      %v622 = vunpack.c.h.b16 %v354
      %v623 = vunpack.c.l.b16 %v355
      %v624 = vunpack.c.h.b16 %v355
      %v625 = vunpack.c.l.b16 %v356
      %v626 = vunpack.c.h.b16 %v356
      %v627 = vunpack.c.l.b16 %v357
      %v628 = vunpack.c.h.b16 %v357
      %v629 = vunpack.c.l.b16 %v358
      %v630 = vunpack.c.h.b16 %v358
      %v631 = vpack.c.b16 %v489, %v487
      %v632 = vpack.c.b16 %v490, %v488
      %v633 = vpack.c.b16 %v493, %v491
      %v634 = vpack.c.b16 %v494, %v492
      %v635 = vpack.c.b16 %v497, %v495
      %v636 = vpack.c.b16 %v498, %v496
      %v637 = vpack.c.b16 %v501, %v499
      %v638 = vpack.c.b16 %v502, %v500
      %v639 = vpack.c.b16 %v505, %v503
      %v640 = vpack.c.b16 %v506, %v504
      %v641 = vpack.c.b16 %v509, %v507
      %v642 = vpack.c.b16 %v510, %v508
      %v643 = vpack.c.b16 %v513, %v511
      %v644 = vpack.c.b16 %v514, %v512
      %v645 = vpack.c.b16 %v517, %v515
      %v646 = vpack.c.b16 %v518, %v516
      %v647 = vpack.c.b16 %v521, %v519
      %v648 = vpack.c.b16 %v522, %v520
      %v649 = vpack.c.b16 %v525, %v523
      %v650 = vpack.c.b16 %v526, %v524
      %v651 = vpack.c.b16 %v529, %v527
      %v652 = vpack.c.b16 %v530, %v528
      %v653 = vpack.c.b16 %v533, %v531
      %v654 = vpack.c.b16 %v534, %v532
      %v655 = vpack.c.b16 %v537, %v535
      %v656 = vpack.c.b16 %v538, %v536
      %v657 = vpack.c.b16 %v541, %v539
      %v658 = vpack.c.b16 %v542, %v540
      %v659 = vpack.c.b16 %v545, %v543
      %v660 = vpack.c.b16 %v546, %v544
      %v661 = vpack.c.b16 %v549, %v547
      %v662 = vpack.c.b16 %v550, %v548
      %v663 = vpack.c.b16 %v553, %v551
      %v664 = vpack.c.b16 %v554, %v552
      %v665 = vpack.c.b16 %v557, %v555
      %v666 = vpack.c.b16 %v558, %v556
      %v667 = vpack.c.b16 %v561, %v559
      %v668 = vpack.c.b16 %v562, %v560
      %v669 = vpack.c.b16 %v565, %v563
      %v670 = vpack.c.b16 %v566, %v564
      %v671 = vpack.c.b16 %v569, %v567
      %v672 = vpack.c.b16 %v570, %v568
      %v673 = vpack.c.b16 %v573, %v571
      %v674 = vpack.c.b16 %v574, %v572
      %v675 = vpack.c.b16 %v577, %v575
      %v676 = vpack.c.b16 %v578, %v576
      %v677 = vpack.c.b16 %v581, %v579
      %v678 = vpack.c.b16 %v582, %v580
      %v679 = vpack.c.b16 %v585, %v583
      %v680 = vpack.c.b16 %v586, %v584
      %v681 = vpack.c.b16 %v589, %v587
      %v682 = vpack.c.b16 %v590, %v588
      %v683 = vpack.c.b16 %v593, %v591
      %v684 = vpack.c.b16 %v594, %v592
      %v685 = vpack.c.b16 %v597, %v595
      %v686 = vpack.c.b16 %v598, %v596
      %v687 = vpack.c.b16 %v601, %v599
      %v688 = vpack.c.b16 %v602, %v600
      %v689 = vpack.c.b16 %v605, %v603
      %v690 = vpack.c.b16 %v606, %v604
      %v691 = vpack.c.b16 %v609, %v607
      %v692 = vpack.c.b16 %v610, %v608
      %v693 = vpack.c.b16 %v613, %v611
      %v694 = vpack.c.b16 %v614, %v612
      %v695 = vpack.c.b16 %v617, %v615
      %v696 = vpack.c.b16 %v618, %v616
      %v697 = vpack.c.b16 %v621, %v619
      %v698 = vpack.c.b16 %v622, %v620
      %v699 = vpack.c.b16 %v625, %v623
      %v700 = vpack.c.b16 %v626, %v624
      %v701 = vpack.c.b16 %v629, %v627
      %v702 = vpack.c.b16 %v630, %v628
      %vm775 = vcmask 523264
      %v777 = vsel %vm775, %v401, 0
      %v780 = vsel %vm775, %v406, 0
      %782 = vmatpush.bf16.msra.mxu0 %v645
      %783 = vmatpush.bf16.msra.mxu0 %v643
      %784 = vmatpush.bf16.msra.mxu0 %v641
      %785 = vmatpush.bf16.msra.mxu0 %v639
      %786 = vmatpush.bf16.msra.mxu0 %v637
      %787 = vmatpush.bf16.msra.mxu0 %v635
      %788 = vmatpush.bf16.msra.mxu0 %v633
      %789 = vmatpush.bf16.msra.mxu0 %v631
      %790 = vmatmul.bf16.gmra.mxu0 %v397
      %v791 = vpop.f32.mrf.mxu0
      %v792 = vadd.f32 %v361, %v791
      %v793 = vpop.f32.mrf.mxu0
      %v794 = vadd.f32 %v361, %v793
      %795 = vmatmul.bf16.gmra.mxu0 %v402
      %v796 = vpop.f32.mrf.mxu0
      %v797 = vadd.f32 %v361, %v796
      %v798 = vpop.f32.mrf.mxu0
      %v799 = vadd.f32 %v361, %v798
      %800 = vdwg.mxu0
      %801 = vmatpush.bf16.msra.mxu0 %v661
      %802 = vmatpush.bf16.msra.mxu0 %v659
      %803 = vmatpush.bf16.msra.mxu0 %v657
      %804 = vmatpush.bf16.msra.mxu0 %v655
      %805 = vmatpush.bf16.msra.mxu0 %v653
      %806 = vmatpush.bf16.msra.mxu0 %v651
      %807 = vmatpush.bf16.msra.mxu0 %v649
      %808 = vmatpush.bf16.msra.mxu0 %v647
      %809 = vmatmul.bf16.gmra.mxu0 %v398
      %v810 = vpop.f32.mrf.mxu0
      %v811 = vadd.f32 %v792, %v810
      %v812 = vpop.f32.mrf.mxu0
      %v813 = vadd.f32 %v794, %v812
      %814 = vmatmul.bf16.gmra.mxu0 %v403
      %v815 = vpop.f32.mrf.mxu0
      %v816 = vadd.f32 %v797, %v815
      %v817 = vpop.f32.mrf.mxu0
      %v818 = vadd.f32 %v799, %v817
      %819 = vdwg.mxu0
      %820 = vmatpush.bf16.msra.mxu0 %v677
      %821 = vmatpush.bf16.msra.mxu0 %v675
      %822 = vmatpush.bf16.msra.mxu0 %v673
      %823 = vmatpush.bf16.msra.mxu0 %v671
      %824 = vmatpush.bf16.msra.mxu0 %v669
      %825 = vmatpush.bf16.msra.mxu0 %v667
      %826 = vmatpush.bf16.msra.mxu0 %v665
      %827 = vmatpush.bf16.msra.mxu0 %v663
      %828 = vmatmul.bf16.gmra.mxu0 %v399
      %v829 = vpop.f32.mrf.mxu0
      %v830 = vadd.f32 %v811, %v829
      %v831 = vpop.f32.mrf.mxu0
      %v832 = vadd.f32 %v813, %v831
      %833 = vmatmul.bf16.gmra.mxu0 %v404
      %v834 = vpop.f32.mrf.mxu0
      %v835 = vadd.f32 %v816, %v834
      %v836 = vpop.f32.mrf.mxu0
      %v837 = vadd.f32 %v818, %v836
      %838 = vdwg.mxu0
      %839 = vmatpush.bf16.msra.mxu0 %v693
      %840 = vmatpush.bf16.msra.mxu0 %v691
      %841 = vmatpush.bf16.msra.mxu0 %v689
      %842 = vmatpush.bf16.msra.mxu0 %v687
      %843 = vmatpush.bf16.msra.mxu0 %v685
      %844 = vmatpush.bf16.msra.mxu0 %v683
      %845 = vmatpush.bf16.msra.mxu0 %v681
      %846 = vmatpush.bf16.msra.mxu0 %v679
      %847 = vmatmul.bf16.gmra.mxu0 %v400
      %v848 = vpop.f32.mrf.mxu0
      %v849 = vadd.f32 %v830, %v848
      %v850 = vpop.f32.mrf.mxu0
      %v851 = vadd.f32 %v832, %v850
      %852 = vmatmul.bf16.gmra.mxu0 %v405
      %v853 = vpop.f32.mrf.mxu0
      %v854 = vadd.f32 %v835, %v853
      %v855 = vpop.f32.mrf.mxu0
      %v856 = vadd.f32 %v837, %v855
      %857 = vdwg.mxu0
      %858 = vmatpush.bf16.msra.mxu0 0
      %859 = vmatpush.bf16.msra.mxu0 0
      %860 = vmatpush.bf16.msra.mxu0 0
      %861 = vmatpush.bf16.msra.mxu0 0
      %862 = vmatpush.bf16.msra.mxu0 %v701
      %863 = vmatpush.bf16.msra.mxu0 %v699
      %864 = vmatpush.bf16.msra.mxu0 %v697
      %865 = vmatpush.bf16.msra.mxu0 %v695
      %866 = vmatmul.bf16.gmra.mxu0 %v777
      %v867 = vpop.f32.mrf.mxu0
      %v868 = vadd.f32 %v849, %v867
      %v869 = vpop.f32.mrf.mxu0
      %v870 = vadd.f32 %v851, %v869
      %871 = vmatmul.bf16.gmra.mxu0 %v780
      %v872 = vpop.f32.mrf.mxu0
      %v873 = vadd.f32 %v854, %v872
      %v874 = vpop.f32.mrf.mxu0
      %v875 = vadd.f32 %v856, %v874
      %876 = vdwg.mxu0
      %877 = vmatpush.bf16.msra.mxu0 %v646
      %878 = vmatpush.bf16.msra.mxu0 %v644
      %879 = vmatpush.bf16.msra.mxu0 %v642
      %880 = vmatpush.bf16.msra.mxu0 %v640
      %881 = vmatpush.bf16.msra.mxu0 %v638
      %882 = vmatpush.bf16.msra.mxu0 %v636
      %883 = vmatpush.bf16.msra.mxu0 %v634
      %884 = vmatpush.bf16.msra.mxu0 %v632
      %885 = vmatmul.bf16.gmra.mxu0 %v397
      %v886 = vpop.f32.mrf.mxu0
      %v887 = vadd.f32 %v362, %v886
      %v888 = vpop.f32.mrf.mxu0
      %v889 = vadd.f32 %v362, %v888
      %890 = vmatmul.bf16.gmra.mxu0 %v402
      %v891 = vpop.f32.mrf.mxu0
      %v892 = vadd.f32 %v362, %v891
      %v893 = vpop.f32.mrf.mxu0
      %v894 = vadd.f32 %v362, %v893
      %895 = vdwg.mxu0
      %896 = vmatpush.bf16.msra.mxu0 %v662
      %897 = vmatpush.bf16.msra.mxu0 %v660
      %898 = vmatpush.bf16.msra.mxu0 %v658
      %899 = vmatpush.bf16.msra.mxu0 %v656
      %900 = vmatpush.bf16.msra.mxu0 %v654
      %901 = vmatpush.bf16.msra.mxu0 %v652
      %902 = vmatpush.bf16.msra.mxu0 %v650
      %903 = vmatpush.bf16.msra.mxu0 %v648
      %904 = vmatmul.bf16.gmra.mxu0 %v398
      %v905 = vpop.f32.mrf.mxu0
      %v906 = vadd.f32 %v887, %v905
      %v907 = vpop.f32.mrf.mxu0
      %v908 = vadd.f32 %v889, %v907
      %909 = vmatmul.bf16.gmra.mxu0 %v403
      %v910 = vpop.f32.mrf.mxu0
      %v911 = vadd.f32 %v892, %v910
      %v912 = vpop.f32.mrf.mxu0
      %v913 = vadd.f32 %v894, %v912
      %914 = vdwg.mxu0
      %915 = vmatpush.bf16.msra.mxu0 %v678
      %916 = vmatpush.bf16.msra.mxu0 %v676
      %917 = vmatpush.bf16.msra.mxu0 %v674
      %918 = vmatpush.bf16.msra.mxu0 %v672
      %919 = vmatpush.bf16.msra.mxu0 %v670
      %920 = vmatpush.bf16.msra.mxu0 %v668
      %921 = vmatpush.bf16.msra.mxu0 %v666
      %922 = vmatpush.bf16.msra.mxu0 %v664
      %923 = vmatmul.bf16.gmra.mxu0 %v399
      %v924 = vpop.f32.mrf.mxu0
      %v925 = vadd.f32 %v906, %v924
      %v926 = vpop.f32.mrf.mxu0
      %v927 = vadd.f32 %v908, %v926
      %928 = vmatmul.bf16.gmra.mxu0 %v404
      %v929 = vpop.f32.mrf.mxu0
      %v930 = vadd.f32 %v911, %v929
      %v931 = vpop.f32.mrf.mxu0
      %v932 = vadd.f32 %v913, %v931
      %933 = vdwg.mxu0
      %934 = vmatpush.bf16.msra.mxu0 %v694
      %935 = vmatpush.bf16.msra.mxu0 %v692
      %936 = vmatpush.bf16.msra.mxu0 %v690
      %937 = vmatpush.bf16.msra.mxu0 %v688
      %938 = vmatpush.bf16.msra.mxu0 %v686
      %939 = vmatpush.bf16.msra.mxu0 %v684
      %940 = vmatpush.bf16.msra.mxu0 %v682
      %941 = vmatpush.bf16.msra.mxu0 %v680
      %942 = vmatmul.bf16.gmra.mxu0 %v400
      %v943 = vpop.f32.mrf.mxu0
      %v944 = vadd.f32 %v925, %v943
      %v945 = vpop.f32.mrf.mxu0
      %v946 = vadd.f32 %v927, %v945
      %947 = vmatmul.bf16.gmra.mxu0 %v405
      %v948 = vpop.f32.mrf.mxu0
      %v949 = vadd.f32 %v930, %v948
      %v950 = vpop.f32.mrf.mxu0
      %v951 = vadd.f32 %v932, %v950
      %952 = vdwg.mxu0
      %953 = vmatpush.bf16.msra.mxu0 0
      %954 = vmatpush.bf16.msra.mxu0 0
      %955 = vmatpush.bf16.msra.mxu0 0
      %956 = vmatpush.bf16.msra.mxu0 0
      %957 = vmatpush.bf16.msra.mxu0 %v702
      %958 = vmatpush.bf16.msra.mxu0 %v700
      %959 = vmatpush.bf16.msra.mxu0 %v698
      %960 = vmatpush.bf16.msra.mxu0 %v696
      %961 = vmatmul.bf16.gmra.mxu0 %v777
      %v962 = vpop.f32.mrf.mxu0
      %v963 = vadd.f32 %v944, %v962
      %v964 = vpop.f32.mrf.mxu0
      %v965 = vadd.f32 %v946, %v964
      %966 = vmatmul.bf16.gmra.mxu0 %v780
      %v967 = vpop.f32.mrf.mxu0
      %v968 = vadd.f32 %v949, %v967
      %v969 = vpop.f32.mrf.mxu0
      %v970 = vadd.f32 %v951, %v969
      %971 = vdwg.mxu0
      %v972 = vmax.f32 %v868, 0.0
      %v973 = vmax.f32 %v963, 0.0
      %v974 = vmax.f32 %v870, 0.0
      %v975 = vmax.f32 %v965, 0.0
      %v976 = vmax.f32 %v873, 0.0
      %v977 = vmax.f32 %v968, 0.0
      %v978 = vmax.f32 %v875, 0.0
      %v979 = vmax.f32 %v970, 0.0
      %v980 = vpack.c.bf16 %v973, %v972
      %v981 = vpack.c.bf16 %v975, %v974
      %v982 = vpack.c.bf16 %v977, %v976
      %v983 = vpack.c.bf16 %v979, %v978
      %984 = vst [vmem:[%s271] sm:$0xff] %v980
      %985 = vst [vmem:[%s271 + $0x8] sm:$0xff] %v981
      %986 = vst [vmem:[%s271 + $0x10] sm:$0xff] %v982
      %987 = vst [vmem:[%s271 + $0x18] sm:$0xff] %v983
      %s988 = smul.u32 4, %s20
      %s989 = smul.u32 2, %s21
      %p990 = scmp.lt.s32.totalorder %s19, 1
      %s991 = scalar_select %p990, %s19, 1
      %p992 = scmp.lt.s32.totalorder %s988, 3
      %s993 = scalar_select %p992, %s988, 3
      %p994 = scmp.lt.s32.totalorder %s989, 1
      %s995 = scalar_select %p994, %s989, 1
      %s996 = smul.addr %s993, 2
      %s997 = sadd.s32 %s995, %s996
      %s998 = smul.addr %s991, 8
      %s999 = sadd.s32 %s997, %s998
      %s1000 = smul.addr %s999, 4
      %s1001 = scalar_lea.vmem %s3, %s1000
      // Predicated region
      $region33: #{hsi_lidar_couple_cross.6} parent=31 // pred_check
        %p1002 = pneg %p135
      $region34: #{hsi_lidar_couple_cross.6} parent=31 // pred_check_branch
        %1004 = sbr.rel (%p1002) target = $region36
      $region35: #{hsi_lidar_couple_cross.6} parent=31 // pred_region
        %s1005 = smul.u32 4, %s20
        %s1006 = smul.u32 2, %s21
      $region36: #{hsi_lidar_couple_cross.6} parent=31 // pred_fallthru
        _
    $region32: #{hsi_lidar_couple_cross.6} parent=5 // pred_fallthru
      _
    %p1007 = scmp.le.s32.totalorder 2, %s9
    // Predicated region
    $region37: #{hsi_lidar_couple_cross.6} parent=5 // pred_check
      %p1008 = pneg %p1007
    $region38: #{hsi_lidar_couple_cross.6} parent=5 // pred_check_branch
      %1010 = sbr.rel (%p1008) target = $region40
    $region39: #{hsi_lidar_couple_cross.6} parent=5 // pred_region
      %s1011 = ssub.s32 %s9, 2
      // Predicated region
      $region41: #{hsi_lidar_couple_cross.6} parent=39 // pred_check
        %p1012 = pneg %p141
      $region42: #{hsi_lidar_couple_cross.6} parent=39 // pred_check_branch
        %1014 = sbr.rel (%p1012) target = $region44
      $region43: #{hsi_lidar_couple_cross.6} parent=39 // pred_region
        %s1015 = smul.u32 4, %s23
        %s1016 = smul.u32 2, %s24
        %p1017 = scmp.lt.s32.totalorder %s22, 1
        %s1018 = scalar_select %p1017, %s22, 1
        %p1019 = scmp.lt.s32.totalorder %s1015, 3
        %s1020 = scalar_select %p1019, %s1015, 3
        %p1021 = scmp.lt.s32.totalorder %s1016, 1
        %s1022 = scalar_select %p1021, %s1016, 1
        %s1023 = smul.addr %s1020, 2
        %s1024 = sadd.s32 %s1022, %s1023
        %s1025 = smul.addr %s1018, 8
        %s1026 = sadd.s32 %s1024, %s1025
        %s1027 = smul.addr %s1026, 4
        %s1028 = scalar_lea.vmem %s3, %s1027
      $region44: #{hsi_lidar_couple_cross.6} parent=39 // pred_fallthru
        _
    $region40: #{hsi_lidar_couple_cross.6} parent=5 // pred_fallthru
      _
  $region6: #{hsi_lidar_couple_cross.6} parent=0 // loop_footer
    %s13 = sadd.s32 1, %s9
  $region7: #{hsi_lidar_couple_cross.6} parent=0 // loop_footer_branch
    %8 = sbr.rel target = $region3
  $region8: #{hsi_lidar_couple_cross.6} parent=0 // loop_exit
    _

// kernel: hsi_lidar_couple_cross.7
$region0: #{hsi_lidar_couple_cross.7}
  #allocation0 [shape = 'u32[]', space=smem, size = 0x4, offset = 0x4, fixed_abs, tag = 'smem constant byte address 0x4 - core index']
  #allocation1 [shape = 'u32[72,128]{1,0:T(1,128)}', space=vmem, size = 0x9000, scoped, tag = 'internal scratch']
  %s0 = inlined_call_operand.vmem [shape: bf16[6,16,2304], index: 0, kind: input, shape index: {}]
  %s1 = inlined_call_operand.vmem [shape: bf16[2304,128], index: 1, kind: input, shape index: {}]
  %s2 = inlined_call_operand.vmem [shape: f32[1,128], index: 2, kind: input, shape index: {}]
  %s3 = inlined_call_operand.vmem [shape: f32[6,1,128], index: 3, kind: output, shape index: {}]
  %s4 = sld [smem:[#allocation0]]
  $region45: #{hsi_lidar_couple_cross.7} parent=0
    _
  %s6 = ssub.s32 1, %s4
  %s7 = scalar_select 0, %s6, %s4
  loop: start=0, step=1, limit=8
  $region2: #{hsi_lidar_couple_cross.7} parent=0 // loop_pre_header
    _
  $region3: #{hsi_lidar_couple_cross.7} parent=0 // loop_header
    %s9 = sphi 0, %s13
    %p10 = scmp.ge.s32.totalorder %s9, 8
    %s19 = sphi 0, %s21
    %s22 = sphi 0, %s19
    %s23 = sphi 0, %s22
    %s39 = sphi 0, %s23
    %s43 = sphi 0, %s43
    %s45 = sphi 0, %s43
    %s46 = sphi 0, %s45
    %s60 = sphi 0, %s46
    %s64 = sphi 0, %s64
    %s66 = sphi 0, %s64
    %s67 = sphi 0, %s66
    %s81 = sphi 0, %s67
    %s87 = sphi 0, %s89
    %s90 = sphi 0, %s87
    %s91 = sphi 0, %s90
    %s107 = sphi 0, %s91
  $region4: #{hsi_lidar_couple_cross.7} parent=0 // loop_header_branch
    %12 = sbr.rel (%p10) target = $region8
  $region5: #{hsi_lidar_couple_cross.7} parent=0 // loop_body
    %s14 = ssub.s32 %s9, 1
    %s15 = ssub.s32 %s9, 2
    %s16 = sadd.s32 %s9, 1
    %s17 = ssub.s32 %s9, %s16
    %p18 = scmp.eq.s32.totalorder %s17, 0
    %s20 = sadd.s32 %s19, 1
    %s21 = scalar_select %p18, %s19, %s20
    %p24 = pneg %p18
    %p25 = scmp.eq.s32.totalorder %s9, 5
    %p26 = por %p24, %p25
    %p27 = scmp.ne.s32.totalorder %s19, %s22
    %p28 = scmp.eq.s32.totalorder %s9, 0
    %p29 = por %p27, %p28
    %p30 = scmp.ne.s32.totalorder %s19, %s22
    %p31 = scmp.eq.s32.totalorder %s14, 5
    %p32 = por %p30, %p31
    %p33 = scmp.ne.s32.totalorder %s22, %s23
    %p34 = scmp.eq.s32.totalorder %s14, 0
    %p35 = por %p33, %p34
    %p36 = scmp.ne.s32.totalorder %s22, %s23
    %p37 = scmp.eq.s32.totalorder %s15, 5
    %p38 = por %p36, %p37
    %p40 = scmp.ne.s32.totalorder %s23, %s39
    %p41 = scmp.eq.s32.totalorder %s15, 0
    %p42 = por %p40, %p41
    %s44 = sadd.s32 %s43, 1
    %p47 = scmp.eq.s32.totalorder %s9, 5
    %p48 = scmp.ne.s32.totalorder %s43, %s45
    %p49 = scmp.eq.s32.totalorder %s9, 0
    %p50 = por %p48, %p49
    %p51 = scmp.ne.s32.totalorder %s43, %s45
    %p52 = scmp.eq.s32.totalorder %s14, 5
    %p53 = por %p51, %p52
    %p54 = scmp.ne.s32.totalorder %s45, %s46
    %p55 = scmp.eq.s32.totalorder %s14, 0
    %p56 = por %p54, %p55
    %p57 = scmp.ne.s32.totalorder %s45, %s46
    %p58 = scmp.eq.s32.totalorder %s15, 5
    %p59 = por %p57, %p58
    %p61 = scmp.ne.s32.totalorder %s46, %s60
    %p62 = scmp.eq.s32.totalorder %s15, 0
    %p63 = por %p61, %p62
    %s65 = sadd.s32 %s64, 1
    %p68 = scmp.eq.s32.totalorder %s9, 5
    %p69 = scmp.ne.s32.totalorder %s64, %s66
    %p70 = scmp.eq.s32.totalorder %s9, 0
    %p71 = por %p69, %p70
    %p72 = scmp.ne.s32.totalorder %s64, %s66
    %p73 = scmp.eq.s32.totalorder %s14, 5
    %p74 = por %p72, %p73
    %p75 = scmp.ne.s32.totalorder %s66, %s67
    %p76 = scmp.eq.s32.totalorder %s14, 0
    %p77 = por %p75, %p76
    %p78 = scmp.ne.s32.totalorder %s66, %s67
    %p79 = scmp.eq.s32.totalorder %s15, 5
    %p80 = por %p78, %p79
    %p82 = scmp.ne.s32.totalorder %s67, %s81
    %p83 = scmp.eq.s32.totalorder %s15, 0
    %p84 = por %p82, %p83
    %s85 = ssub.s32 %s9, %s16
    %p86 = scmp.eq.s32.totalorder %s85, 0
    %s88 = sadd.s32 %s87, 1
    %s89 = scalar_select %p86, %s87, %s88
    %p92 = pneg %p86
    %p93 = scmp.eq.s32.totalorder %s9, 5
    %p94 = por %p92, %p93
    %p95 = scmp.ne.s32.totalorder %s87, %s90
    %p96 = scmp.eq.s32.totalorder %s9, 0
    %p97 = por %p95, %p96
    %p98 = scmp.ne.s32.totalorder %s87, %s90
    %p99 = scmp.eq.s32.totalorder %s14, 5
    %p100 = por %p98, %p99
    %p101 = scmp.ne.s32.totalorder %s90, %s91
    %p102 = scmp.eq.s32.totalorder %s14, 0
    %p103 = por %p101, %p102
    %p104 = scmp.ne.s32.totalorder %s90, %s91
    %p105 = scmp.eq.s32.totalorder %s15, 5
    %p106 = por %p104, %p105
    %p108 = scmp.ne.s32.totalorder %s91, %s107
    %p109 = scmp.eq.s32.totalorder %s15, 0
    %p110 = por %p108, %p109
    %p111 = scmp.le.s32.totalorder 1, %s9
    %p112 = scmp.lt.s32.totalorder %s9, 7
    %p113 = pnand %p111, %p112
    %p114 = pneg %p113
    // Predicated region
    $region9: #{hsi_lidar_couple_cross.7} parent=5 // pred_check
      _
    $region10: #{hsi_lidar_couple_cross.7} parent=5 // pred_check_branch
      %116 = sbr.rel (%p113) target = $region12
    $region11: #{hsi_lidar_couple_cross.7} parent=5 // pred_region
      %s117 = ssub.s32 %s9, 1
      // Predicated region
      $region13: #{hsi_lidar_couple_cross.7} parent=11 // pred_check
        %p118 = pneg %p56
      $region14: #{hsi_lidar_couple_cross.7} parent=11 // pred_check_branch
        %120 = sbr.rel (%p118) target = $region16
      $region15: #{hsi_lidar_couple_cross.7} parent=11 // pred_region
        _
      $region16: #{hsi_lidar_couple_cross.7} parent=11 // pred_fallthru
        _
      // Predicated region
      $region17: #{hsi_lidar_couple_cross.7} parent=11 // pred_check
        %p121 = pneg %p77
      $region18: #{hsi_lidar_couple_cross.7} parent=11 // pred_check_branch
        %123 = sbr.rel (%p121) target = $region20
      $region19: #{hsi_lidar_couple_cross.7} parent=11 // pred_region
        _
      $region20: #{hsi_lidar_couple_cross.7} parent=11 // pred_fallthru
        _
    $region12: #{hsi_lidar_couple_cross.7} parent=5 // pred_fallthru
      _
    %p124 = scmp.lt.s32.totalorder %s9, 6
    // Predicated region
    $region21: #{hsi_lidar_couple_cross.7} parent=5 // pred_check
      %p125 = pneg %p124
    $region22: #{hsi_lidar_couple_cross.7} parent=5 // pred_check_branch
      %127 = sbr.rel (%p125) target = $region24
    $region23: #{hsi_lidar_couple_cross.7} parent=5 // pred_region
      // Predicated region
      $region25: #{hsi_lidar_couple_cross.7} parent=23 // pred_check
        %p128 = pneg %p29
      $region26: #{hsi_lidar_couple_cross.7} parent=23 // pred_check_branch
        %130 = sbr.rel (%p128) target = $region28
      $region27: #{hsi_lidar_couple_cross.7} parent=23 // pred_region
        %p131 = scmp.lt.s32.totalorder %s9, 5
        %s132 = scalar_select %p131, %s9, 5
        %s133 = smul.addr %s132, 36
        %s134 = smul.addr %s133, 4
        %s135 = scalar_lea.vmem %s0, %s134
      $region28: #{hsi_lidar_couple_cross.7} parent=23 // pred_fallthru
        _
    $region24: #{hsi_lidar_couple_cross.7} parent=5 // pred_fallthru
      _
    %p136 = scmp.le.s32.totalorder 1, %s9
    %p137 = scmp.lt.s32.totalorder %s9, 7
    %p138 = pnand %p136, %p137
    %p139 = pneg %p138
    // Predicated region
    $region29: #{hsi_lidar_couple_cross.7} parent=5 // pred_check
      _
    $region30: #{hsi_lidar_couple_cross.7} parent=5 // pred_check_branch
      %141 = sbr.rel (%p138) target = $region32
    $region31: #{hsi_lidar_couple_cross.7} parent=5 // pred_region
      %s142 = ssub.s32 %s9, 1
      %p143 = scmp.lt.s32.totalorder %s14, 5
      %s144 = scalar_select %p143, %s14, 5
      %s145 = smul.addr %s144, 36
      %s146 = smul.addr %s145, 4
      %s147 = scalar_lea.vmem %s0, %s146
      %p148 = pneg %p35
      %p149 = pneg %p32
      %p150 = pneg %p56
      %p151 = pneg %p53
      %p152 = pneg %p77
      %p153 = pneg %p74
      %p154 = pneg %p103
      %p155 = pneg %p100
      %p156 = scmp.lt.s32.totalorder %s14, 5
      %s157 = scalar_select %p156, %s14, 5
      %s158 = scalar_lea.vmem %s3, %s157
      %p159 = scmp.lt.s32.totalorder %s14, 5
      %s160 = scalar_select %p159, %s14, 5
      %s161 = smul.addr %s160, 36
      %s162 = smul.addr %s161, 4
      %s163 = scalar_lea.vmem %s0, %s162
      %p164 = scmp.lt.s32.totalorder %s14, 5
      %s165 = scalar_select %p164, %s14, 5
      %s166 = scalar_lea.vmem %s3, %s165
      %v167 = vld [vmem:[%s163] sm:$0xff]
      %v168 = vld [vmem:[%s163 + $0x8] sm:$0xff]
      %v169 = vld [vmem:[%s163 + $0x10] sm:$0xff]
      %v170 = vld [vmem:[%s163 + $0x18] sm:$0xff]
      %v171 = vld [vmem:[%s163 + $0x20] sm:$0xff]
      %v172 = vld [vmem:[%s163 + $0x28] sm:$0xff]
      %v173 = vld [vmem:[%s163 + $0x30] sm:$0xff]
      %v174 = vld [vmem:[%s163 + $0x38] sm:$0xff]
      %v175 = vld [vmem:[%s163 + $0x40] sm:$0xff]
      %v176 = vld [vmem:[%s163 + $0x48] sm:$0xff]
      %v177 = vld [vmem:[%s163 + $0x50] sm:$0xff]
      %v178 = vld [vmem:[%s163 + $0x58] sm:$0xff]
      %v179 = vld [vmem:[%s163 + $0x60] sm:$0xff]
      %v180 = vld [vmem:[%s163 + $0x68] sm:$0xff]
      %v181 = vld [vmem:[%s163 + $0x70] sm:$0xff]
      %v182 = vld [vmem:[%s163 + $0x78] sm:$0xff]
      %v183 = vld [vmem:[%s163 + $0x80] sm:$0xff]
      %v184 = vld [vmem:[%s163 + $0x88] sm:$0xff]
      %v185 = vld [vmem:[%s1] sm:$0xf]
      %v186 = vld [vmem:[%s1 + $0x4] sm:$0xf]
      %v187 = vld [vmem:[%s1 + $0x8] sm:$0xf]
      %v188 = vld [vmem:[%s1 + $0xc] sm:$0xf]
      %v189 = vld [vmem:[%s1 + $0x10] sm:$0xf]
      %v190 = vld [vmem:[%s1 + $0x14] sm:$0xf]
      %v191 = vld [vmem:[%s1 + $0x18] sm:$0xf]
      %v192 = vld [vmem:[%s1 + $0x1c] sm:$0xf]
      %v193 = vld [vmem:[%s1 + $0x20] sm:$0xf]
      %v194 = vld [vmem:[%s1 + $0x24] sm:$0xf]
      %v195 = vld [vmem:[%s1 + $0x28] sm:$0xf]
      %v196 = vld [vmem:[%s1 + $0x2c] sm:$0xf]
      %v197 = vld [vmem:[%s1 + $0x30] sm:$0xf]
      %v198 = vld [vmem:[%s1 + $0x34] sm:$0xf]
      %v199 = vld [vmem:[%s1 + $0x38] sm:$0xf]
      %v200 = vld [vmem:[%s1 + $0x3c] sm:$0xf]
      %v201 = vld [vmem:[%s1 + $0x40] sm:$0xf]
      %v202 = vld [vmem:[%s1 + $0x44] sm:$0xf]
      %v203 = vld [vmem:[%s1 + $0x48] sm:$0xf]
      %v204 = vld [vmem:[%s1 + $0x4c] sm:$0xf]
      %v205 = vld [vmem:[%s1 + $0x50] sm:$0xf]
      %v206 = vld [vmem:[%s1 + $0x54] sm:$0xf]
      %v207 = vld [vmem:[%s1 + $0x58] sm:$0xf]
      %v208 = vld [vmem:[%s1 + $0x5c] sm:$0xf]
      %v209 = vld [vmem:[%s1 + $0x60] sm:$0xf]
      %v210 = vld [vmem:[%s1 + $0x64] sm:$0xf]
      %v211 = vld [vmem:[%s1 + $0x68] sm:$0xf]
      %v212 = vld [vmem:[%s1 + $0x6c] sm:$0xf]
      %v213 = vld [vmem:[%s1 + $0x70] sm:$0xf]
      %v214 = vld [vmem:[%s1 + $0x74] sm:$0xf]
      %v215 = vld [vmem:[%s1 + $0x78] sm:$0xf]
      %v216 = vld [vmem:[%s1 + $0x7c] sm:$0xf]
      %v217 = vld [vmem:[%s1 + $0x80] sm:$0xf]
      %v218 = vld [vmem:[%s1 + $0x84] sm:$0xf]
      %v219 = vld [vmem:[%s1 + $0x88] sm:$0xf]
      %v220 = vld [vmem:[%s1 + $0x8c] sm:$0xf]
      %v221 = vld [vmem:[%s1 + $0x90] sm:$0xf]
      %v222 = vld [vmem:[%s1 + $0x94] sm:$0xf]
      %v223 = vld [vmem:[%s1 + $0x98] sm:$0xf]
      %v224 = vld [vmem:[%s1 + $0x9c] sm:$0xf]
      %v225 = vld [vmem:[%s1 + $0xa0] sm:$0xf]
      %v226 = vld [vmem:[%s1 + $0xa4] sm:$0xf]
      %v227 = vld [vmem:[%s1 + $0xa8] sm:$0xf]
      %v228 = vld [vmem:[%s1 + $0xac] sm:$0xf]
      %v229 = vld [vmem:[%s1 + $0xb0] sm:$0xf]
      %v230 = vld [vmem:[%s1 + $0xb4] sm:$0xf]
      %v231 = vld [vmem:[%s1 + $0xb8] sm:$0xf]
      %v232 = vld [vmem:[%s1 + $0xbc] sm:$0xf]
      %v233 = vld [vmem:[%s1 + $0xc0] sm:$0xf]
      %v234 = vld [vmem:[%s1 + $0xc4] sm:$0xf]
      %v235 = vld [vmem:[%s1 + $0xc8] sm:$0xf]
      %v236 = vld [vmem:[%s1 + $0xcc] sm:$0xf]
      %v237 = vld [vmem:[%s1 + $0xd0] sm:$0xf]
      %v238 = vld [vmem:[%s1 + $0xd4] sm:$0xf]
      %v239 = vld [vmem:[%s1 + $0xd8] sm:$0xf]
      %v240 = vld [vmem:[%s1 + $0xdc] sm:$0xf]
      %v241 = vld [vmem:[%s1 + $0xe0] sm:$0xf]
      %v242 = vld [vmem:[%s1 + $0xe4] sm:$0xf]
      %v243 = vld [vmem:[%s1 + $0xe8] sm:$0xf]
      %v244 = vld [vmem:[%s1 + $0xec] sm:$0xf]
      %v245 = vld [vmem:[%s1 + $0xf0] sm:$0xf]
      %v246 = vld [vmem:[%s1 + $0xf4] sm:$0xf]
      %v247 = vld [vmem:[%s1 + $0xf8] sm:$0xf]
      %v248 = vld [vmem:[%s1 + $0xfc] sm:$0xf]
      %v249 = vld [vmem:[%s1 + $0x100] sm:$0xf]
      %v250 = vld [vmem:[%s1 + $0x104] sm:$0xf]
      %v251 = vld [vmem:[%s1 + $0x108] sm:$0xf]
      %v252 = vld [vmem:[%s1 + $0x10c] sm:$0xf]
      %v253 = vld [vmem:[%s1 + $0x110] sm:$0xf]
      %v254 = vld [vmem:[%s1 + $0x114] sm:$0xf]
      %v255 = vld [vmem:[%s1 + $0x118] sm:$0xf]
      %v256 = vld [vmem:[%s1 + $0x11c] sm:$0xf]
      %v257 = vld [vmem:[%s1 + $0x120] sm:$0xf]
      %v258 = vld [vmem:[%s1 + $0x124] sm:$0xf]
      %v259 = vld [vmem:[%s1 + $0x128] sm:$0xf]
      %v260 = vld [vmem:[%s1 + $0x12c] sm:$0xf]
      %v261 = vld [vmem:[%s1 + $0x130] sm:$0xf]
      %v262 = vld [vmem:[%s1 + $0x134] sm:$0xf]
      %v263 = vld [vmem:[%s1 + $0x138] sm:$0xf]
      %v264 = vld [vmem:[%s1 + $0x13c] sm:$0xf]
      %v265 = vld [vmem:[%s1 + $0x140] sm:$0xf]
      %v266 = vld [vmem:[%s1 + $0x144] sm:$0xf]
      %v267 = vld [vmem:[%s1 + $0x148] sm:$0xf]
      %v268 = vld [vmem:[%s1 + $0x14c] sm:$0xf]
      %v269 = vld [vmem:[%s1 + $0x150] sm:$0xf]
      %v270 = vld [vmem:[%s1 + $0x154] sm:$0xf]
      %v271 = vld [vmem:[%s1 + $0x158] sm:$0xf]
      %v272 = vld [vmem:[%s1 + $0x15c] sm:$0xf]
      %v273 = vld [vmem:[%s1 + $0x160] sm:$0xf]
      %v274 = vld [vmem:[%s1 + $0x164] sm:$0xf]
      %v275 = vld [vmem:[%s1 + $0x168] sm:$0xf]
      %v276 = vld [vmem:[%s1 + $0x16c] sm:$0xf]
      %v277 = vld [vmem:[%s1 + $0x170] sm:$0xf]
      %v278 = vld [vmem:[%s1 + $0x174] sm:$0xf]
      %v279 = vld [vmem:[%s1 + $0x178] sm:$0xf]
      %v280 = vld [vmem:[%s1 + $0x17c] sm:$0xf]
      %v281 = vld [vmem:[%s1 + $0x180] sm:$0xf]
      %v282 = vld [vmem:[%s1 + $0x184] sm:$0xf]
      %v283 = vld [vmem:[%s1 + $0x188] sm:$0xf]
      %v284 = vld [vmem:[%s1 + $0x18c] sm:$0xf]
      %v285 = vld [vmem:[%s1 + $0x190] sm:$0xf]
      %v286 = vld [vmem:[%s1 + $0x194] sm:$0xf]
      %v287 = vld [vmem:[%s1 + $0x198] sm:$0xf]
      %v288 = vld [vmem:[%s1 + $0x19c] sm:$0xf]
      %v289 = vld [vmem:[%s1 + $0x1a0] sm:$0xf]
      %v290 = vld [vmem:[%s1 + $0x1a4] sm:$0xf]
      %v291 = vld [vmem:[%s1 + $0x1a8] sm:$0xf]
      %v292 = vld [vmem:[%s1 + $0x1ac] sm:$0xf]
      %v293 = vld [vmem:[%s1 + $0x1b0] sm:$0xf]
      %v294 = vld [vmem:[%s1 + $0x1b4] sm:$0xf]
      %v295 = vld [vmem:[%s1 + $0x1b8] sm:$0xf]
      %v296 = vld [vmem:[%s1 + $0x1bc] sm:$0xf]
      %v297 = vld [vmem:[%s1 + $0x1c0] sm:$0xf]
      %v298 = vld [vmem:[%s1 + $0x1c4] sm:$0xf]
      %v299 = vld [vmem:[%s1 + $0x1c8] sm:$0xf]
      %v300 = vld [vmem:[%s1 + $0x1cc] sm:$0xf]
      %v301 = vld [vmem:[%s1 + $0x1d0] sm:$0xf]
      %v302 = vld [vmem:[%s1 + $0x1d4] sm:$0xf]
      %v303 = vld [vmem:[%s1 + $0x1d8] sm:$0xf]
      %v304 = vld [vmem:[%s1 + $0x1dc] sm:$0xf]
      %v305 = vld [vmem:[%s1 + $0x1e0] sm:$0xf]
      %v306 = vld [vmem:[%s1 + $0x1e4] sm:$0xf]
      %v307 = vld [vmem:[%s1 + $0x1e8] sm:$0xf]
      %v308 = vld [vmem:[%s1 + $0x1ec] sm:$0xf]
      %v309 = vld [vmem:[%s1 + $0x1f0] sm:$0xf]
      %v310 = vld [vmem:[%s1 + $0x1f4] sm:$0xf]
      %v311 = vld [vmem:[%s1 + $0x1f8] sm:$0xf]
      %v312 = vld [vmem:[%s1 + $0x1fc] sm:$0xf]
      %v313 = vld [vmem:[%s1 + $0x200] sm:$0xf]
      %v314 = vld [vmem:[%s1 + $0x204] sm:$0xf]
      %v315 = vld [vmem:[%s1 + $0x208] sm:$0xf]
      %v316 = vld [vmem:[%s1 + $0x20c] sm:$0xf]
      %v317 = vld [vmem:[%s1 + $0x210] sm:$0xf]
      %v318 = vld [vmem:[%s1 + $0x214] sm:$0xf]
      %v319 = vld [vmem:[%s1 + $0x218] sm:$0xf]
      %v320 = vld [vmem:[%s1 + $0x21c] sm:$0xf]
      %v321 = vld [vmem:[%s1 + $0x220] sm:$0xf]
      %v322 = vld [vmem:[%s1 + $0x224] sm:$0xf]
      %v323 = vld [vmem:[%s1 + $0x228] sm:$0xf]
      %v324 = vld [vmem:[%s1 + $0x22c] sm:$0xf]
      %v325 = vld [vmem:[%s1 + $0x230] sm:$0xf]
      %v326 = vld [vmem:[%s1 + $0x234] sm:$0xf]
      %v327 = vld [vmem:[%s1 + $0x238] sm:$0xf]
      %v328 = vld [vmem:[%s1 + $0x23c] sm:$0xf]
      %v329 = vld [vmem:[%s1 + $0x240] sm:$0xf]
      %v330 = vld [vmem:[%s1 + $0x244] sm:$0xf]
      %v331 = vld [vmem:[%s1 + $0x248] sm:$0xf]
      %v332 = vld [vmem:[%s1 + $0x24c] sm:$0xf]
      %v333 = vld [vmem:[%s1 + $0x250] sm:$0xf]
      %v334 = vld [vmem:[%s1 + $0x254] sm:$0xf]
      %v335 = vld [vmem:[%s1 + $0x258] sm:$0xf]
      %v336 = vld [vmem:[%s1 + $0x25c] sm:$0xf]
      %v337 = vld [vmem:[%s1 + $0x260] sm:$0xf]
      %v338 = vld [vmem:[%s1 + $0x264] sm:$0xf]
      %v339 = vld [vmem:[%s1 + $0x268] sm:$0xf]
      %v340 = vld [vmem:[%s1 + $0x26c] sm:$0xf]
      %v341 = vld [vmem:[%s1 + $0x270] sm:$0xf]
      %v342 = vld [vmem:[%s1 + $0x274] sm:$0xf]
      %v343 = vld [vmem:[%s1 + $0x278] sm:$0xf]
      %v344 = vld [vmem:[%s1 + $0x27c] sm:$0xf]
      %v345 = vld [vmem:[%s1 + $0x280] sm:$0xf]
      %v346 = vld [vmem:[%s1 + $0x284] sm:$0xf]
      %v347 = vld [vmem:[%s1 + $0x288] sm:$0xf]
      %v348 = vld [vmem:[%s1 + $0x28c] sm:$0xf]
      %v349 = vld [vmem:[%s1 + $0x290] sm:$0xf]
      %v350 = vld [vmem:[%s1 + $0x294] sm:$0xf]
      %v351 = vld [vmem:[%s1 + $0x298] sm:$0xf]
      %v352 = vld [vmem:[%s1 + $0x29c] sm:$0xf]
      %v353 = vld [vmem:[%s1 + $0x2a0] sm:$0xf]
      %v354 = vld [vmem:[%s1 + $0x2a4] sm:$0xf]
      %v355 = vld [vmem:[%s1 + $0x2a8] sm:$0xf]
      %v356 = vld [vmem:[%s1 + $0x2ac] sm:$0xf]
      %v357 = vld [vmem:[%s1 + $0x2b0] sm:$0xf]
      %v358 = vld [vmem:[%s1 + $0x2b4] sm:$0xf]
      %v359 = vld [vmem:[%s1 + $0x2b8] sm:$0xf]
      %v360 = vld [vmem:[%s1 + $0x2bc] sm:$0xf]
      %v361 = vld [vmem:[%s1 + $0x2c0] sm:$0xf]
      %v362 = vld [vmem:[%s1 + $0x2c4] sm:$0xf]
      %v363 = vld [vmem:[%s1 + $0x2c8] sm:$0xf]
      %v364 = vld [vmem:[%s1 + $0x2cc] sm:$0xf]
      %v365 = vld [vmem:[%s1 + $0x2d0] sm:$0xf]
      %v366 = vld [vmem:[%s1 + $0x2d4] sm:$0xf]
      %v367 = vld [vmem:[%s1 + $0x2d8] sm:$0xf]
      %v368 = vld [vmem:[%s1 + $0x2dc] sm:$0xf]
      %v369 = vld [vmem:[%s1 + $0x2e0] sm:$0xf]
      %v370 = vld [vmem:[%s1 + $0x2e4] sm:$0xf]
      %v371 = vld [vmem:[%s1 + $0x2e8] sm:$0xf]
      %v372 = vld [vmem:[%s1 + $0x2ec] sm:$0xf]
      %v373 = vld [vmem:[%s1 + $0x2f0] sm:$0xf]
      %v374 = vld [vmem:[%s1 + $0x2f4] sm:$0xf]
      %v375 = vld [vmem:[%s1 + $0x2f8] sm:$0xf]
      %v376 = vld [vmem:[%s1 + $0x2fc] sm:$0xf]
      %v377 = vld [vmem:[%s1 + $0x300] sm:$0xf]
      %v378 = vld [vmem:[%s1 + $0x304] sm:$0xf]
      %v379 = vld [vmem:[%s1 + $0x308] sm:$0xf]
      %v380 = vld [vmem:[%s1 + $0x30c] sm:$0xf]
      %v381 = vld [vmem:[%s1 + $0x310] sm:$0xf]
      %v382 = vld [vmem:[%s1 + $0x314] sm:$0xf]
      %v383 = vld [vmem:[%s1 + $0x318] sm:$0xf]
      %v384 = vld [vmem:[%s1 + $0x31c] sm:$0xf]
      %v385 = vld [vmem:[%s1 + $0x320] sm:$0xf]
      %v386 = vld [vmem:[%s1 + $0x324] sm:$0xf]
      %v387 = vld [vmem:[%s1 + $0x328] sm:$0xf]
      %v388 = vld [vmem:[%s1 + $0x32c] sm:$0xf]
      %v389 = vld [vmem:[%s1 + $0x330] sm:$0xf]
      %v390 = vld [vmem:[%s1 + $0x334] sm:$0xf]
      %v391 = vld [vmem:[%s1 + $0x338] sm:$0xf]
      %v392 = vld [vmem:[%s1 + $0x33c] sm:$0xf]
      %v393 = vld [vmem:[%s1 + $0x340] sm:$0xf]
      %v394 = vld [vmem:[%s1 + $0x344] sm:$0xf]
      %v395 = vld [vmem:[%s1 + $0x348] sm:$0xf]
      %v396 = vld [vmem:[%s1 + $0x34c] sm:$0xf]
      %v397 = vld [vmem:[%s1 + $0x350] sm:$0xf]
      %v398 = vld [vmem:[%s1 + $0x354] sm:$0xf]
      %v399 = vld [vmem:[%s1 + $0x358] sm:$0xf]
      %v400 = vld [vmem:[%s1 + $0x35c] sm:$0xf]
      %v401 = vld [vmem:[%s1 + $0x360] sm:$0xf]
      %v402 = vld [vmem:[%s1 + $0x364] sm:$0xf]
      %v403 = vld [vmem:[%s1 + $0x368] sm:$0xf]
      %v404 = vld [vmem:[%s1 + $0x36c] sm:$0xf]
      %v405 = vld [vmem:[%s1 + $0x370] sm:$0xf]
      %v406 = vld [vmem:[%s1 + $0x374] sm:$0xf]
      %v407 = vld [vmem:[%s1 + $0x378] sm:$0xf]
      %v408 = vld [vmem:[%s1 + $0x37c] sm:$0xf]
      %v409 = vld [vmem:[%s1 + $0x380] sm:$0xf]
      %v410 = vld [vmem:[%s1 + $0x384] sm:$0xf]
      %v411 = vld [vmem:[%s1 + $0x388] sm:$0xf]
      %v412 = vld [vmem:[%s1 + $0x38c] sm:$0xf]
      %v413 = vld [vmem:[%s1 + $0x390] sm:$0xf]
      %v414 = vld [vmem:[%s1 + $0x394] sm:$0xf]
      %v415 = vld [vmem:[%s1 + $0x398] sm:$0xf]
      %v416 = vld [vmem:[%s1 + $0x39c] sm:$0xf]
      %v417 = vld [vmem:[%s1 + $0x3a0] sm:$0xf]
      %v418 = vld [vmem:[%s1 + $0x3a4] sm:$0xf]
      %v419 = vld [vmem:[%s1 + $0x3a8] sm:$0xf]
      %v420 = vld [vmem:[%s1 + $0x3ac] sm:$0xf]
      %v421 = vld [vmem:[%s1 + $0x3b0] sm:$0xf]
      %v422 = vld [vmem:[%s1 + $0x3b4] sm:$0xf]
      %v423 = vld [vmem:[%s1 + $0x3b8] sm:$0xf]
      %v424 = vld [vmem:[%s1 + $0x3bc] sm:$0xf]
      %v425 = vld [vmem:[%s1 + $0x3c0] sm:$0xf]
      %v426 = vld [vmem:[%s1 + $0x3c4] sm:$0xf]
      %v427 = vld [vmem:[%s1 + $0x3c8] sm:$0xf]
      %v428 = vld [vmem:[%s1 + $0x3cc] sm:$0xf]
      %v429 = vld [vmem:[%s1 + $0x3d0] sm:$0xf]
      %v430 = vld [vmem:[%s1 + $0x3d4] sm:$0xf]
      %v431 = vld [vmem:[%s1 + $0x3d8] sm:$0xf]
      %v432 = vld [vmem:[%s1 + $0x3dc] sm:$0xf]
      %v433 = vld [vmem:[%s1 + $0x3e0] sm:$0xf]
      %v434 = vld [vmem:[%s1 + $0x3e4] sm:$0xf]
      %v435 = vld [vmem:[%s1 + $0x3e8] sm:$0xf]
      %v436 = vld [vmem:[%s1 + $0x3ec] sm:$0xf]
      %v437 = vld [vmem:[%s1 + $0x3f0] sm:$0xf]
      %v438 = vld [vmem:[%s1 + $0x3f4] sm:$0xf]
      %v439 = vld [vmem:[%s1 + $0x3f8] sm:$0xf]
      %v440 = vld [vmem:[%s1 + $0x3fc] sm:$0xf]
      %v441 = vld [vmem:[%s1 + $0x400] sm:$0xf]
      %v442 = vld [vmem:[%s1 + $0x404] sm:$0xf]
      %v443 = vld [vmem:[%s1 + $0x408] sm:$0xf]
      %v444 = vld [vmem:[%s1 + $0x40c] sm:$0xf]
      %v445 = vld [vmem:[%s1 + $0x410] sm:$0xf]
      %v446 = vld [vmem:[%s1 + $0x414] sm:$0xf]
      %v447 = vld [vmem:[%s1 + $0x418] sm:$0xf]
      %v448 = vld [vmem:[%s1 + $0x41c] sm:$0xf]
      %v449 = vld [vmem:[%s1 + $0x420] sm:$0xf]
      %v450 = vld [vmem:[%s1 + $0x424] sm:$0xf]
      %v451 = vld [vmem:[%s1 + $0x428] sm:$0xf]
      %v452 = vld [vmem:[%s1 + $0x42c] sm:$0xf]
      %v453 = vld [vmem:[%s1 + $0x430] sm:$0xf]
      %v454 = vld [vmem:[%s1 + $0x434] sm:$0xf]
      %v455 = vld [vmem:[%s1 + $0x438] sm:$0xf]
      %v456 = vld [vmem:[%s1 + $0x43c] sm:$0xf]
      %v457 = vld [vmem:[%s1 + $0x440] sm:$0xf]
      %v458 = vld [vmem:[%s1 + $0x444] sm:$0xf]
      %v459 = vld [vmem:[%s1 + $0x448] sm:$0xf]
      %v460 = vld [vmem:[%s1 + $0x44c] sm:$0xf]
      %v461 = vld [vmem:[%s1 + $0x450] sm:$0xf]
      %v462 = vld [vmem:[%s1 + $0x454] sm:$0xf]
      %v463 = vld [vmem:[%s1 + $0x458] sm:$0xf]
      %v464 = vld [vmem:[%s1 + $0x45c] sm:$0xf]
      %v465 = vld [vmem:[%s1 + $0x460] sm:$0xf]
      %v466 = vld [vmem:[%s1 + $0x464] sm:$0xf]
      %v467 = vld [vmem:[%s1 + $0x468] sm:$0xf]
      %v468 = vld [vmem:[%s1 + $0x46c] sm:$0xf]
      %v469 = vld [vmem:[%s1 + $0x470] sm:$0xf]
      %v470 = vld [vmem:[%s1 + $0x474] sm:$0xf]
      %v471 = vld [vmem:[%s1 + $0x478] sm:$0xf]
      %v472 = vld [vmem:[%s1 + $0x47c] sm:$0xf]
      %v473 = vld [vmem:[%s2] sm:$0x1]
      %v475 = vperm.slane %v473, 0
      %v495 = vunpack.c.l.b16 %v167
      %v496 = vunpack.c.h.b16 %v167
      %v497 = vunpack.c.l.b16 %v168
      %v498 = vunpack.c.h.b16 %v168
      %v499 = vunpack.c.l.b16 %v169
      %v500 = vunpack.c.h.b16 %v169
      %v501 = vunpack.c.l.b16 %v170
      %v502 = vunpack.c.h.b16 %v170
      %v503 = vunpack.c.l.b16 %v171
      %v504 = vunpack.c.h.b16 %v171
      %v505 = vunpack.c.l.b16 %v172
      %v506 = vunpack.c.h.b16 %v172
      %v507 = vunpack.c.l.b16 %v173
      %v508 = vunpack.c.h.b16 %v173
      %v509 = vunpack.c.l.b16 %v174
      %v510 = vunpack.c.h.b16 %v174
      %v511 = vunpack.c.l.b16 %v175
      %v512 = vunpack.c.h.b16 %v175
      %v513 = vunpack.c.l.b16 %v176
      %v514 = vunpack.c.h.b16 %v176
      %v515 = vunpack.c.l.b16 %v177
      %v516 = vunpack.c.h.b16 %v177
      %v517 = vunpack.c.l.b16 %v178
      %v518 = vunpack.c.h.b16 %v178
      %v519 = vunpack.c.l.b16 %v179
      %v520 = vunpack.c.h.b16 %v179
      %v521 = vunpack.c.l.b16 %v180
      %v522 = vunpack.c.h.b16 %v180
      %v523 = vunpack.c.l.b16 %v181
      %v524 = vunpack.c.h.b16 %v181
      %v525 = vunpack.c.l.b16 %v182
      %v526 = vunpack.c.h.b16 %v182
      %v527 = vunpack.c.l.b16 %v183
      %v528 = vunpack.c.h.b16 %v183
      %v529 = vunpack.c.l.b16 %v184
      %v530 = vunpack.c.h.b16 %v184
      %v531 = vpack.c.b16 %v513, %v495
      %v532 = vpack.c.b16 %v514, %v496
      %v533 = vpack.c.b16 %v515, %v497
      %v534 = vpack.c.b16 %v516, %v498
      %v535 = vpack.c.b16 %v517, %v499
      %v536 = vpack.c.b16 %v518, %v500
      %v537 = vpack.c.b16 %v519, %v501
      %v538 = vpack.c.b16 %v520, %v502
      %v539 = vpack.c.b16 %v521, %v503
      %v540 = vpack.c.b16 %v522, %v504
      %v541 = vpack.c.b16 %v523, %v505
      %v542 = vpack.c.b16 %v524, %v506
      %v543 = vpack.c.b16 %v525, %v507
      %v544 = vpack.c.b16 %v526, %v508
      %v545 = vpack.c.b16 %v527, %v509
      %v546 = vpack.c.b16 %v528, %v510
      %v547 = vpack.c.b16 %v529, %v511
      %v548 = vpack.c.b16 %v530, %v512
      %v855 = vunpack.c.l.b16 %v185
      %v856 = vunpack.c.l.b16 %v186
      %v857 = vunpack.c.l.b16 %v187
      %v858 = vunpack.c.l.b16 %v188
      %v859 = vunpack.c.l.b16 %v189
      %v860 = vunpack.c.l.b16 %v190
      %v861 = vunpack.c.l.b16 %v191
      %v862 = vunpack.c.l.b16 %v192
      %v863 = vunpack.c.l.b16 %v193
      %v864 = vunpack.c.l.b16 %v194
      %v865 = vunpack.c.l.b16 %v195
      %v866 = vunpack.c.l.b16 %v196
      %v867 = vunpack.c.l.b16 %v197
      %v868 = vunpack.c.l.b16 %v198
      %v869 = vunpack.c.l.b16 %v199
      %v870 = vunpack.c.l.b16 %v200
      %v871 = vunpack.c.l.b16 %v201
      %v872 = vunpack.c.l.b16 %v202
      %v873 = vunpack.c.l.b16 %v203
      %v874 = vunpack.c.l.b16 %v204
      %v875 = vunpack.c.l.b16 %v205
      %v876 = vunpack.c.l.b16 %v206
      %v877 = vunpack.c.l.b16 %v207
      %v878 = vunpack.c.l.b16 %v208
      %v879 = vunpack.c.l.b16 %v209
      %v880 = vunpack.c.l.b16 %v210
      %v881 = vunpack.c.l.b16 %v211
      %v882 = vunpack.c.l.b16 %v212
      %v883 = vunpack.c.l.b16 %v213
      %v884 = vunpack.c.l.b16 %v214
      %v885 = vunpack.c.l.b16 %v215
      %v886 = vunpack.c.l.b16 %v216
      %v887 = vunpack.c.l.b16 %v217
      %v888 = vunpack.c.l.b16 %v218
      %v889 = vunpack.c.l.b16 %v219
      %v890 = vunpack.c.l.b16 %v220
      %v891 = vunpack.c.l.b16 %v221
      %v892 = vunpack.c.l.b16 %v222
      %v893 = vunpack.c.l.b16 %v223
      %v894 = vunpack.c.l.b16 %v224
      %v895 = vunpack.c.l.b16 %v225
      %v896 = vunpack.c.l.b16 %v226
      %v897 = vunpack.c.l.b16 %v227
      %v898 = vunpack.c.l.b16 %v228
      %v899 = vunpack.c.l.b16 %v229
      %v900 = vunpack.c.l.b16 %v230
      %v901 = vunpack.c.l.b16 %v231
      %v902 = vunpack.c.l.b16 %v232
      %v903 = vunpack.c.l.b16 %v233
      %v904 = vunpack.c.l.b16 %v234
      %v905 = vunpack.c.l.b16 %v235
      %v906 = vunpack.c.l.b16 %v236
      %v907 = vunpack.c.l.b16 %v237
      %v908 = vunpack.c.l.b16 %v238
      %v909 = vunpack.c.l.b16 %v239
      %v910 = vunpack.c.l.b16 %v240
      %v911 = vunpack.c.l.b16 %v241
      %v912 = vunpack.c.l.b16 %v242
      %v913 = vunpack.c.l.b16 %v243
      %v914 = vunpack.c.l.b16 %v244
      %v915 = vunpack.c.l.b16 %v245
      %v916 = vunpack.c.l.b16 %v246
      %v917 = vunpack.c.l.b16 %v247
      %v918 = vunpack.c.l.b16 %v248
      %v919 = vunpack.c.l.b16 %v249
      %v920 = vunpack.c.l.b16 %v250
      %v921 = vunpack.c.l.b16 %v251
      %v922 = vunpack.c.l.b16 %v252
      %v923 = vunpack.c.l.b16 %v253
      %v924 = vunpack.c.l.b16 %v254
      %v925 = vunpack.c.l.b16 %v255
      %v926 = vunpack.c.l.b16 %v256
      %v927 = vunpack.c.l.b16 %v257
      %v928 = vunpack.c.l.b16 %v258
      %v929 = vunpack.c.l.b16 %v259
      %v930 = vunpack.c.l.b16 %v260
      %v931 = vunpack.c.l.b16 %v261
      %v932 = vunpack.c.l.b16 %v262
      %v933 = vunpack.c.l.b16 %v263
      %v934 = vunpack.c.l.b16 %v264
      %v935 = vunpack.c.l.b16 %v265
      %v936 = vunpack.c.l.b16 %v266
      %v937 = vunpack.c.l.b16 %v267
      %v938 = vunpack.c.l.b16 %v268
      %v939 = vunpack.c.l.b16 %v269
      %v940 = vunpack.c.l.b16 %v270
      %v941 = vunpack.c.l.b16 %v271
      %v942 = vunpack.c.l.b16 %v272
      %v943 = vunpack.c.l.b16 %v273
      %v944 = vunpack.c.l.b16 %v274
      %v945 = vunpack.c.l.b16 %v275
      %v946 = vunpack.c.l.b16 %v276
      %v947 = vunpack.c.l.b16 %v277
      %v948 = vunpack.c.l.b16 %v278
      %v949 = vunpack.c.l.b16 %v279
      %v950 = vunpack.c.l.b16 %v280
      %v951 = vunpack.c.l.b16 %v281
      %v952 = vunpack.c.l.b16 %v282
      %v953 = vunpack.c.l.b16 %v283
      %v954 = vunpack.c.l.b16 %v284
      %v955 = vunpack.c.l.b16 %v285
      %v956 = vunpack.c.l.b16 %v286
      %v957 = vunpack.c.l.b16 %v287
      %v958 = vunpack.c.l.b16 %v288
      %v959 = vunpack.c.l.b16 %v289
      %v960 = vunpack.c.l.b16 %v290
      %v961 = vunpack.c.l.b16 %v291
      %v962 = vunpack.c.l.b16 %v292
      %v963 = vunpack.c.l.b16 %v293
      %v964 = vunpack.c.l.b16 %v294
      %v965 = vunpack.c.l.b16 %v295
      %v966 = vunpack.c.l.b16 %v296
      %v967 = vunpack.c.l.b16 %v297
      %v968 = vunpack.c.l.b16 %v298
      %v969 = vunpack.c.l.b16 %v299
      %v970 = vunpack.c.l.b16 %v300
      %v971 = vunpack.c.l.b16 %v301
      %v972 = vunpack.c.l.b16 %v302
      %v973 = vunpack.c.l.b16 %v303
      %v974 = vunpack.c.l.b16 %v304
      %v975 = vunpack.c.l.b16 %v305
      %v976 = vunpack.c.l.b16 %v306
      %v977 = vunpack.c.l.b16 %v307
      %v978 = vunpack.c.l.b16 %v308
      %v979 = vunpack.c.l.b16 %v309
      %v980 = vunpack.c.l.b16 %v310
      %v981 = vunpack.c.l.b16 %v311
      %v982 = vunpack.c.l.b16 %v312
      %v983 = vunpack.c.l.b16 %v313
      %v984 = vunpack.c.l.b16 %v314
      %v985 = vunpack.c.l.b16 %v315
      %v986 = vunpack.c.l.b16 %v316
      %v987 = vunpack.c.l.b16 %v317
      %v988 = vunpack.c.l.b16 %v318
      %v989 = vunpack.c.l.b16 %v319
      %v990 = vunpack.c.l.b16 %v320
      %v991 = vunpack.c.l.b16 %v321
      %v992 = vunpack.c.l.b16 %v322
      %v993 = vunpack.c.l.b16 %v323
      %v994 = vunpack.c.l.b16 %v324
      %v995 = vunpack.c.l.b16 %v325
      %v996 = vunpack.c.l.b16 %v326
      %v997 = vunpack.c.l.b16 %v327
      %v998 = vunpack.c.l.b16 %v328
      %v999 = vunpack.c.l.b16 %v329
      %v1000 = vunpack.c.l.b16 %v330
      %v1001 = vunpack.c.l.b16 %v331
      %v1002 = vunpack.c.l.b16 %v332
      %v1003 = vunpack.c.l.b16 %v333
      %v1004 = vunpack.c.l.b16 %v334
      %v1005 = vunpack.c.l.b16 %v335
      %v1006 = vunpack.c.l.b16 %v336
      %v1007 = vunpack.c.l.b16 %v337
      %v1008 = vunpack.c.l.b16 %v338
      %v1009 = vunpack.c.l.b16 %v339
      %v1010 = vunpack.c.l.b16 %v340
      %v1011 = vunpack.c.l.b16 %v341
      %v1012 = vunpack.c.l.b16 %v342
      %v1013 = vunpack.c.l.b16 %v343
      %v1014 = vunpack.c.l.b16 %v344
      %v1015 = vunpack.c.l.b16 %v345
      %v1016 = vunpack.c.l.b16 %v346
      %v1017 = vunpack.c.l.b16 %v347
      %v1018 = vunpack.c.l.b16 %v348
      %v1019 = vunpack.c.l.b16 %v349
      %v1020 = vunpack.c.l.b16 %v350
      %v1021 = vunpack.c.l.b16 %v351
      %v1022 = vunpack.c.l.b16 %v352
      %v1023 = vunpack.c.l.b16 %v353
      %v1024 = vunpack.c.l.b16 %v354
      %v1025 = vunpack.c.l.b16 %v355
      %v1026 = vunpack.c.l.b16 %v356
      %v1027 = vunpack.c.l.b16 %v357
      %v1028 = vunpack.c.l.b16 %v358
      %v1029 = vunpack.c.l.b16 %v359
      %v1030 = vunpack.c.l.b16 %v360
      %v1031 = vunpack.c.l.b16 %v361
      %v1032 = vunpack.c.l.b16 %v362
      %v1033 = vunpack.c.l.b16 %v363
      %v1034 = vunpack.c.l.b16 %v364
      %v1035 = vunpack.c.l.b16 %v365
      %v1036 = vunpack.c.l.b16 %v366
      %v1037 = vunpack.c.l.b16 %v367
      %v1038 = vunpack.c.l.b16 %v368
      %v1039 = vunpack.c.l.b16 %v369
      %v1040 = vunpack.c.l.b16 %v370
      %v1041 = vunpack.c.l.b16 %v371
      %v1042 = vunpack.c.l.b16 %v372
      %v1043 = vunpack.c.l.b16 %v373
      %v1044 = vunpack.c.l.b16 %v374
      %v1045 = vunpack.c.l.b16 %v375
      %v1046 = vunpack.c.l.b16 %v376
      %v1047 = vunpack.c.l.b16 %v377
      %v1048 = vunpack.c.l.b16 %v378
      %v1049 = vunpack.c.l.b16 %v379
      %v1050 = vunpack.c.l.b16 %v380
      %v1051 = vunpack.c.l.b16 %v381
      %v1052 = vunpack.c.l.b16 %v382
      %v1053 = vunpack.c.l.b16 %v383
      %v1054 = vunpack.c.l.b16 %v384
      %v1055 = vunpack.c.l.b16 %v385
      %v1056 = vunpack.c.l.b16 %v386
      %v1057 = vunpack.c.l.b16 %v387
      %v1058 = vunpack.c.l.b16 %v388
      %v1059 = vunpack.c.l.b16 %v389
      %v1060 = vunpack.c.l.b16 %v390
      %v1061 = vunpack.c.l.b16 %v391
      %v1062 = vunpack.c.l.b16 %v392
      %v1063 = vunpack.c.l.b16 %v393
      %v1064 = vunpack.c.l.b16 %v394
      %v1065 = vunpack.c.l.b16 %v395
      %v1066 = vunpack.c.l.b16 %v396
      %v1067 = vunpack.c.l.b16 %v397
      %v1068 = vunpack.c.l.b16 %v398
      %v1069 = vunpack.c.l.b16 %v399
      %v1070 = vunpack.c.l.b16 %v400
      %v1071 = vunpack.c.l.b16 %v401
      %v1072 = vunpack.c.l.b16 %v402
      %v1073 = vunpack.c.l.b16 %v403
      %v1074 = vunpack.c.l.b16 %v404
      %v1075 = vunpack.c.l.b16 %v405
      %v1076 = vunpack.c.l.b16 %v406
      %v1077 = vunpack.c.l.b16 %v407
      %v1078 = vunpack.c.l.b16 %v408
      %v1079 = vunpack.c.l.b16 %v409
      %v1080 = vunpack.c.l.b16 %v410
      %v1081 = vunpack.c.l.b16 %v411
      %v1082 = vunpack.c.l.b16 %v412
      %v1083 = vunpack.c.l.b16 %v413
      %v1084 = vunpack.c.l.b16 %v414
      %v1085 = vunpack.c.l.b16 %v415
      %v1086 = vunpack.c.l.b16 %v416
      %v1087 = vunpack.c.l.b16 %v417
      %v1088 = vunpack.c.l.b16 %v418
      %v1089 = vunpack.c.l.b16 %v419
      %v1090 = vunpack.c.l.b16 %v420
      %v1091 = vunpack.c.l.b16 %v421
      %v1092 = vunpack.c.l.b16 %v422
      %v1093 = vunpack.c.l.b16 %v423
      %v1094 = vunpack.c.l.b16 %v424
      %v1095 = vunpack.c.l.b16 %v425
      %v1096 = vunpack.c.l.b16 %v426
      %v1097 = vunpack.c.l.b16 %v427
      %v1098 = vunpack.c.l.b16 %v428
      %v1099 = vunpack.c.l.b16 %v429
      %v1100 = vunpack.c.l.b16 %v430
      %v1101 = vunpack.c.l.b16 %v431
      %v1102 = vunpack.c.l.b16 %v432
      %v1103 = vunpack.c.l.b16 %v433
      %v1104 = vunpack.c.l.b16 %v434
      %v1105 = vunpack.c.l.b16 %v435
      %v1106 = vunpack.c.l.b16 %v436
      %v1107 = vunpack.c.l.b16 %v437
      %v1108 = vunpack.c.l.b16 %v438
      %v1109 = vunpack.c.l.b16 %v439
      %v1110 = vunpack.c.l.b16 %v440
      %v1111 = vunpack.c.l.b16 %v441
      %v1112 = vunpack.c.l.b16 %v442
      %v1113 = vunpack.c.l.b16 %v443
      %v1114 = vunpack.c.l.b16 %v444
      %v1115 = vunpack.c.l.b16 %v445
      %v1116 = vunpack.c.l.b16 %v446
      %v1117 = vunpack.c.l.b16 %v447
      %v1118 = vunpack.c.l.b16 %v448
      %v1119 = vunpack.c.l.b16 %v449
      %v1120 = vunpack.c.l.b16 %v450
      %v1121 = vunpack.c.l.b16 %v451
      %v1122 = vunpack.c.l.b16 %v452
      %v1123 = vunpack.c.l.b16 %v453
      %v1124 = vunpack.c.l.b16 %v454
      %v1125 = vunpack.c.l.b16 %v455
      %v1126 = vunpack.c.l.b16 %v456
      %v1127 = vunpack.c.l.b16 %v457
      %v1128 = vunpack.c.l.b16 %v458
      %v1129 = vunpack.c.l.b16 %v459
      %v1130 = vunpack.c.l.b16 %v460
      %v1131 = vunpack.c.l.b16 %v461
      %v1132 = vunpack.c.l.b16 %v462
      %v1133 = vunpack.c.l.b16 %v463
      %v1134 = vunpack.c.l.b16 %v464
      %v1135 = vunpack.c.l.b16 %v465
      %v1136 = vunpack.c.l.b16 %v466
      %v1137 = vunpack.c.l.b16 %v467
      %v1138 = vunpack.c.l.b16 %v468
      %v1139 = vunpack.c.l.b16 %v469
      %v1140 = vunpack.c.l.b16 %v470
      %v1141 = vunpack.c.l.b16 %v471
      %v1142 = vunpack.c.l.b16 %v472
      %v1143 = vpack.c.b16 %v856, %v855
      %v1144 = vpack.c.b16 %v858, %v857
      %v1145 = vpack.c.b16 %v860, %v859
      %v1146 = vpack.c.b16 %v862, %v861
      %v1147 = vpack.c.b16 %v864, %v863
      %v1148 = vpack.c.b16 %v866, %v865
      %v1149 = vpack.c.b16 %v868, %v867
      %v1150 = vpack.c.b16 %v870, %v869
      %v1151 = vpack.c.b16 %v872, %v871
      %v1152 = vpack.c.b16 %v874, %v873
      %v1153 = vpack.c.b16 %v876, %v875
      %v1154 = vpack.c.b16 %v878, %v877
      %v1155 = vpack.c.b16 %v880, %v879
      %v1156 = vpack.c.b16 %v882, %v881
      %v1157 = vpack.c.b16 %v884, %v883
      %v1158 = vpack.c.b16 %v886, %v885
      %v1159 = vpack.c.b16 %v888, %v887
      %v1160 = vpack.c.b16 %v890, %v889
      %v1161 = vpack.c.b16 %v892, %v891
      %v1162 = vpack.c.b16 %v894, %v893
      %v1163 = vpack.c.b16 %v896, %v895
      %v1164 = vpack.c.b16 %v898, %v897
      %v1165 = vpack.c.b16 %v900, %v899
      %v1166 = vpack.c.b16 %v902, %v901
      %v1167 = vpack.c.b16 %v904, %v903
      %v1168 = vpack.c.b16 %v906, %v905
      %v1169 = vpack.c.b16 %v908, %v907
      %v1170 = vpack.c.b16 %v910, %v909
      %v1171 = vpack.c.b16 %v912, %v911
      %v1172 = vpack.c.b16 %v914, %v913
      %v1173 = vpack.c.b16 %v916, %v915
      %v1174 = vpack.c.b16 %v918, %v917
      %v1175 = vpack.c.b16 %v920, %v919
      %v1176 = vpack.c.b16 %v922, %v921
      %v1177 = vpack.c.b16 %v924, %v923
      %v1178 = vpack.c.b16 %v926, %v925
      %v1179 = vpack.c.b16 %v928, %v927
      %v1180 = vpack.c.b16 %v930, %v929
      %v1181 = vpack.c.b16 %v932, %v931
      %v1182 = vpack.c.b16 %v934, %v933
      %v1183 = vpack.c.b16 %v936, %v935
      %v1184 = vpack.c.b16 %v938, %v937
      %v1185 = vpack.c.b16 %v940, %v939
      %v1186 = vpack.c.b16 %v942, %v941
      %v1187 = vpack.c.b16 %v944, %v943
      %v1188 = vpack.c.b16 %v946, %v945
      %v1189 = vpack.c.b16 %v948, %v947
      %v1190 = vpack.c.b16 %v950, %v949
      %v1191 = vpack.c.b16 %v952, %v951
      %v1192 = vpack.c.b16 %v954, %v953
      %v1193 = vpack.c.b16 %v956, %v955
      %v1194 = vpack.c.b16 %v958, %v957
      %v1195 = vpack.c.b16 %v960, %v959
      %v1196 = vpack.c.b16 %v962, %v961
      %v1197 = vpack.c.b16 %v964, %v963
      %v1198 = vpack.c.b16 %v966, %v965
      %v1199 = vpack.c.b16 %v968, %v967
      %v1200 = vpack.c.b16 %v970, %v969
      %v1201 = vpack.c.b16 %v972, %v971
      %v1202 = vpack.c.b16 %v974, %v973
      %v1203 = vpack.c.b16 %v976, %v975
      %v1204 = vpack.c.b16 %v978, %v977
      %v1205 = vpack.c.b16 %v980, %v979
      %v1206 = vpack.c.b16 %v982, %v981
      %v1207 = vpack.c.b16 %v984, %v983
      %v1208 = vpack.c.b16 %v986, %v985
      %v1209 = vpack.c.b16 %v988, %v987
      %v1210 = vpack.c.b16 %v990, %v989
      %v1211 = vpack.c.b16 %v992, %v991
      %v1212 = vpack.c.b16 %v994, %v993
      %v1213 = vpack.c.b16 %v996, %v995
      %v1214 = vpack.c.b16 %v998, %v997
      %v1215 = vpack.c.b16 %v1000, %v999
      %v1216 = vpack.c.b16 %v1002, %v1001
      %v1217 = vpack.c.b16 %v1004, %v1003
      %v1218 = vpack.c.b16 %v1006, %v1005
      %v1219 = vpack.c.b16 %v1008, %v1007
      %v1220 = vpack.c.b16 %v1010, %v1009
      %v1221 = vpack.c.b16 %v1012, %v1011
      %v1222 = vpack.c.b16 %v1014, %v1013
      %v1223 = vpack.c.b16 %v1016, %v1015
      %v1224 = vpack.c.b16 %v1018, %v1017
      %v1225 = vpack.c.b16 %v1020, %v1019
      %v1226 = vpack.c.b16 %v1022, %v1021
      %v1227 = vpack.c.b16 %v1024, %v1023
      %v1228 = vpack.c.b16 %v1026, %v1025
      %v1229 = vpack.c.b16 %v1028, %v1027
      %v1230 = vpack.c.b16 %v1030, %v1029
      %v1231 = vpack.c.b16 %v1032, %v1031
      %v1232 = vpack.c.b16 %v1034, %v1033
      %v1233 = vpack.c.b16 %v1036, %v1035
      %v1234 = vpack.c.b16 %v1038, %v1037
      %v1235 = vpack.c.b16 %v1040, %v1039
      %v1236 = vpack.c.b16 %v1042, %v1041
      %v1237 = vpack.c.b16 %v1044, %v1043
      %v1238 = vpack.c.b16 %v1046, %v1045
      %v1239 = vpack.c.b16 %v1048, %v1047
      %v1240 = vpack.c.b16 %v1050, %v1049
      %v1241 = vpack.c.b16 %v1052, %v1051
      %v1242 = vpack.c.b16 %v1054, %v1053
      %v1243 = vpack.c.b16 %v1056, %v1055
      %v1244 = vpack.c.b16 %v1058, %v1057
      %v1245 = vpack.c.b16 %v1060, %v1059
      %v1246 = vpack.c.b16 %v1062, %v1061
      %v1247 = vpack.c.b16 %v1064, %v1063
      %v1248 = vpack.c.b16 %v1066, %v1065
      %v1249 = vpack.c.b16 %v1068, %v1067
      %v1250 = vpack.c.b16 %v1070, %v1069
      %v1251 = vpack.c.b16 %v1072, %v1071
      %v1252 = vpack.c.b16 %v1074, %v1073
      %v1253 = vpack.c.b16 %v1076, %v1075
      %v1254 = vpack.c.b16 %v1078, %v1077
      %v1255 = vpack.c.b16 %v1080, %v1079
      %v1256 = vpack.c.b16 %v1082, %v1081
      %v1257 = vpack.c.b16 %v1084, %v1083
      %v1258 = vpack.c.b16 %v1086, %v1085
      %v1259 = vpack.c.b16 %v1088, %v1087
      %v1260 = vpack.c.b16 %v1090, %v1089
      %v1261 = vpack.c.b16 %v1092, %v1091
      %v1262 = vpack.c.b16 %v1094, %v1093
      %v1263 = vpack.c.b16 %v1096, %v1095
      %v1264 = vpack.c.b16 %v1098, %v1097
      %v1265 = vpack.c.b16 %v1100, %v1099
      %v1266 = vpack.c.b16 %v1102, %v1101
      %v1267 = vpack.c.b16 %v1104, %v1103
      %v1268 = vpack.c.b16 %v1106, %v1105
      %v1269 = vpack.c.b16 %v1108, %v1107
      %v1270 = vpack.c.b16 %v1110, %v1109
      %v1271 = vpack.c.b16 %v1112, %v1111
      %v1272 = vpack.c.b16 %v1114, %v1113
      %v1273 = vpack.c.b16 %v1116, %v1115
      %v1274 = vpack.c.b16 %v1118, %v1117
      %v1275 = vpack.c.b16 %v1120, %v1119
      %v1276 = vpack.c.b16 %v1122, %v1121
      %v1277 = vpack.c.b16 %v1124, %v1123
      %v1278 = vpack.c.b16 %v1126, %v1125
      %v1279 = vpack.c.b16 %v1128, %v1127
      %v1280 = vpack.c.b16 %v1130, %v1129
      %v1281 = vpack.c.b16 %v1132, %v1131
      %v1282 = vpack.c.b16 %v1134, %v1133
      %v1283 = vpack.c.b16 %v1136, %v1135
      %v1284 = vpack.c.b16 %v1138, %v1137
      %v1285 = vpack.c.b16 %v1140, %v1139
      %v1286 = vpack.c.b16 %v1142, %v1141
      %1431 = vmatpush.bf16.msra.mxu0 %v1150
      %1432 = vmatpush.bf16.msra.mxu0 %v1149
      %1433 = vmatpush.bf16.msra.mxu0 %v1148
      %1434 = vmatpush.bf16.msra.mxu0 %v1147
      %1435 = vmatpush.bf16.msra.mxu0 %v1146
      %1436 = vmatpush.bf16.msra.mxu0 %v1145
      %1437 = vmatpush.bf16.msra.mxu0 %v1144
      %1438 = vmatpush.bf16.msra.mxu0 %v1143
      %1439 = vmatmul.bf16.gmra.mxu0 %v531
      %v1440 = vpop.f32.mrf.mxu0
      %v1441 = vadd.f32 %v475, %v1440
      %v1442 = vpop.f32.mrf.mxu0
      %v1443 = vadd.f32 %v475, %v1442
      %1444 = vdwg.mxu0
      %1445 = vmatpush.bf16.msra.mxu0 %v1158
      %1446 = vmatpush.bf16.msra.mxu0 %v1157
      %1447 = vmatpush.bf16.msra.mxu0 %v1156
      %1448 = vmatpush.bf16.msra.mxu0 %v1155
      %1449 = vmatpush.bf16.msra.mxu0 %v1154
      %1450 = vmatpush.bf16.msra.mxu0 %v1153
      %1451 = vmatpush.bf16.msra.mxu0 %v1152
      %1452 = vmatpush.bf16.msra.mxu0 %v1151
      %1453 = vmatmul.bf16.gmra.mxu0 %v532
      %v1454 = vpop.f32.mrf.mxu0
      %v1455 = vadd.f32 %v1441, %v1454
      %v1456 = vpop.f32.mrf.mxu0
      %v1457 = vadd.f32 %v1443, %v1456
      %1458 = vdwg.mxu0
      %1459 = vmatpush.bf16.msra.mxu0 %v1166
      %1460 = vmatpush.bf16.msra.mxu0 %v1165
      %1461 = vmatpush.bf16.msra.mxu0 %v1164
      %1462 = vmatpush.bf16.msra.mxu0 %v1163
      %1463 = vmatpush.bf16.msra.mxu0 %v1162
      %1464 = vmatpush.bf16.msra.mxu0 %v1161
      %1465 = vmatpush.bf16.msra.mxu0 %v1160
      %1466 = vmatpush.bf16.msra.mxu0 %v1159
      %1467 = vmatmul.bf16.gmra.mxu0 %v533
      %v1468 = vpop.f32.mrf.mxu0
      %v1469 = vadd.f32 %v1455, %v1468
      %v1470 = vpop.f32.mrf.mxu0
      %v1471 = vadd.f32 %v1457, %v1470
      %1472 = vdwg.mxu0
      %1473 = vmatpush.bf16.msra.mxu0 %v1174
      %1474 = vmatpush.bf16.msra.mxu0 %v1173
      %1475 = vmatpush.bf16.msra.mxu0 %v1172
      %1476 = vmatpush.bf16.msra.mxu0 %v1171
      %1477 = vmatpush.bf16.msra.mxu0 %v1170
      %1478 = vmatpush.bf16.msra.mxu0 %v1169
      %1479 = vmatpush.bf16.msra.mxu0 %v1168
      %1480 = vmatpush.bf16.msra.mxu0 %v1167
      %1481 = vmatmul.bf16.gmra.mxu0 %v534
      %v1482 = vpop.f32.mrf.mxu0
      %v1483 = vadd.f32 %v1469, %v1482
      %v1484 = vpop.f32.mrf.mxu0
      %v1485 = vadd.f32 %v1471, %v1484
      %1486 = vdwg.mxu0
      %1487 = vmatpush.bf16.msra.mxu0 %v1182
      %1488 = vmatpush.bf16.msra.mxu0 %v1181
      %1489 = vmatpush.bf16.msra.mxu0 %v1180
      %1490 = vmatpush.bf16.msra.mxu0 %v1179
      %1491 = vmatpush.bf16.msra.mxu0 %v1178
      %1492 = vmatpush.bf16.msra.mxu0 %v1177
      %1493 = vmatpush.bf16.msra.mxu0 %v1176
      %1494 = vmatpush.bf16.msra.mxu0 %v1175
      %1495 = vmatmul.bf16.gmra.mxu0 %v535
      %v1496 = vpop.f32.mrf.mxu0
      %v1497 = vadd.f32 %v1483, %v1496
      %v1498 = vpop.f32.mrf.mxu0
      %v1499 = vadd.f32 %v1485, %v1498
      %1500 = vdwg.mxu0
      %1501 = vmatpush.bf16.msra.mxu0 %v1190
      %1502 = vmatpush.bf16.msra.mxu0 %v1189
      %1503 = vmatpush.bf16.msra.mxu0 %v1188
      %1504 = vmatpush.bf16.msra.mxu0 %v1187
      %1505 = vmatpush.bf16.msra.mxu0 %v1186
      %1506 = vmatpush.bf16.msra.mxu0 %v1185
      %1507 = vmatpush.bf16.msra.mxu0 %v1184
      %1508 = vmatpush.bf16.msra.mxu0 %v1183
      %1509 = vmatmul.bf16.gmra.mxu0 %v536
      %v1510 = vpop.f32.mrf.mxu0
      %v1511 = vadd.f32 %v1497, %v1510
      %v1512 = vpop.f32.mrf.mxu0
      %v1513 = vadd.f32 %v1499, %v1512
      %1514 = vdwg.mxu0
      %1515 = vmatpush.bf16.msra.mxu0 %v1198
      %1516 = vmatpush.bf16.msra.mxu0 %v1197
      %1517 = vmatpush.bf16.msra.mxu0 %v1196
      %1518 = vmatpush.bf16.msra.mxu0 %v1195
      %1519 = vmatpush.bf16.msra.mxu0 %v1194
      %1520 = vmatpush.bf16.msra.mxu0 %v1193
      %1521 = vmatpush.bf16.msra.mxu0 %v1192
      %1522 = vmatpush.bf16.msra.mxu0 %v1191
      %1523 = vmatmul.bf16.gmra.mxu0 %v537
      %v1524 = vpop.f32.mrf.mxu0
      %v1525 = vadd.f32 %v1511, %v1524
      %v1526 = vpop.f32.mrf.mxu0
      %v1527 = vadd.f32 %v1513, %v1526
      %1528 = vdwg.mxu0
      %1529 = vmatpush.bf16.msra.mxu0 %v1206
      %1530 = vmatpush.bf16.msra.mxu0 %v1205
      %1531 = vmatpush.bf16.msra.mxu0 %v1204
      %1532 = vmatpush.bf16.msra.mxu0 %v1203
      %1533 = vmatpush.bf16.msra.mxu0 %v1202
      %1534 = vmatpush.bf16.msra.mxu0 %v1201
      %1535 = vmatpush.bf16.msra.mxu0 %v1200
      %1536 = vmatpush.bf16.msra.mxu0 %v1199
      %1537 = vmatmul.bf16.gmra.mxu0 %v538
      %v1538 = vpop.f32.mrf.mxu0
      %v1539 = vadd.f32 %v1525, %v1538
      %v1540 = vpop.f32.mrf.mxu0
      %v1541 = vadd.f32 %v1527, %v1540
      %1542 = vdwg.mxu0
      %1543 = vmatpush.bf16.msra.mxu0 %v1214
      %1544 = vmatpush.bf16.msra.mxu0 %v1213
      %1545 = vmatpush.bf16.msra.mxu0 %v1212
      %1546 = vmatpush.bf16.msra.mxu0 %v1211
      %1547 = vmatpush.bf16.msra.mxu0 %v1210
      %1548 = vmatpush.bf16.msra.mxu0 %v1209
      %1549 = vmatpush.bf16.msra.mxu0 %v1208
      %1550 = vmatpush.bf16.msra.mxu0 %v1207
      %1551 = vmatmul.bf16.gmra.mxu0 %v539
      %v1552 = vpop.f32.mrf.mxu0
      %v1553 = vadd.f32 %v1539, %v1552
      %v1554 = vpop.f32.mrf.mxu0
      %v1555 = vadd.f32 %v1541, %v1554
      %1556 = vdwg.mxu0
      %1557 = vmatpush.bf16.msra.mxu0 %v1222
      %1558 = vmatpush.bf16.msra.mxu0 %v1221
      %1559 = vmatpush.bf16.msra.mxu0 %v1220
      %1560 = vmatpush.bf16.msra.mxu0 %v1219
      %1561 = vmatpush.bf16.msra.mxu0 %v1218
      %1562 = vmatpush.bf16.msra.mxu0 %v1217
      %1563 = vmatpush.bf16.msra.mxu0 %v1216
      %1564 = vmatpush.bf16.msra.mxu0 %v1215
      %1565 = vmatmul.bf16.gmra.mxu0 %v540
      %v1566 = vpop.f32.mrf.mxu0
      %v1567 = vadd.f32 %v1553, %v1566
      %v1568 = vpop.f32.mrf.mxu0
      %v1569 = vadd.f32 %v1555, %v1568
      %1570 = vdwg.mxu0
      %1571 = vmatpush.bf16.msra.mxu0 %v1230
      %1572 = vmatpush.bf16.msra.mxu0 %v1229
      %1573 = vmatpush.bf16.msra.mxu0 %v1228
      %1574 = vmatpush.bf16.msra.mxu0 %v1227
      %1575 = vmatpush.bf16.msra.mxu0 %v1226
      %1576 = vmatpush.bf16.msra.mxu0 %v1225
      %1577 = vmatpush.bf16.msra.mxu0 %v1224
      %1578 = vmatpush.bf16.msra.mxu0 %v1223
      %1579 = vmatmul.bf16.gmra.mxu0 %v541
      %v1580 = vpop.f32.mrf.mxu0
      %v1581 = vadd.f32 %v1567, %v1580
      %v1582 = vpop.f32.mrf.mxu0
      %v1583 = vadd.f32 %v1569, %v1582
      %1584 = vdwg.mxu0
      %1585 = vmatpush.bf16.msra.mxu0 %v1238
      %1586 = vmatpush.bf16.msra.mxu0 %v1237
      %1587 = vmatpush.bf16.msra.mxu0 %v1236
      %1588 = vmatpush.bf16.msra.mxu0 %v1235
      %1589 = vmatpush.bf16.msra.mxu0 %v1234
      %1590 = vmatpush.bf16.msra.mxu0 %v1233
      %1591 = vmatpush.bf16.msra.mxu0 %v1232
      %1592 = vmatpush.bf16.msra.mxu0 %v1231
      %1593 = vmatmul.bf16.gmra.mxu0 %v542
      %v1594 = vpop.f32.mrf.mxu0
      %v1595 = vadd.f32 %v1581, %v1594
      %v1596 = vpop.f32.mrf.mxu0
      %v1597 = vadd.f32 %v1583, %v1596
      %1598 = vdwg.mxu0
      %1599 = vmatpush.bf16.msra.mxu0 %v1246
      %1600 = vmatpush.bf16.msra.mxu0 %v1245
      %1601 = vmatpush.bf16.msra.mxu0 %v1244
      %1602 = vmatpush.bf16.msra.mxu0 %v1243
      %1603 = vmatpush.bf16.msra.mxu0 %v1242
      %1604 = vmatpush.bf16.msra.mxu0 %v1241
      %1605 = vmatpush.bf16.msra.mxu0 %v1240
      %1606 = vmatpush.bf16.msra.mxu0 %v1239
      %1607 = vmatmul.bf16.gmra.mxu0 %v543
      %v1608 = vpop.f32.mrf.mxu0
      %v1609 = vadd.f32 %v1595, %v1608
      %v1610 = vpop.f32.mrf.mxu0
      %v1611 = vadd.f32 %v1597, %v1610
      %1612 = vdwg.mxu0
      %1613 = vmatpush.bf16.msra.mxu0 %v1254
      %1614 = vmatpush.bf16.msra.mxu0 %v1253
      %1615 = vmatpush.bf16.msra.mxu0 %v1252
      %1616 = vmatpush.bf16.msra.mxu0 %v1251
      %1617 = vmatpush.bf16.msra.mxu0 %v1250
      %1618 = vmatpush.bf16.msra.mxu0 %v1249
      %1619 = vmatpush.bf16.msra.mxu0 %v1248
      %1620 = vmatpush.bf16.msra.mxu0 %v1247
      %1621 = vmatmul.bf16.gmra.mxu0 %v544
      %v1622 = vpop.f32.mrf.mxu0
      %v1623 = vadd.f32 %v1609, %v1622
      %v1624 = vpop.f32.mrf.mxu0
      %v1625 = vadd.f32 %v1611, %v1624
      %1626 = vdwg.mxu0
      %1627 = vmatpush.bf16.msra.mxu0 %v1262
      %1628 = vmatpush.bf16.msra.mxu0 %v1261
      %1629 = vmatpush.bf16.msra.mxu0 %v1260
      %1630 = vmatpush.bf16.msra.mxu0 %v1259
      %1631 = vmatpush.bf16.msra.mxu0 %v1258
      %1632 = vmatpush.bf16.msra.mxu0 %v1257
      %1633 = vmatpush.bf16.msra.mxu0 %v1256
      %1634 = vmatpush.bf16.msra.mxu0 %v1255
      %1635 = vmatmul.bf16.gmra.mxu0 %v545
      %v1636 = vpop.f32.mrf.mxu0
      %v1637 = vadd.f32 %v1623, %v1636
      %v1638 = vpop.f32.mrf.mxu0
      %v1639 = vadd.f32 %v1625, %v1638
      %1640 = vdwg.mxu0
      %1641 = vmatpush.bf16.msra.mxu0 %v1270
      %1642 = vmatpush.bf16.msra.mxu0 %v1269
      %1643 = vmatpush.bf16.msra.mxu0 %v1268
      %1644 = vmatpush.bf16.msra.mxu0 %v1267
      %1645 = vmatpush.bf16.msra.mxu0 %v1266
      %1646 = vmatpush.bf16.msra.mxu0 %v1265
      %1647 = vmatpush.bf16.msra.mxu0 %v1264
      %1648 = vmatpush.bf16.msra.mxu0 %v1263
      %1649 = vmatmul.bf16.gmra.mxu0 %v546
      %v1650 = vpop.f32.mrf.mxu0
      %v1651 = vadd.f32 %v1637, %v1650
      %v1652 = vpop.f32.mrf.mxu0
      %v1653 = vadd.f32 %v1639, %v1652
      %1654 = vdwg.mxu0
      %1655 = vmatpush.bf16.msra.mxu0 %v1278
      %1656 = vmatpush.bf16.msra.mxu0 %v1277
      %1657 = vmatpush.bf16.msra.mxu0 %v1276
      %1658 = vmatpush.bf16.msra.mxu0 %v1275
      %1659 = vmatpush.bf16.msra.mxu0 %v1274
      %1660 = vmatpush.bf16.msra.mxu0 %v1273
      %1661 = vmatpush.bf16.msra.mxu0 %v1272
      %1662 = vmatpush.bf16.msra.mxu0 %v1271
      %1663 = vmatmul.bf16.gmra.mxu0 %v547
      %v1664 = vpop.f32.mrf.mxu0
      %v1665 = vadd.f32 %v1651, %v1664
      %v1666 = vpop.f32.mrf.mxu0
      %v1667 = vadd.f32 %v1653, %v1666
      %1668 = vdwg.mxu0
      %1669 = vmatpush.bf16.msra.mxu0 %v1286
      %1670 = vmatpush.bf16.msra.mxu0 %v1285
      %1671 = vmatpush.bf16.msra.mxu0 %v1284
      %1672 = vmatpush.bf16.msra.mxu0 %v1283
      %1673 = vmatpush.bf16.msra.mxu0 %v1282
      %1674 = vmatpush.bf16.msra.mxu0 %v1281
      %1675 = vmatpush.bf16.msra.mxu0 %v1280
      %1676 = vmatpush.bf16.msra.mxu0 %v1279
      %1677 = vmatmul.bf16.gmra.mxu0 %v548
      %v1678 = vpop.f32.mrf.mxu0
      %v1679 = vadd.f32 %v1665, %v1678
      %v1680 = vpop.f32.mrf.mxu0
      %v1681 = vadd.f32 %v1667, %v1680
      %1682 = vdwg.mxu0
      %v1683 = vmax.f32 %v1679, 0.0
      %v1684 = vmax.f32 %v1681, 0.0
      %v1685 = vadd.f32 %v1683, %v1684
      %v1686 = vrot.slane %v1685, 4
      %v1687 = vadd.f32 %v1685, %v1686
      %v1688 = vrot.slane %v1687, 2
      %v1689 = vadd.f32 %v1687, %v1688
      %v1690 = vrot.slane %v1689, 1
      %v1691 = vadd.f32 %v1689, %v1690
      %v1692 = vmul.f32 %v1691, 0.0625
      %1693 = vst [vmem:[%s166] sm:$0x1] %v1692
      %p1694 = scmp.lt.s32.totalorder %s14, 5
      %s1695 = scalar_select %p1694, %s14, 5
      %s1696 = scalar_lea.vmem %s3, %s1695
      // Predicated region
      $region33: #{hsi_lidar_couple_cross.7} parent=31 // pred_check
        %p1697 = pneg %p100
      $region34: #{hsi_lidar_couple_cross.7} parent=31 // pred_check_branch
        %1699 = sbr.rel (%p1697) target = $region36
      $region35: #{hsi_lidar_couple_cross.7} parent=31 // pred_region
        _
      $region36: #{hsi_lidar_couple_cross.7} parent=31 // pred_fallthru
        _
    $region32: #{hsi_lidar_couple_cross.7} parent=5 // pred_fallthru
      _
    %p1700 = scmp.le.s32.totalorder 2, %s9
    // Predicated region
    $region37: #{hsi_lidar_couple_cross.7} parent=5 // pred_check
      %p1701 = pneg %p1700
    $region38: #{hsi_lidar_couple_cross.7} parent=5 // pred_check_branch
      %1703 = sbr.rel (%p1701) target = $region40
    $region39: #{hsi_lidar_couple_cross.7} parent=5 // pred_region
      %s1704 = ssub.s32 %s9, 2
      // Predicated region
      $region41: #{hsi_lidar_couple_cross.7} parent=39 // pred_check
        %p1705 = pneg %p106
      $region42: #{hsi_lidar_couple_cross.7} parent=39 // pred_check_branch
        %1707 = sbr.rel (%p1705) target = $region44
      $region43: #{hsi_lidar_couple_cross.7} parent=39 // pred_region
        %p1708 = scmp.lt.s32.totalorder %s15, 5
        %s1709 = scalar_select %p1708, %s15, 5
        %s1710 = scalar_lea.vmem %s3, %s1709
      $region44: #{hsi_lidar_couple_cross.7} parent=39 // pred_fallthru
        _
    $region40: #{hsi_lidar_couple_cross.7} parent=5 // pred_fallthru
      _
  $region6: #{hsi_lidar_couple_cross.7} parent=0 // loop_footer
    %s13 = sadd.s32 1, %s9
  $region7: #{hsi_lidar_couple_cross.7} parent=0 // loop_footer_branch
    %8 = sbr.rel target = $region3
  $region8: #{hsi_lidar_couple_cross.7} parent=0 // loop_exit
    _

</llo_original>
